<compile_context>
chip_gen: v5e
topology: v5e:2x2
jax: 0.10.0
libtpu: 0.0.40
codegen_flags: <defaults>
</compile_context>

<pallas_src>
import functools
import math

import jax
import jax.numpy as jnp
from jax import lax
from jax.experimental import pallas as pl
from jax.experimental.pallas import tpu as pltpu

LN_EPS = 1e-5


def _layernorm(x, w, b, eps=LN_EPS):
    # x: (..., D), w/b broadcastable to x's trailing dim; stats in f32.
    mu = jnp.mean(x, axis=-1, keepdims=True)
    var = jnp.mean((x - mu) ** 2, axis=-1, keepdims=True)
    return (x - mu) * lax.rsqrt(var + eps) * w + b


def vit_block_kernel(
    x_ref,              # (N, C)               current batch element
    inw_ref, inb_ref,   # (1, C)               in_norm gamma / beta (f32)
    wp_ref, bp_ref,     # (C, Dout) bf16, (1, Dout) f32   fused in_proj (mlp | q | k | v)
    qnw_ref, qnb_ref,   # (1, hd)              q_norm gamma / beta (f32)
    knw_ref, knb_ref,   # (1, hd)              k_norm gamma / beta (f32)
    wao_ref, bao_ref,   # (C, C) bf16, (1, C) f32          attn_out_proj
    wmo_ref, bmo_ref,   # (Dh, C) bf16, (1, C) f32         mlp_out_proj
    o_ref,              # (N, C)
    *, num_heads, head_dim, mlp_hidden,
):
    x = x_ref[...].astype(jnp.float32)                        # (N, C)
    N, C = x.shape
    H, hd = num_heads, head_dim

    # ---- in_norm (LayerNorm over C, f32) ----
    y = _layernorm(x, inw_ref[...].astype(jnp.float32), inb_ref[...].astype(jnp.float32))

    # ---- fused in_proj: [mlp_hidden | q | k | v]  (bf16 MXU, f32 accumulate) ----
    y = jnp.dot(y.astype(jnp.bfloat16), wp_ref[...],
                preferred_element_type=jnp.float32) + bp_ref[...].astype(jnp.float32)

    x_mlp = y[:, :mlp_hidden]                                 # (N, Dh)
    q = y[:, mlp_hidden:mlp_hidden + C]                       # (N, C)
    k = y[:, mlp_hidden + C:mlp_hidden + 2 * C]
    v = y[:, mlp_hidden + 2 * C:mlp_hidden + 3 * C]

    qnw = qnw_ref[...].astype(jnp.float32)
    qnb = qnb_ref[...].astype(jnp.float32)
    knw = knw_ref[...].astype(jnp.float32)
    knb = knb_ref[...].astype(jnp.float32)
    scale = 1.0 / math.sqrt(hd)

    qkT_dims = (((1,), (1,)), ((), ()))   # contract last dims: q @ k^T without a transpose op

    # ---- attention, one head at a time ----
    x_attn = jnp.zeros((N, C), jnp.float32)
    for h in range(H):
        sl = slice(h * hd, (h + 1) * hd)
        # per-head q/k LayerNorm over hd (f32); fold 1/sqrt(hd) into q
        qh = _layernorm(q[:, sl], qnw, qnb) * scale           # (N, hd)
        kh = _layernorm(k[:, sl], knw, knb)                   # (N, hd)
        vh = v[:, sl]                                         # (N, hd)

        s = lax.dot_general(qh.astype(jnp.bfloat16), kh.astype(jnp.bfloat16),
                            dimension_numbers=qkT_dims,
                            preferred_element_type=jnp.float32)   # (N, N) f32
        s = s - jnp.max(s, axis=-1, keepdims=True)
        p = jnp.exp(s)
        denom = jnp.sum(p, axis=-1, keepdims=True)                # (N, 1)

        # unnormalized p @ v; normalize afterwards with an EUP reciprocal (cheap slot)
        oh = jnp.dot(p.astype(jnp.bfloat16), vh.astype(jnp.bfloat16),
                     preferred_element_type=jnp.float32)          # (N, hd)
        oh = oh * pl.reciprocal(denom, approx=True)

        # fused per-head output projection: (N, hd) @ (hd, C) -> accumulate into (N, C)
        x_attn = x_attn + jnp.dot(oh.astype(jnp.bfloat16), wao_ref[sl, :],
                                  preferred_element_type=jnp.float32)
    x_attn = x_attn + bao_ref[...].astype(jnp.float32)

    # ---- MLP branch: exact GELU (f32) then bf16 projection ----
    g = 0.5 * x_mlp * (1.0 + lax.erf(x_mlp * (1.0 / math.sqrt(2.0))))
    x_m = jnp.dot(g.astype(jnp.bfloat16), wmo_ref[...],
                  preferred_element_type=jnp.float32) + bmo_ref[...].astype(jnp.float32)

    # ---- parallel residual ----
    o_ref[...] = (x + x_attn + x_m).astype(o_ref.dtype)


def vit_block(x, params, *, num_heads):
    B, N, C = x.shape
    head_dim = C // num_heads
    mlp_hidden = params['mlp_out_w'].shape[0]
    d_out = params['in_proj_w'].shape[1]

    # Matmul weights in bf16 (native MXU fast path, half the resident VMEM).
    # Biases and LN parameters stay f32.
    wp = params['in_proj_w'].astype(jnp.bfloat16)
    wao = params['attn_out_w'].astype(jnp.bfloat16)
    wmo = params['mlp_out_w'].astype(jnp.bfloat16)

    kern = functools.partial(
        vit_block_kernel,
        num_heads=num_heads, head_dim=head_dim, mlp_hidden=mlp_hidden)

    # Explicit scoped-VMEM limit: ~85% of this chip's capacity, capped at 100 MiB.
    try:
        vmem_cap = pltpu.get_tpu_info().vmem_capacity_bytes
    except Exception:
        vmem_cap = 64 * 1024 * 1024
    vmem_limit = min(int(0.85 * vmem_cap), 100 * 1024 * 1024)

    def run(single_buffer_weights):
        def wspec(shape):
            if single_buffer_weights:
                # Weights are grid-invariant: no need to double-buffer them.
                return pl.BlockSpec(shape, lambda b: (0, 0),
                                    pipeline_mode=pl.Buffered(1))
            return pl.BlockSpec(shape, lambda b: (0, 0))

        return pl.pallas_call(
            kern,
            out_shape=jax.ShapeDtypeStruct((B, N, C), x.dtype),
            grid_spec=pltpu.PrefetchScalarGridSpec(
                num_scalar_prefetch=0,
                grid=(B,),
                in_specs=[
                    pl.BlockSpec((None, N, C), lambda b: (b, 0, 0)),   # x
                    wspec((1, C)), wspec((1, C)),                      # in_norm w, b
                    wspec((C, d_out)), wspec((1, d_out)),              # in_proj
                    wspec((1, head_dim)), wspec((1, head_dim)),        # q_norm
                    wspec((1, head_dim)), wspec((1, head_dim)),        # k_norm
                    wspec((C, C)), wspec((1, C)),                      # attn_out_proj
                    wspec((mlp_hidden, C)), wspec((1, C)),             # mlp_out_proj
                ],
                out_specs=pl.BlockSpec((None, N, C), lambda b: (b, 0, 0)),
            ),
            compiler_params=pltpu.CompilerParams(
                dimension_semantics=("parallel",),      # independent batch elements
                vmem_limit_bytes=vmem_limit),
        )(
            x,
            params['in_norm_w'], params['in_norm_b'],
            wp, params['in_proj_b'],
            params['q_norm_w'], params['q_norm_b'],
            params['k_norm_w'], params['k_norm_b'],
            wao, params['attn_out_b'],
            wmo, params['mlp_out_b'],
        )

    try:
        return run(True)
    except Exception:
        # Fallback for JAX versions without BlockSpec(pipeline_mode=pl.Buffered(1)).
        return run(False)


def reference(x, params, *, num_heads):
    """Pure-JAX f32 reference mirroring the PyTorch forward."""
    B, N, C = x.shape
    hd = C // num_heads
    mlp_hidden = params['mlp_out_w'].shape[0]
    ln = lambda v, w, b: _layernorm(v, w, b)
    y = ln(x, params['in_norm_w'][0], params['in_norm_b'][0])
    y = y @ params['in_proj_w'] + params['in_proj_b'][0]
    x_mlp = y[..., :mlp_hidden]
    q, k, v = (y[..., mlp_hidden + i * C: mlp_hidden + (i + 1) * C] for i in range(3))
    q = ln(q.reshape(B, N, num_heads, hd), params['q_norm_w'][0], params['q_norm_b'][0])
    k = ln(k.reshape(B, N, num_heads, hd), params['k_norm_w'][0], params['k_norm_b'][0])
    v = v.reshape(B, N, num_heads, hd)
    q, k, v = (jnp.transpose(t, (0, 2, 1, 3)) for t in (q, k, v))
    s = jnp.einsum('bhnd,bhmd->bhnm', q, k) / math.sqrt(hd)
    p = jax.nn.softmax(s, axis=-1)
    a = jnp.einsum('bhnm,bhmd->bhnd', p, v)
    a = jnp.transpose(a, (0, 2, 1, 3)).reshape(B, N, C)
    x_attn = a @ params['attn_out_w'] + params['attn_out_b'][0]
    g = 0.5 * x_mlp * (1.0 + lax.erf(x_mlp / math.sqrt(2.0)))
    x_m = g @ params['mlp_out_w'] + params['mlp_out_b'][0]
    return x + x_attn + x_m


def init_params(key, dim, num_heads, mlp_ratio=4.0):
    head_dim = dim // num_heads
    mlp_hidden = int(mlp_ratio * dim)
    d_out = mlp_hidden + 3 * dim
    ks = jax.random.split(key, 6)
    f32 = jnp.float32
    return {
        'in_norm_w': jnp.ones((1, dim), f32),
        'in_norm_b': jnp.zeros((1, dim), f32),
        'in_proj_w': jax.random.normal(ks[0], (dim, d_out), f32) * 0.02,
        'in_proj_b': jax.random.normal(ks[1], (1, d_out), f32) * 0.02,
        'q_norm_w': jnp.ones((1, head_dim), f32),
        'q_norm_b': jnp.zeros((1, head_dim), f32),
        'k_norm_w': jnp.ones((1, head_dim), f32),
        'k_norm_b': jnp.zeros((1, head_dim), f32),
        'attn_out_w': jax.random.normal(ks[2], (dim, dim), f32) * 0.02,
        'attn_out_b': jax.random.normal(ks[3], (1, dim), f32) * 0.02,
        'mlp_out_w': jax.random.normal(ks[4], (mlp_hidden, dim), f32) * 0.02,
        'mlp_out_b': jax.random.normal(ks[5], (1, dim), f32) * 0.02,
    }


if __name__ == "__main__":
    B, N, dim, num_heads = 2, 16, 64, 4
    key = jax.random.PRNGKey(0)
    kx, kp = jax.random.split(key)
    x = jax.random.normal(kx, (B, N, dim), jnp.float32)
    params = init_params(kp, dim, num_heads)

    out = vit_block(x, params, num_heads=num_heads)
    out = jax.block_until_ready(out)

    ref = reference(x, params, num_heads=num_heads)
    assert out.shape == (B, N, dim)
    # bf16 matmuls with f32 accumulation + approx reciprocal -> slightly looser
    # tolerance than the pure-f32 reference.
    max_diff = float(jnp.max(jnp.abs(out - ref)))
    assert jnp.allclose(out, ref, atol=2e-2, rtol=2e-2), (
        f"mismatch vs reference: max|diff|={max_diff}")
    print("KERNEL_OK")
</pallas_src>

<mosaic_0001>
module attributes {stable_mosaic.version = 11 : i64} {
  func.func @vit_block_kernel(%arg0: i32, %arg1: memref<1x16x64xf32, #tpu.memory_space<vmem>>, %arg2: memref<1x64xf32, #tpu.memory_space<vmem>>, %arg3: memref<1x64xf32, #tpu.memory_space<vmem>>, %arg4: memref<64x448xbf16, #tpu.memory_space<vmem>>, %arg5: memref<1x448xf32, #tpu.memory_space<vmem>>, %arg6: memref<1x16xf32, #tpu.memory_space<vmem>>, %arg7: memref<1x16xf32, #tpu.memory_space<vmem>>, %arg8: memref<1x16xf32, #tpu.memory_space<vmem>>, %arg9: memref<1x16xf32, #tpu.memory_space<vmem>>, %arg10: memref<64x64xbf16, #tpu.memory_space<vmem>>, %arg11: memref<1x64xf32, #tpu.memory_space<vmem>>, %arg12: memref<256x64xbf16, #tpu.memory_space<vmem>>, %arg13: memref<1x64xf32, #tpu.memory_space<vmem>>, %arg14: memref<1x16x64xf32, #tpu.memory_space<vmem>>) attributes {dimension_semantics = [#tpu.dimension_semantics<parallel>], iteration_bounds = array<i64: 2>, scalar_prefetch = 0 : i64, scratch_operands = 0 : i64, tpu.core_type = #tpu.core_type<tc>, window_params = [{transform_indices = @transform_0, window_bounds = array<i64: 1, 16, 64>}, {pipeline_mode = #tpu.pipeline_mode<synchronous>, transform_indices = @transform_1, window_bounds = array<i64: 1, 64>}, {pipeline_mode = #tpu.pipeline_mode<synchronous>, transform_indices = @transform_2, window_bounds = array<i64: 1, 64>}, {pipeline_mode = #tpu.pipeline_mode<synchronous>, transform_indices = @transform_3, window_bounds = array<i64: 64, 448>}, {pipeline_mode = #tpu.pipeline_mode<synchronous>, transform_indices = @transform_4, window_bounds = array<i64: 1, 448>}, {pipeline_mode = #tpu.pipeline_mode<synchronous>, transform_indices = @transform_5, window_bounds = array<i64: 1, 16>}, {pipeline_mode = #tpu.pipeline_mode<synchronous>, transform_indices = @transform_6, window_bounds = array<i64: 1, 16>}, {pipeline_mode = #tpu.pipeline_mode<synchronous>, transform_indices = @transform_7, window_bounds = array<i64: 1, 16>}, {pipeline_mode = #tpu.pipeline_mode<synchronous>, transform_indices = @transform_8, window_bounds = array<i64: 1, 16>}, {pipeline_mode = #tpu.pipeline_mode<synchronous>, transform_indices = @transform_9, window_bounds = array<i64: 64, 64>}, {pipeline_mode = #tpu.pipeline_mode<synchronous>, transform_indices = @transform_10, window_bounds = array<i64: 1, 64>}, {pipeline_mode = #tpu.pipeline_mode<synchronous>, transform_indices = @transform_11, window_bounds = array<i64: 256, 64>}, {pipeline_mode = #tpu.pipeline_mode<synchronous>, transform_indices = @transform_12, window_bounds = array<i64: 1, 64>}, {transform_indices = @transform_13, window_bounds = array<i64: 1, 16, 64>}]} {
    %c0 = arith.constant 0 : index
    %c0_0 = arith.constant 0 : index
    %c0_1 = arith.constant 0 : index
    %0 = vector.load %arg1[%c0, %c0_0, %c0_1] : memref<1x16x64xf32, #tpu.memory_space<vmem>>, vector<1x16x64xf32>
    %1 = vector.shape_cast %0 : vector<1x16x64xf32> to vector<16x64xf32>
    %c0_2 = arith.constant 0 : index
    %c0_3 = arith.constant 0 : index
    %2 = vector.load %arg2[%c0_2, %c0_3] : memref<1x64xf32, #tpu.memory_space<vmem>>, vector<1x64xf32>
    %c0_4 = arith.constant 0 : index
    %c0_5 = arith.constant 0 : index
    %3 = vector.load %arg3[%c0_4, %c0_5] : memref<1x64xf32, #tpu.memory_space<vmem>>, vector<1x64xf32>
    %cst = arith.constant dense<0.000000e+00> : vector<16xf32>
    %4 = vector.multi_reduction <add>, %1, %cst [1] : vector<16x64xf32> to vector<16xf32>
    %5 = vector.shape_cast %4 : vector<16xf32> to vector<16x1xf32>
    %cst_6 = arith.constant 6.400000e+01 : f32
    %6 = vector.broadcast %cst_6 : f32 to vector<16x1xf32>
    %7 = arith.divf %5, %6 : vector<16x1xf32>
    %8 = vector.broadcast %7 : vector<16x1xf32> to vector<16x64xf32>
    %9 = arith.subf %1, %8 : vector<16x64xf32>
    %10 = arith.mulf %9, %9 : vector<16x64xf32>
    %cst_7 = arith.constant dense<0.000000e+00> : vector<16xf32>
    %11 = vector.multi_reduction <add>, %10, %cst_7 [1] : vector<16x64xf32> to vector<16xf32>
    %12 = vector.shape_cast %11 : vector<16xf32> to vector<16x1xf32>
    %cst_8 = arith.constant 6.400000e+01 : f32
    %13 = vector.broadcast %cst_8 : f32 to vector<16x1xf32>
    %14 = arith.divf %12, %13 : vector<16x1xf32>
    %15 = vector.broadcast %7 : vector<16x1xf32> to vector<16x64xf32>
    %16 = arith.subf %1, %15 : vector<16x64xf32>
    %cst_9 = arith.constant 9.99999974E-6 : f32
    %17 = vector.broadcast %cst_9 : f32 to vector<16x1xf32>
    %18 = arith.addf %14, %17 : vector<16x1xf32>
    %19 = math.rsqrt %18 : vector<16x1xf32>
    %20 = vector.broadcast %19 : vector<16x1xf32> to vector<16x64xf32>
    %21 = arith.mulf %16, %20 : vector<16x64xf32>
    %22 = vector.broadcast %2 : vector<1x64xf32> to vector<16x64xf32>
    %23 = arith.mulf %21, %22 : vector<16x64xf32>
    %24 = vector.broadcast %3 : vector<1x64xf32> to vector<16x64xf32>
    %25 = arith.addf %23, %24 : vector<16x64xf32>
    %26 = arith.truncf %25 : vector<16x64xf32> to vector<16x64xbf16>
    %c0_10 = arith.constant 0 : index
    %c0_11 = arith.constant 0 : index
    %27 = vector.load %arg4[%c0_10, %c0_11] : memref<64x448xbf16, #tpu.memory_space<vmem>>, vector<64x448xbf16>
    %cst_12 = arith.constant dense<0.000000e+00> : vector<16x448xf32>
    %28 = tpu.matmul %26, %27, %cst_12 {dimension_numbers = #tpu.dot_dimension_numbers<[1], [0], [0], [1], [0, 0, 1, 1], [], []>} : vector<16x64xbf16>, vector<64x448xbf16>, vector<16x448xf32> -> vector<16x448xf32>
    %c0_13 = arith.constant 0 : index
    %c0_14 = arith.constant 0 : index
    %29 = vector.load %arg5[%c0_13, %c0_14] : memref<1x448xf32, #tpu.memory_space<vmem>>, vector<1x448xf32>
    %30 = vector.broadcast %29 : vector<1x448xf32> to vector<16x448xf32>
    %31 = arith.addf %28, %30 : vector<16x448xf32>
    %32 = vector.extract_strided_slice %31 {offsets = [0, 0], sizes = [16, 256], strides = [1, 1]} : vector<16x448xf32> to vector<16x256xf32>
    %33 = vector.extract_strided_slice %31 {offsets = [0, 256], sizes = [16, 64], strides = [1, 1]} : vector<16x448xf32> to vector<16x64xf32>
    %34 = vector.extract_strided_slice %31 {offsets = [0, 320], sizes = [16, 64], strides = [1, 1]} : vector<16x448xf32> to vector<16x64xf32>
    %35 = vector.extract_strided_slice %31 {offsets = [0, 384], sizes = [16, 64], strides = [1, 1]} : vector<16x448xf32> to vector<16x64xf32>
    %c0_15 = arith.constant 0 : index
    %c0_16 = arith.constant 0 : index
    %36 = vector.load %arg6[%c0_15, %c0_16] : memref<1x16xf32, #tpu.memory_space<vmem>>, vector<1x16xf32>
    %c0_17 = arith.constant 0 : index
    %c0_18 = arith.constant 0 : index
    %37 = vector.load %arg7[%c0_17, %c0_18] : memref<1x16xf32, #tpu.memory_space<vmem>>, vector<1x16xf32>
    %c0_19 = arith.constant 0 : index
    %c0_20 = arith.constant 0 : index
    %38 = vector.load %arg8[%c0_19, %c0_20] : memref<1x16xf32, #tpu.memory_space<vmem>>, vector<1x16xf32>
    %c0_21 = arith.constant 0 : index
    %c0_22 = arith.constant 0 : index
    %39 = vector.load %arg9[%c0_21, %c0_22] : memref<1x16xf32, #tpu.memory_space<vmem>>, vector<1x16xf32>
    %cst_23 = arith.constant 0.000000e+00 : f32
    %40 = vector.broadcast %cst_23 : f32 to vector<16x64xf32>
    %41 = vector.extract_strided_slice %33 {offsets = [0, 0], sizes = [16, 16], strides = [1, 1]} : vector<16x64xf32> to vector<16x16xf32>
    %cst_24 = arith.constant dense<0.000000e+00> : vector<16xf32>
    %42 = vector.multi_reduction <add>, %41, %cst_24 [1] : vector<16x16xf32> to vector<16xf32>
    %43 = vector.shape_cast %42 : vector<16xf32> to vector<16x1xf32>
    %cst_25 = arith.constant 1.600000e+01 : f32
    %44 = vector.broadcast %cst_25 : f32 to vector<16x1xf32>
    %45 = arith.divf %43, %44 : vector<16x1xf32>
    %46 = vector.broadcast %45 : vector<16x1xf32> to vector<16x16xf32>
    %47 = arith.subf %41, %46 : vector<16x16xf32>
    %48 = arith.mulf %47, %47 : vector<16x16xf32>
    %cst_26 = arith.constant dense<0.000000e+00> : vector<16xf32>
    %49 = vector.multi_reduction <add>, %48, %cst_26 [1] : vector<16x16xf32> to vector<16xf32>
    %50 = vector.shape_cast %49 : vector<16xf32> to vector<16x1xf32>
    %cst_27 = arith.constant 1.600000e+01 : f32
    %51 = vector.broadcast %cst_27 : f32 to vector<16x1xf32>
    %52 = arith.divf %50, %51 : vector<16x1xf32>
    %53 = vector.broadcast %45 : vector<16x1xf32> to vector<16x16xf32>
    %54 = arith.subf %41, %53 : vector<16x16xf32>
    %cst_28 = arith.constant 9.99999974E-6 : f32
    %55 = vector.broadcast %cst_28 : f32 to vector<16x1xf32>
    %56 = arith.addf %52, %55 : vector<16x1xf32>
    %57 = math.rsqrt %56 : vector<16x1xf32>
    %58 = vector.broadcast %57 : vector<16x1xf32> to vector<16x16xf32>
    %59 = arith.mulf %54, %58 : vector<16x16xf32>
    %60 = vector.broadcast %36 : vector<1x16xf32> to vector<16x16xf32>
    %61 = arith.mulf %59, %60 : vector<16x16xf32>
    %62 = vector.broadcast %37 : vector<1x16xf32> to vector<16x16xf32>
    %63 = arith.addf %61, %62 : vector<16x16xf32>
    %cst_29 = arith.constant 2.500000e-01 : f32
    %64 = vector.broadcast %cst_29 : f32 to vector<16x16xf32>
    %65 = arith.mulf %63, %64 : vector<16x16xf32>
    %66 = vector.extract_strided_slice %34 {offsets = [0, 0], sizes = [16, 16], strides = [1, 1]} : vector<16x64xf32> to vector<16x16xf32>
    %cst_30 = arith.constant dense<0.000000e+00> : vector<16xf32>
    %67 = vector.multi_reduction <add>, %66, %cst_30 [1] : vector<16x16xf32> to vector<16xf32>
    %68 = vector.shape_cast %67 : vector<16xf32> to vector<16x1xf32>
    %cst_31 = arith.constant 1.600000e+01 : f32
    %69 = vector.broadcast %cst_31 : f32 to vector<16x1xf32>
    %70 = arith.divf %68, %69 : vector<16x1xf32>
    %71 = vector.broadcast %70 : vector<16x1xf32> to vector<16x16xf32>
    %72 = arith.subf %66, %71 : vector<16x16xf32>
    %73 = arith.mulf %72, %72 : vector<16x16xf32>
    %cst_32 = arith.constant dense<0.000000e+00> : vector<16xf32>
    %74 = vector.multi_reduction <add>, %73, %cst_32 [1] : vector<16x16xf32> to vector<16xf32>
    %75 = vector.shape_cast %74 : vector<16xf32> to vector<16x1xf32>
    %cst_33 = arith.constant 1.600000e+01 : f32
    %76 = vector.broadcast %cst_33 : f32 to vector<16x1xf32>
    %77 = arith.divf %75, %76 : vector<16x1xf32>
    %78 = vector.broadcast %70 : vector<16x1xf32> to vector<16x16xf32>
    %79 = arith.subf %66, %78 : vector<16x16xf32>
    %cst_34 = arith.constant 9.99999974E-6 : f32
    %80 = vector.broadcast %cst_34 : f32 to vector<16x1xf32>
    %81 = arith.addf %77, %80 : vector<16x1xf32>
    %82 = math.rsqrt %81 : vector<16x1xf32>
    %83 = vector.broadcast %82 : vector<16x1xf32> to vector<16x16xf32>
    %84 = arith.mulf %79, %83 : vector<16x16xf32>
    %85 = vector.broadcast %38 : vector<1x16xf32> to vector<16x16xf32>
    %86 = arith.mulf %84, %85 : vector<16x16xf32>
    %87 = vector.broadcast %39 : vector<1x16xf32> to vector<16x16xf32>
    %88 = arith.addf %86, %87 : vector<16x16xf32>
    %89 = vector.extract_strided_slice %35 {offsets = [0, 0], sizes = [16, 16], strides = [1, 1]} : vector<16x64xf32> to vector<16x16xf32>
    %90 = arith.truncf %65 : vector<16x16xf32> to vector<16x16xbf16>
    %91 = arith.truncf %88 : vector<16x16xf32> to vector<16x16xbf16>
    %cst_35 = arith.constant dense<0.000000e+00> : vector<16x16xf32>
    %92 = tpu.matmul %90, %91, %cst_35 {dimension_numbers = #tpu.dot_dimension_numbers<[1], [1], [0], [0], [0, 0, 1, 0], [], []>} : vector<16x16xbf16>, vector<16x16xbf16>, vector<16x16xf32> -> vector<16x16xf32>
    %cst_36 = arith.constant dense<0xFF800000> : vector<16xf32>
    %93 = vector.multi_reduction <maximumf>, %92, %cst_36 [1] : vector<16x16xf32> to vector<16xf32>
    %94 = vector.shape_cast %93 : vector<16xf32> to vector<16x1xf32>
    %95 = vector.broadcast %94 : vector<16x1xf32> to vector<16x16xf32>
    %96 = arith.subf %92, %95 : vector<16x16xf32>
    %97 = math.exp %96 : vector<16x16xf32>
    %cst_37 = arith.constant dense<0.000000e+00> : vector<16xf32>
    %98 = vector.multi_reduction <add>, %97, %cst_37 [1] : vector<16x16xf32> to vector<16xf32>
    %99 = vector.shape_cast %98 : vector<16xf32> to vector<16x1xf32>
    %100 = arith.truncf %97 : vector<16x16xf32> to vector<16x16xbf16>
    %101 = arith.truncf %89 : vector<16x16xf32> to vector<16x16xbf16>
    %cst_38 = arith.constant dense<0.000000e+00> : vector<16x16xf32>
    %102 = tpu.matmul %100, %101, %cst_38 {dimension_numbers = #tpu.dot_dimension_numbers<[1], [0], [0], [1], [0, 0, 1, 1], [], []>} : vector<16x16xbf16>, vector<16x16xbf16>, vector<16x16xf32> -> vector<16x16xf32>
    %103 = tpu.reciprocal %99 {approx = true} : vector<16x1xf32> -> vector<16x1xf32>
    %104 = vector.broadcast %103 : vector<16x1xf32> to vector<16x16xf32>
    %105 = arith.mulf %102, %104 : vector<16x16xf32>
    %106 = arith.truncf %105 : vector<16x16xf32> to vector<16x16xbf16>
    %c0_39 = arith.constant 0 : index
    %c0_40 = arith.constant 0 : index
    %107 = vector.load %arg10[%c0_39, %c0_40] : memref<64x64xbf16, #tpu.memory_space<vmem>>, vector<16x64xbf16>
    %cst_41 = arith.constant dense<0.000000e+00> : vector<16x64xf32>
    %108 = tpu.matmul %106, %107, %cst_41 {dimension_numbers = #tpu.dot_dimension_numbers<[1], [0], [0], [1], [0, 0, 1, 1], [], []>} : vector<16x16xbf16>, vector<16x64xbf16>, vector<16x64xf32> -> vector<16x64xf32>
    %109 = arith.addf %40, %108 : vector<16x64xf32>
    %110 = vector.extract_strided_slice %33 {offsets = [0, 16], sizes = [16, 16], strides = [1, 1]} : vector<16x64xf32> to vector<16x16xf32>
    %cst_42 = arith.constant dense<0.000000e+00> : vector<16xf32>
    %111 = vector.multi_reduction <add>, %110, %cst_42 [1] : vector<16x16xf32> to vector<16xf32>
    %112 = vector.shape_cast %111 : vector<16xf32> to vector<16x1xf32>
    %cst_43 = arith.constant 1.600000e+01 : f32
    %113 = vector.broadcast %cst_43 : f32 to vector<16x1xf32>
    %114 = arith.divf %112, %113 : vector<16x1xf32>
    %115 = vector.broadcast %114 : vector<16x1xf32> to vector<16x16xf32>
    %116 = arith.subf %110, %115 : vector<16x16xf32>
    %117 = arith.mulf %116, %116 : vector<16x16xf32>
    %cst_44 = arith.constant dense<0.000000e+00> : vector<16xf32>
    %118 = vector.multi_reduction <add>, %117, %cst_44 [1] : vector<16x16xf32> to vector<16xf32>
    %119 = vector.shape_cast %118 : vector<16xf32> to vector<16x1xf32>
    %cst_45 = arith.constant 1.600000e+01 : f32
    %120 = vector.broadcast %cst_45 : f32 to vector<16x1xf32>
    %121 = arith.divf %119, %120 : vector<16x1xf32>
    %122 = vector.broadcast %114 : vector<16x1xf32> to vector<16x16xf32>
    %123 = arith.subf %110, %122 : vector<16x16xf32>
    %cst_46 = arith.constant 9.99999974E-6 : f32
    %124 = vector.broadcast %cst_46 : f32 to vector<16x1xf32>
    %125 = arith.addf %121, %124 : vector<16x1xf32>
    %126 = math.rsqrt %125 : vector<16x1xf32>
    %127 = vector.broadcast %126 : vector<16x1xf32> to vector<16x16xf32>
    %128 = arith.mulf %123, %127 : vector<16x16xf32>
    %129 = vector.broadcast %36 : vector<1x16xf32> to vector<16x16xf32>
    %130 = arith.mulf %128, %129 : vector<16x16xf32>
    %131 = vector.broadcast %37 : vector<1x16xf32> to vector<16x16xf32>
    %132 = arith.addf %130, %131 : vector<16x16xf32>
    %cst_47 = arith.constant 2.500000e-01 : f32
    %133 = vector.broadcast %cst_47 : f32 to vector<16x16xf32>
    %134 = arith.mulf %132, %133 : vector<16x16xf32>
    %135 = vector.extract_strided_slice %34 {offsets = [0, 16], sizes = [16, 16], strides = [1, 1]} : vector<16x64xf32> to vector<16x16xf32>
    %cst_48 = arith.constant dense<0.000000e+00> : vector<16xf32>
    %136 = vector.multi_reduction <add>, %135, %cst_48 [1] : vector<16x16xf32> to vector<16xf32>
    %137 = vector.shape_cast %136 : vector<16xf32> to vector<16x1xf32>
    %cst_49 = arith.constant 1.600000e+01 : f32
    %138 = vector.broadcast %cst_49 : f32 to vector<16x1xf32>
    %139 = arith.divf %137, %138 : vector<16x1xf32>
    %140 = vector.broadcast %139 : vector<16x1xf32> to vector<16x16xf32>
    %141 = arith.subf %135, %140 : vector<16x16xf32>
    %142 = arith.mulf %141, %141 : vector<16x16xf32>
    %cst_50 = arith.constant dense<0.000000e+00> : vector<16xf32>
    %143 = vector.multi_reduction <add>, %142, %cst_50 [1] : vector<16x16xf32> to vector<16xf32>
    %144 = vector.shape_cast %143 : vector<16xf32> to vector<16x1xf32>
    %cst_51 = arith.constant 1.600000e+01 : f32
    %145 = vector.broadcast %cst_51 : f32 to vector<16x1xf32>
    %146 = arith.divf %144, %145 : vector<16x1xf32>
    %147 = vector.broadcast %139 : vector<16x1xf32> to vector<16x16xf32>
    %148 = arith.subf %135, %147 : vector<16x16xf32>
    %cst_52 = arith.constant 9.99999974E-6 : f32
    %149 = vector.broadcast %cst_52 : f32 to vector<16x1xf32>
    %150 = arith.addf %146, %149 : vector<16x1xf32>
    %151 = math.rsqrt %150 : vector<16x1xf32>
    %152 = vector.broadcast %151 : vector<16x1xf32> to vector<16x16xf32>
    %153 = arith.mulf %148, %152 : vector<16x16xf32>
    %154 = vector.broadcast %38 : vector<1x16xf32> to vector<16x16xf32>
    %155 = arith.mulf %153, %154 : vector<16x16xf32>
    %156 = vector.broadcast %39 : vector<1x16xf32> to vector<16x16xf32>
    %157 = arith.addf %155, %156 : vector<16x16xf32>
    %158 = vector.extract_strided_slice %35 {offsets = [0, 16], sizes = [16, 16], strides = [1, 1]} : vector<16x64xf32> to vector<16x16xf32>
    %159 = arith.truncf %134 : vector<16x16xf32> to vector<16x16xbf16>
    %160 = arith.truncf %157 : vector<16x16xf32> to vector<16x16xbf16>
    %cst_53 = arith.constant dense<0.000000e+00> : vector<16x16xf32>
    %161 = tpu.matmul %159, %160, %cst_53 {dimension_numbers = #tpu.dot_dimension_numbers<[1], [1], [0], [0], [0, 0, 1, 0], [], []>} : vector<16x16xbf16>, vector<16x16xbf16>, vector<16x16xf32> -> vector<16x16xf32>
    %cst_54 = arith.constant dense<0xFF800000> : vector<16xf32>
    %162 = vector.multi_reduction <maximumf>, %161, %cst_54 [1] : vector<16x16xf32> to vector<16xf32>
    %163 = vector.shape_cast %162 : vector<16xf32> to vector<16x1xf32>
    %164 = vector.broadcast %163 : vector<16x1xf32> to vector<16x16xf32>
    %165 = arith.subf %161, %164 : vector<16x16xf32>
    %166 = math.exp %165 : vector<16x16xf32>
    %cst_55 = arith.constant dense<0.000000e+00> : vector<16xf32>
    %167 = vector.multi_reduction <add>, %166, %cst_55 [1] : vector<16x16xf32> to vector<16xf32>
    %168 = vector.shape_cast %167 : vector<16xf32> to vector<16x1xf32>
    %169 = arith.truncf %166 : vector<16x16xf32> to vector<16x16xbf16>
    %170 = arith.truncf %158 : vector<16x16xf32> to vector<16x16xbf16>
    %cst_56 = arith.constant dense<0.000000e+00> : vector<16x16xf32>
    %171 = tpu.matmul %169, %170, %cst_56 {dimension_numbers = #tpu.dot_dimension_numbers<[1], [0], [0], [1], [0, 0, 1, 1], [], []>} : vector<16x16xbf16>, vector<16x16xbf16>, vector<16x16xf32> -> vector<16x16xf32>
    %172 = tpu.reciprocal %168 {approx = true} : vector<16x1xf32> -> vector<16x1xf32>
    %173 = vector.broadcast %172 : vector<16x1xf32> to vector<16x16xf32>
    %174 = arith.mulf %171, %173 : vector<16x16xf32>
    %175 = arith.truncf %174 : vector<16x16xf32> to vector<16x16xbf16>
    %c16 = arith.constant 16 : index
    %c0_57 = arith.constant 0 : index
    %176 = vector.load %arg10[%c16, %c0_57] : memref<64x64xbf16, #tpu.memory_space<vmem>>, vector<16x64xbf16>
    %cst_58 = arith.constant dense<0.000000e+00> : vector<16x64xf32>
    %177 = tpu.matmul %175, %176, %cst_58 {dimension_numbers = #tpu.dot_dimension_numbers<[1], [0], [0], [1], [0, 0, 1, 1], [], []>} : vector<16x16xbf16>, vector<16x64xbf16>, vector<16x64xf32> -> vector<16x64xf32>
    %178 = arith.addf %109, %177 : vector<16x64xf32>
    %179 = vector.extract_strided_slice %33 {offsets = [0, 32], sizes = [16, 16], strides = [1, 1]} : vector<16x64xf32> to vector<16x16xf32>
    %cst_59 = arith.constant dense<0.000000e+00> : vector<16xf32>
    %180 = vector.multi_reduction <add>, %179, %cst_59 [1] : vector<16x16xf32> to vector<16xf32>
    %181 = vector.shape_cast %180 : vector<16xf32> to vector<16x1xf32>
    %cst_60 = arith.constant 1.600000e+01 : f32
    %182 = vector.broadcast %cst_60 : f32 to vector<16x1xf32>
    %183 = arith.divf %181, %182 : vector<16x1xf32>
    %184 = vector.broadcast %183 : vector<16x1xf32> to vector<16x16xf32>
    %185 = arith.subf %179, %184 : vector<16x16xf32>
    %186 = arith.mulf %185, %185 : vector<16x16xf32>
    %cst_61 = arith.constant dense<0.000000e+00> : vector<16xf32>
    %187 = vector.multi_reduction <add>, %186, %cst_61 [1] : vector<16x16xf32> to vector<16xf32>
    %188 = vector.shape_cast %187 : vector<16xf32> to vector<16x1xf32>
    %cst_62 = arith.constant 1.600000e+01 : f32
    %189 = vector.broadcast %cst_62 : f32 to vector<16x1xf32>
    %190 = arith.divf %188, %189 : vector<16x1xf32>
    %191 = vector.broadcast %183 : vector<16x1xf32> to vector<16x16xf32>
    %192 = arith.subf %179, %191 : vector<16x16xf32>
    %cst_63 = arith.constant 9.99999974E-6 : f32
    %193 = vector.broadcast %cst_63 : f32 to vector<16x1xf32>
    %194 = arith.addf %190, %193 : vector<16x1xf32>
    %195 = math.rsqrt %194 : vector<16x1xf32>
    %196 = vector.broadcast %195 : vector<16x1xf32> to vector<16x16xf32>
    %197 = arith.mulf %192, %196 : vector<16x16xf32>
    %198 = vector.broadcast %36 : vector<1x16xf32> to vector<16x16xf32>
    %199 = arith.mulf %197, %198 : vector<16x16xf32>
    %200 = vector.broadcast %37 : vector<1x16xf32> to vector<16x16xf32>
    %201 = arith.addf %199, %200 : vector<16x16xf32>
    %cst_64 = arith.constant 2.500000e-01 : f32
    %202 = vector.broadcast %cst_64 : f32 to vector<16x16xf32>
    %203 = arith.mulf %201, %202 : vector<16x16xf32>
    %204 = vector.extract_strided_slice %34 {offsets = [0, 32], sizes = [16, 16], strides = [1, 1]} : vector<16x64xf32> to vector<16x16xf32>
    %cst_65 = arith.constant dense<0.000000e+00> : vector<16xf32>
    %205 = vector.multi_reduction <add>, %204, %cst_65 [1] : vector<16x16xf32> to vector<16xf32>
    %206 = vector.shape_cast %205 : vector<16xf32> to vector<16x1xf32>
    %cst_66 = arith.constant 1.600000e+01 : f32
    %207 = vector.broadcast %cst_66 : f32 to vector<16x1xf32>
    %208 = arith.divf %206, %207 : vector<16x1xf32>
    %209 = vector.broadcast %208 : vector<16x1xf32> to vector<16x16xf32>
    %210 = arith.subf %204, %209 : vector<16x16xf32>
    %211 = arith.mulf %210, %210 : vector<16x16xf32>
    %cst_67 = arith.constant dense<0.000000e+00> : vector<16xf32>
    %212 = vector.multi_reduction <add>, %211, %cst_67 [1] : vector<16x16xf32> to vector<16xf32>
    %213 = vector.shape_cast %212 : vector<16xf32> to vector<16x1xf32>
    %cst_68 = arith.constant 1.600000e+01 : f32
    %214 = vector.broadcast %cst_68 : f32 to vector<16x1xf32>
    %215 = arith.divf %213, %214 : vector<16x1xf32>
    %216 = vector.broadcast %208 : vector<16x1xf32> to vector<16x16xf32>
    %217 = arith.subf %204, %216 : vector<16x16xf32>
    %cst_69 = arith.constant 9.99999974E-6 : f32
    %218 = vector.broadcast %cst_69 : f32 to vector<16x1xf32>
    %219 = arith.addf %215, %218 : vector<16x1xf32>
    %220 = math.rsqrt %219 : vector<16x1xf32>
    %221 = vector.broadcast %220 : vector<16x1xf32> to vector<16x16xf32>
    %222 = arith.mulf %217, %221 : vector<16x16xf32>
    %223 = vector.broadcast %38 : vector<1x16xf32> to vector<16x16xf32>
    %224 = arith.mulf %222, %223 : vector<16x16xf32>
    %225 = vector.broadcast %39 : vector<1x16xf32> to vector<16x16xf32>
    %226 = arith.addf %224, %225 : vector<16x16xf32>
    %227 = vector.extract_strided_slice %35 {offsets = [0, 32], sizes = [16, 16], strides = [1, 1]} : vector<16x64xf32> to vector<16x16xf32>
    %228 = arith.truncf %203 : vector<16x16xf32> to vector<16x16xbf16>
    %229 = arith.truncf %226 : vector<16x16xf32> to vector<16x16xbf16>
    %cst_70 = arith.constant dense<0.000000e+00> : vector<16x16xf32>
    %230 = tpu.matmul %228, %229, %cst_70 {dimension_numbers = #tpu.dot_dimension_numbers<[1], [1], [0], [0], [0, 0, 1, 0], [], []>} : vector<16x16xbf16>, vector<16x16xbf16>, vector<16x16xf32> -> vector<16x16xf32>
    %cst_71 = arith.constant dense<0xFF800000> : vector<16xf32>
    %231 = vector.multi_reduction <maximumf>, %230, %cst_71 [1] : vector<16x16xf32> to vector<16xf32>
    %232 = vector.shape_cast %231 : vector<16xf32> to vector<16x1xf32>
    %233 = vector.broadcast %232 : vector<16x1xf32> to vector<16x16xf32>
    %234 = arith.subf %230, %233 : vector<16x16xf32>
    %235 = math.exp %234 : vector<16x16xf32>
    %cst_72 = arith.constant dense<0.000000e+00> : vector<16xf32>
    %236 = vector.multi_reduction <add>, %235, %cst_72 [1] : vector<16x16xf32> to vector<16xf32>
    %237 = vector.shape_cast %236 : vector<16xf32> to vector<16x1xf32>
    %238 = arith.truncf %235 : vector<16x16xf32> to vector<16x16xbf16>
    %239 = arith.truncf %227 : vector<16x16xf32> to vector<16x16xbf16>
    %cst_73 = arith.constant dense<0.000000e+00> : vector<16x16xf32>
    %240 = tpu.matmul %238, %239, %cst_73 {dimension_numbers = #tpu.dot_dimension_numbers<[1], [0], [0], [1], [0, 0, 1, 1], [], []>} : vector<16x16xbf16>, vector<16x16xbf16>, vector<16x16xf32> -> vector<16x16xf32>
    %241 = tpu.reciprocal %237 {approx = true} : vector<16x1xf32> -> vector<16x1xf32>
    %242 = vector.broadcast %241 : vector<16x1xf32> to vector<16x16xf32>
    %243 = arith.mulf %240, %242 : vector<16x16xf32>
    %244 = arith.truncf %243 : vector<16x16xf32> to vector<16x16xbf16>
    %c32 = arith.constant 32 : index
    %c0_74 = arith.constant 0 : index
    %245 = vector.load %arg10[%c32, %c0_74] : memref<64x64xbf16, #tpu.memory_space<vmem>>, vector<16x64xbf16>
    %cst_75 = arith.constant dense<0.000000e+00> : vector<16x64xf32>
    %246 = tpu.matmul %244, %245, %cst_75 {dimension_numbers = #tpu.dot_dimension_numbers<[1], [0], [0], [1], [0, 0, 1, 1], [], []>} : vector<16x16xbf16>, vector<16x64xbf16>, vector<16x64xf32> -> vector<16x64xf32>
    %247 = arith.addf %178, %246 : vector<16x64xf32>
    %248 = vector.extract_strided_slice %33 {offsets = [0, 48], sizes = [16, 16], strides = [1, 1]} : vector<16x64xf32> to vector<16x16xf32>
    %cst_76 = arith.constant dense<0.000000e+00> : vector<16xf32>
    %249 = vector.multi_reduction <add>, %248, %cst_76 [1] : vector<16x16xf32> to vector<16xf32>
    %250 = vector.shape_cast %249 : vector<16xf32> to vector<16x1xf32>
    %cst_77 = arith.constant 1.600000e+01 : f32
    %251 = vector.broadcast %cst_77 : f32 to vector<16x1xf32>
    %252 = arith.divf %250, %251 : vector<16x1xf32>
    %253 = vector.broadcast %252 : vector<16x1xf32> to vector<16x16xf32>
    %254 = arith.subf %248, %253 : vector<16x16xf32>
    %255 = arith.mulf %254, %254 : vector<16x16xf32>
    %cst_78 = arith.constant dense<0.000000e+00> : vector<16xf32>
    %256 = vector.multi_reduction <add>, %255, %cst_78 [1] : vector<16x16xf32> to vector<16xf32>
    %257 = vector.shape_cast %256 : vector<16xf32> to vector<16x1xf32>
    %cst_79 = arith.constant 1.600000e+01 : f32
    %258 = vector.broadcast %cst_79 : f32 to vector<16x1xf32>
    %259 = arith.divf %257, %258 : vector<16x1xf32>
    %260 = vector.broadcast %252 : vector<16x1xf32> to vector<16x16xf32>
    %261 = arith.subf %248, %260 : vector<16x16xf32>
    %cst_80 = arith.constant 9.99999974E-6 : f32
    %262 = vector.broadcast %cst_80 : f32 to vector<16x1xf32>
    %263 = arith.addf %259, %262 : vector<16x1xf32>
    %264 = math.rsqrt %263 : vector<16x1xf32>
    %265 = vector.broadcast %264 : vector<16x1xf32> to vector<16x16xf32>
    %266 = arith.mulf %261, %265 : vector<16x16xf32>
    %267 = vector.broadcast %36 : vector<1x16xf32> to vector<16x16xf32>
    %268 = arith.mulf %266, %267 : vector<16x16xf32>
    %269 = vector.broadcast %37 : vector<1x16xf32> to vector<16x16xf32>
    %270 = arith.addf %268, %269 : vector<16x16xf32>
    %cst_81 = arith.constant 2.500000e-01 : f32
    %271 = vector.broadcast %cst_81 : f32 to vector<16x16xf32>
    %272 = arith.mulf %270, %271 : vector<16x16xf32>
    %273 = vector.extract_strided_slice %34 {offsets = [0, 48], sizes = [16, 16], strides = [1, 1]} : vector<16x64xf32> to vector<16x16xf32>
    %cst_82 = arith.constant dense<0.000000e+00> : vector<16xf32>
    %274 = vector.multi_reduction <add>, %273, %cst_82 [1] : vector<16x16xf32> to vector<16xf32>
    %275 = vector.shape_cast %274 : vector<16xf32> to vector<16x1xf32>
    %cst_83 = arith.constant 1.600000e+01 : f32
    %276 = vector.broadcast %cst_83 : f32 to vector<16x1xf32>
    %277 = arith.divf %275, %276 : vector<16x1xf32>
    %278 = vector.broadcast %277 : vector<16x1xf32> to vector<16x16xf32>
    %279 = arith.subf %273, %278 : vector<16x16xf32>
    %280 = arith.mulf %279, %279 : vector<16x16xf32>
    %cst_84 = arith.constant dense<0.000000e+00> : vector<16xf32>
    %281 = vector.multi_reduction <add>, %280, %cst_84 [1] : vector<16x16xf32> to vector<16xf32>
    %282 = vector.shape_cast %281 : vector<16xf32> to vector<16x1xf32>
    %cst_85 = arith.constant 1.600000e+01 : f32
    %283 = vector.broadcast %cst_85 : f32 to vector<16x1xf32>
    %284 = arith.divf %282, %283 : vector<16x1xf32>
    %285 = vector.broadcast %277 : vector<16x1xf32> to vector<16x16xf32>
    %286 = arith.subf %273, %285 : vector<16x16xf32>
    %cst_86 = arith.constant 9.99999974E-6 : f32
    %287 = vector.broadcast %cst_86 : f32 to vector<16x1xf32>
    %288 = arith.addf %284, %287 : vector<16x1xf32>
    %289 = math.rsqrt %288 : vector<16x1xf32>
    %290 = vector.broadcast %289 : vector<16x1xf32> to vector<16x16xf32>
    %291 = arith.mulf %286, %290 : vector<16x16xf32>
    %292 = vector.broadcast %38 : vector<1x16xf32> to vector<16x16xf32>
    %293 = arith.mulf %291, %292 : vector<16x16xf32>
    %294 = vector.broadcast %39 : vector<1x16xf32> to vector<16x16xf32>
    %295 = arith.addf %293, %294 : vector<16x16xf32>
    %296 = vector.extract_strided_slice %35 {offsets = [0, 48], sizes = [16, 16], strides = [1, 1]} : vector<16x64xf32> to vector<16x16xf32>
    %297 = arith.truncf %272 : vector<16x16xf32> to vector<16x16xbf16>
    %298 = arith.truncf %295 : vector<16x16xf32> to vector<16x16xbf16>
    %cst_87 = arith.constant dense<0.000000e+00> : vector<16x16xf32>
    %299 = tpu.matmul %297, %298, %cst_87 {dimension_numbers = #tpu.dot_dimension_numbers<[1], [1], [0], [0], [0, 0, 1, 0], [], []>} : vector<16x16xbf16>, vector<16x16xbf16>, vector<16x16xf32> -> vector<16x16xf32>
    %cst_88 = arith.constant dense<0xFF800000> : vector<16xf32>
    %300 = vector.multi_reduction <maximumf>, %299, %cst_88 [1] : vector<16x16xf32> to vector<16xf32>
    %301 = vector.shape_cast %300 : vector<16xf32> to vector<16x1xf32>
    %302 = vector.broadcast %301 : vector<16x1xf32> to vector<16x16xf32>
    %303 = arith.subf %299, %302 : vector<16x16xf32>
    %304 = math.exp %303 : vector<16x16xf32>
    %cst_89 = arith.constant dense<0.000000e+00> : vector<16xf32>
    %305 = vector.multi_reduction <add>, %304, %cst_89 [1] : vector<16x16xf32> to vector<16xf32>
    %306 = vector.shape_cast %305 : vector<16xf32> to vector<16x1xf32>
    %307 = arith.truncf %304 : vector<16x16xf32> to vector<16x16xbf16>
    %308 = arith.truncf %296 : vector<16x16xf32> to vector<16x16xbf16>
    %cst_90 = arith.constant dense<0.000000e+00> : vector<16x16xf32>
    %309 = tpu.matmul %307, %308, %cst_90 {dimension_numbers = #tpu.dot_dimension_numbers<[1], [0], [0], [1], [0, 0, 1, 1], [], []>} : vector<16x16xbf16>, vector<16x16xbf16>, vector<16x16xf32> -> vector<16x16xf32>
    %310 = tpu.reciprocal %306 {approx = true} : vector<16x1xf32> -> vector<16x1xf32>
    %311 = vector.broadcast %310 : vector<16x1xf32> to vector<16x16xf32>
    %312 = arith.mulf %309, %311 : vector<16x16xf32>
    %313 = arith.truncf %312 : vector<16x16xf32> to vector<16x16xbf16>
    %c48 = arith.constant 48 : index
    %c0_91 = arith.constant 0 : index
    %314 = vector.load %arg10[%c48, %c0_91] : memref<64x64xbf16, #tpu.memory_space<vmem>>, vector<16x64xbf16>
    %cst_92 = arith.constant dense<0.000000e+00> : vector<16x64xf32>
    %315 = tpu.matmul %313, %314, %cst_92 {dimension_numbers = #tpu.dot_dimension_numbers<[1], [0], [0], [1], [0, 0, 1, 1], [], []>} : vector<16x16xbf16>, vector<16x64xbf16>, vector<16x64xf32> -> vector<16x64xf32>
    %316 = arith.addf %247, %315 : vector<16x64xf32>
    %c0_93 = arith.constant 0 : index
    %c0_94 = arith.constant 0 : index
    %317 = vector.load %arg11[%c0_93, %c0_94] : memref<1x64xf32, #tpu.memory_space<vmem>>, vector<1x64xf32>
    %318 = vector.broadcast %317 : vector<1x64xf32> to vector<16x64xf32>
    %319 = arith.addf %316, %318 : vector<16x64xf32>
    %cst_95 = arith.constant 5.000000e-01 : f32
    %320 = vector.broadcast %cst_95 : f32 to vector<16x256xf32>
    %321 = arith.mulf %320, %32 : vector<16x256xf32>
    %cst_96 = arith.constant 0.707106769 : f32
    %322 = vector.broadcast %cst_96 : f32 to vector<16x256xf32>
    %323 = arith.mulf %32, %322 : vector<16x256xf32>
    %324 = math.erf %323 : vector<16x256xf32>
    %cst_97 = arith.constant 1.000000e+00 : f32
    %325 = vector.broadcast %cst_97 : f32 to vector<16x256xf32>
    %326 = arith.addf %325, %324 : vector<16x256xf32>
    %327 = arith.mulf %321, %326 : vector<16x256xf32>
    %328 = arith.truncf %327 : vector<16x256xf32> to vector<16x256xbf16>
    %c0_98 = arith.constant 0 : index
    %c0_99 = arith.constant 0 : index
    %329 = vector.load %arg12[%c0_98, %c0_99] : memref<256x64xbf16, #tpu.memory_space<vmem>>, vector<256x64xbf16>
    %cst_100 = arith.constant dense<0.000000e+00> : vector<16x64xf32>
    %330 = tpu.matmul %328, %329, %cst_100 {dimension_numbers = #tpu.dot_dimension_numbers<[1], [0], [0], [1], [0, 0, 1, 1], [], []>} : vector<16x256xbf16>, vector<256x64xbf16>, vector<16x64xf32> -> vector<16x64xf32>
    %c0_101 = arith.constant 0 : index
    %c0_102 = arith.constant 0 : index
    %331 = vector.load %arg13[%c0_101, %c0_102] : memref<1x64xf32, #tpu.memory_space<vmem>>, vector<1x64xf32>
    %332 = vector.broadcast %331 : vector<1x64xf32> to vector<16x64xf32>
    %333 = arith.addf %330, %332 : vector<16x64xf32>
    %334 = arith.addf %1, %319 : vector<16x64xf32>
    %335 = arith.addf %334, %333 : vector<16x64xf32>
    %c0_103 = arith.constant 0 : index
    %c0_104 = arith.constant 0 : index
    %c0_105 = arith.constant 0 : index
    %336 = vector.load %arg14[%c0_103, %c0_104, %c0_105] : memref<1x16x64xf32, #tpu.memory_space<vmem>>, vector<1x16x64xf32>
    %337 = vector.shape_cast %336 : vector<1x16x64xf32> to vector<16x64xf32>
    %338 = vector.shape_cast %335 : vector<16x64xf32> to vector<1x16x64xf32>
    tpu.vector_store %arg14[%c0_103, %c0_104, %c0_105], %338 {strides = array<i32>} : memref<1x16x64xf32, #tpu.memory_space<vmem>>, vector<1x16x64xf32>,
    return
  }
  func.func @transform_0(%arg0: i32) -> (i32, i32, i32) {
    %c0_i32 = arith.constant 0 : i32
    %c0_i32_0 = arith.constant 0 : i32
    %c0_i32_1 = arith.constant 0 : i32
    return %arg0, %c0_i32, %c0_i32_0 : i32, i32, i32
  }
  func.func @transform_1(%arg0: i32) -> (i32, i32) {
    %c0_i32 = arith.constant 0 : i32
    %c0_i32_0 = arith.constant 0 : i32
    %c0_i32_1 = arith.constant 0 : i32
    return %c0_i32, %c0_i32_0 : i32, i32
  }
  func.func @transform_2(%arg0: i32) -> (i32, i32) {
    %c0_i32 = arith.constant 0 : i32
    %c0_i32_0 = arith.constant 0 : i32
    %c0_i32_1 = arith.constant 0 : i32
    return %c0_i32, %c0_i32_0 : i32, i32
  }
  func.func @transform_3(%arg0: i32) -> (i32, i32) {
    %c0_i32 = arith.constant 0 : i32
    %c0_i32_0 = arith.constant 0 : i32
    %c0_i32_1 = arith.constant 0 : i32
    return %c0_i32, %c0_i32_0 : i32, i32
  }
  func.func @transform_4(%arg0: i32) -> (i32, i32) {
    %c0_i32 = arith.constant 0 : i32
    %c0_i32_0 = arith.constant 0 : i32
    %c0_i32_1 = arith.constant 0 : i32
    return %c0_i32, %c0_i32_0 : i32, i32
  }
  func.func @transform_5(%arg0: i32) -> (i32, i32) {
    %c0_i32 = arith.constant 0 : i32
    %c0_i32_0 = arith.constant 0 : i32
    %c0_i32_1 = arith.constant 0 : i32
    return %c0_i32, %c0_i32_0 : i32, i32
  }
  func.func @transform_6(%arg0: i32) -> (i32, i32) {
    %c0_i32 = arith.constant 0 : i32
    %c0_i32_0 = arith.constant 0 : i32
    %c0_i32_1 = arith.constant 0 : i32
    return %c0_i32, %c0_i32_0 : i32, i32
  }
  func.func @transform_7(%arg0: i32) -> (i32, i32) {
    %c0_i32 = arith.constant 0 : i32
    %c0_i32_0 = arith.constant 0 : i32
    %c0_i32_1 = arith.constant 0 : i32
    return %c0_i32, %c0_i32_0 : i32, i32
  }
  func.func @transform_8(%arg0: i32) -> (i32, i32) {
    %c0_i32 = arith.constant 0 : i32
    %c0_i32_0 = arith.constant 0 : i32
    %c0_i32_1 = arith.constant 0 : i32
    return %c0_i32, %c0_i32_0 : i32, i32
  }
  func.func @transform_9(%arg0: i32) -> (i32, i32) {
    %c0_i32 = arith.constant 0 : i32
    %c0_i32_0 = arith.constant 0 : i32
    %c0_i32_1 = arith.constant 0 : i32
    return %c0_i32, %c0_i32_0 : i32, i32
  }
  func.func @transform_10(%arg0: i32) -> (i32, i32) {
    %c0_i32 = arith.constant 0 : i32
    %c0_i32_0 = arith.constant 0 : i32
    %c0_i32_1 = arith.constant 0 : i32
    return %c0_i32, %c0_i32_0 : i32, i32
  }
  func.func @transform_11(%arg0: i32) -> (i32, i32) {
    %c0_i32 = arith.constant 0 : i32
    %c0_i32_0 = arith.constant 0 : i32
    %c0_i32_1 = arith.constant 0 : i32
    return %c0_i32, %c0_i32_0 : i32, i32
  }
  func.func @transform_12(%arg0: i32) -> (i32, i32) {
    %c0_i32 = arith.constant 0 : i32
    %c0_i32_0 = arith.constant 0 : i32
    %c0_i32_1 = arith.constant 0 : i32
    return %c0_i32, %c0_i32_0 : i32, i32
  }
  func.func @transform_13(%arg0: i32) -> (i32, i32, i32) {
    %c0_i32 = arith.constant 0 : i32
    %c0_i32_0 = arith.constant 0 : i32
    %c0_i32_1 = arith.constant 0 : i32
    return %arg0, %c0_i32, %c0_i32_0 : i32, i32, i32
  }
}

module attributes {stable_mosaic.version = 11 : i64} {
  func.func @vit_block_kernel(%arg0: i32, %arg1: memref<1x16x64xf32, #tpu.memory_space<vmem>>, %arg2: memref<1x64xf32, #tpu.memory_space<vmem>>, %arg3: memref<1x64xf32, #tpu.memory_space<vmem>>, %arg4: memref<64x448xbf16, #tpu.memory_space<vmem>>, %arg5: memref<1x448xf32, #tpu.memory_space<vmem>>, %arg6: memref<1x16xf32, #tpu.memory_space<vmem>>, %arg7: memref<1x16xf32, #tpu.memory_space<vmem>>, %arg8: memref<1x16xf32, #tpu.memory_space<vmem>>, %arg9: memref<1x16xf32, #tpu.memory_space<vmem>>, %arg10: memref<64x64xbf16, #tpu.memory_space<vmem>>, %arg11: memref<1x64xf32, #tpu.memory_space<vmem>>, %arg12: memref<256x64xbf16, #tpu.memory_space<vmem>>, %arg13: memref<1x64xf32, #tpu.memory_space<vmem>>, %arg14: memref<1x16x64xf32, #tpu.memory_space<vmem>>) attributes {dimension_semantics = [#tpu.dimension_semantics<parallel>], iteration_bounds = array<i64: 2>, scalar_prefetch = 0 : i64, scratch_operands = 0 : i64, tpu.core_type = #tpu.core_type<tc>, window_params = [{transform_indices = @transform_0, window_bounds = array<i64: 1, 16, 64>}, {pipeline_mode = #tpu.pipeline_mode<synchronous>, transform_indices = @transform_1, window_bounds = array<i64: 1, 64>}, {pipeline_mode = #tpu.pipeline_mode<synchronous>, transform_indices = @transform_2, window_bounds = array<i64: 1, 64>}, {pipeline_mode = #tpu.pipeline_mode<synchronous>, transform_indices = @transform_3, window_bounds = array<i64: 64, 448>}, {pipeline_mode = #tpu.pipeline_mode<synchronous>, transform_indices = @transform_4, window_bounds = array<i64: 1, 448>}, {pipeline_mode = #tpu.pipeline_mode<synchronous>, transform_indices = @transform_5, window_bounds = array<i64: 1, 16>}, {pipeline_mode = #tpu.pipeline_mode<synchronous>, transform_indices = @transform_6, window_bounds = array<i64: 1, 16>}, {pipeline_mode = #tpu.pipeline_mode<synchronous>, transform_indices = @transform_7, window_bounds = array<i64: 1, 16>}, {pipeline_mode = #tpu.pipeline_mode<synchronous>, transform_indices = @transform_8, window_bounds = array<i64: 1, 16>}, {pipeline_mode = #tpu.pipeline_mode<synchronous>, transform_indices = @transform_9, window_bounds = array<i64: 64, 64>}, {pipeline_mode = #tpu.pipeline_mode<synchronous>, transform_indices = @transform_10, window_bounds = array<i64: 1, 64>}, {pipeline_mode = #tpu.pipeline_mode<synchronous>, transform_indices = @transform_11, window_bounds = array<i64: 256, 64>}, {pipeline_mode = #tpu.pipeline_mode<synchronous>, transform_indices = @transform_12, window_bounds = array<i64: 1, 64>}, {transform_indices = @transform_13, window_bounds = array<i64: 1, 16, 64>}]} {
    %c0 = arith.constant 0 : index
    %c0_0 = arith.constant 0 : index
    %c0_1 = arith.constant 0 : index
    %0 = vector.load %arg1[%c0, %c0_0, %c0_1] : memref<1x16x64xf32, #tpu.memory_space<vmem>>, vector<1x16x64xf32>
    %1 = vector.shape_cast %0 : vector<1x16x64xf32> to vector<16x64xf32>
    %c0_2 = arith.constant 0 : index
    %c0_3 = arith.constant 0 : index
    %2 = vector.load %arg2[%c0_2, %c0_3] : memref<1x64xf32, #tpu.memory_space<vmem>>, vector<1x64xf32>
    %c0_4 = arith.constant 0 : index
    %c0_5 = arith.constant 0 : index
    %3 = vector.load %arg3[%c0_4, %c0_5] : memref<1x64xf32, #tpu.memory_space<vmem>>, vector<1x64xf32>
    %cst = arith.constant dense<0.000000e+00> : vector<16xf32>
    %4 = vector.multi_reduction <add>, %1, %cst [1] : vector<16x64xf32> to vector<16xf32>
    %5 = vector.shape_cast %4 : vector<16xf32> to vector<16x1xf32>
    %cst_6 = arith.constant 6.400000e+01 : f32
    %6 = vector.broadcast %cst_6 : f32 to vector<16x1xf32>
    %7 = arith.divf %5, %6 : vector<16x1xf32>
    %8 = vector.broadcast %7 : vector<16x1xf32> to vector<16x64xf32>
    %9 = arith.subf %1, %8 : vector<16x64xf32>
    %10 = arith.mulf %9, %9 : vector<16x64xf32>
    %cst_7 = arith.constant dense<0.000000e+00> : vector<16xf32>
    %11 = vector.multi_reduction <add>, %10, %cst_7 [1] : vector<16x64xf32> to vector<16xf32>
    %12 = vector.shape_cast %11 : vector<16xf32> to vector<16x1xf32>
    %cst_8 = arith.constant 6.400000e+01 : f32
    %13 = vector.broadcast %cst_8 : f32 to vector<16x1xf32>
    %14 = arith.divf %12, %13 : vector<16x1xf32>
    %15 = vector.broadcast %7 : vector<16x1xf32> to vector<16x64xf32>
    %16 = arith.subf %1, %15 : vector<16x64xf32>
    %cst_9 = arith.constant 9.99999974E-6 : f32
    %17 = vector.broadcast %cst_9 : f32 to vector<16x1xf32>
    %18 = arith.addf %14, %17 : vector<16x1xf32>
    %19 = math.rsqrt %18 : vector<16x1xf32>
    %20 = vector.broadcast %19 : vector<16x1xf32> to vector<16x64xf32>
    %21 = arith.mulf %16, %20 : vector<16x64xf32>
    %22 = vector.broadcast %2 : vector<1x64xf32> to vector<16x64xf32>
    %23 = arith.mulf %21, %22 : vector<16x64xf32>
    %24 = vector.broadcast %3 : vector<1x64xf32> to vector<16x64xf32>
    %25 = arith.addf %23, %24 : vector<16x64xf32>
    %26 = arith.truncf %25 : vector<16x64xf32> to vector<16x64xbf16>
    %c0_10 = arith.constant 0 : index
    %c0_11 = arith.constant 0 : index
    %27 = vector.load %arg4[%c0_10, %c0_11] : memref<64x448xbf16, #tpu.memory_space<vmem>>, vector<64x448xbf16>
    %cst_12 = arith.constant dense<0.000000e+00> : vector<16x448xf32>
    %28 = tpu.matmul %26, %27, %cst_12 {dimension_numbers = #tpu.dot_dimension_numbers<[1], [0], [0], [1], [0, 0, 1, 1], [], []>} : vector<16x64xbf16>, vector<64x448xbf16>, vector<16x448xf32> -> vector<16x448xf32>
    %c0_13 = arith.constant 0 : index
    %c0_14 = arith.constant 0 : index
    %29 = vector.load %arg5[%c0_13, %c0_14] : memref<1x448xf32, #tpu.memory_space<vmem>>, vector<1x448xf32>
    %30 = vector.broadcast %29 : vector<1x448xf32> to vector<16x448xf32>
    %31 = arith.addf %28, %30 : vector<16x448xf32>
    %32 = vector.extract_strided_slice %31 {offsets = [0, 0], sizes = [16, 256], strides = [1, 1]} : vector<16x448xf32> to vector<16x256xf32>
    %33 = vector.extract_strided_slice %31 {offsets = [0, 256], sizes = [16, 64], strides = [1, 1]} : vector<16x448xf32> to vector<16x64xf32>
    %34 = vector.extract_strided_slice %31 {offsets = [0, 320], sizes = [16, 64], strides = [1, 1]} : vector<16x448xf32> to vector<16x64xf32>
    %35 = vector.extract_strided_slice %31 {offsets = [0, 384], sizes = [16, 64], strides = [1, 1]} : vector<16x448xf32> to vector<16x64xf32>
    %c0_15 = arith.constant 0 : index
    %c0_16 = arith.constant 0 : index
    %36 = vector.load %arg6[%c0_15, %c0_16] : memref<1x16xf32, #tpu.memory_space<vmem>>, vector<1x16xf32>
    %c0_17 = arith.constant 0 : index
    %c0_18 = arith.constant 0 : index
    %37 = vector.load %arg7[%c0_17, %c0_18] : memref<1x16xf32, #tpu.memory_space<vmem>>, vector<1x16xf32>
    %c0_19 = arith.constant 0 : index
    %c0_20 = arith.constant 0 : index
    %38 = vector.load %arg8[%c0_19, %c0_20] : memref<1x16xf32, #tpu.memory_space<vmem>>, vector<1x16xf32>
    %c0_21 = arith.constant 0 : index
    %c0_22 = arith.constant 0 : index
    %39 = vector.load %arg9[%c0_21, %c0_22] : memref<1x16xf32, #tpu.memory_space<vmem>>, vector<1x16xf32>
    %cst_23 = arith.constant 0.000000e+00 : f32
    %40 = vector.broadcast %cst_23 : f32 to vector<16x64xf32>
    %41 = vector.extract_strided_slice %33 {offsets = [0, 0], sizes = [16, 16], strides = [1, 1]} : vector<16x64xf32> to vector<16x16xf32>
    %cst_24 = arith.constant dense<0.000000e+00> : vector<16xf32>
    %42 = vector.multi_reduction <add>, %41, %cst_24 [1] : vector<16x16xf32> to vector<16xf32>
    %43 = vector.shape_cast %42 : vector<16xf32> to vector<16x1xf32>
    %cst_25 = arith.constant 1.600000e+01 : f32
    %44 = vector.broadcast %cst_25 : f32 to vector<16x1xf32>
    %45 = arith.divf %43, %44 : vector<16x1xf32>
    %46 = vector.broadcast %45 : vector<16x1xf32> to vector<16x16xf32>
    %47 = arith.subf %41, %46 : vector<16x16xf32>
    %48 = arith.mulf %47, %47 : vector<16x16xf32>
    %cst_26 = arith.constant dense<0.000000e+00> : vector<16xf32>
    %49 = vector.multi_reduction <add>, %48, %cst_26 [1] : vector<16x16xf32> to vector<16xf32>
    %50 = vector.shape_cast %49 : vector<16xf32> to vector<16x1xf32>
    %cst_27 = arith.constant 1.600000e+01 : f32
    %51 = vector.broadcast %cst_27 : f32 to vector<16x1xf32>
    %52 = arith.divf %50, %51 : vector<16x1xf32>
    %53 = vector.broadcast %45 : vector<16x1xf32> to vector<16x16xf32>
    %54 = arith.subf %41, %53 : vector<16x16xf32>
    %cst_28 = arith.constant 9.99999974E-6 : f32
    %55 = vector.broadcast %cst_28 : f32 to vector<16x1xf32>
    %56 = arith.addf %52, %55 : vector<16x1xf32>
    %57 = math.rsqrt %56 : vector<16x1xf32>
    %58 = vector.broadcast %57 : vector<16x1xf32> to vector<16x16xf32>
    %59 = arith.mulf %54, %58 : vector<16x16xf32>
    %60 = vector.broadcast %36 : vector<1x16xf32> to vector<16x16xf32>
    %61 = arith.mulf %59, %60 : vector<16x16xf32>
    %62 = vector.broadcast %37 : vector<1x16xf32> to vector<16x16xf32>
    %63 = arith.addf %61, %62 : vector<16x16xf32>
    %cst_29 = arith.constant 2.500000e-01 : f32
    %64 = vector.broadcast %cst_29 : f32 to vector<16x16xf32>
    %65 = arith.mulf %63, %64 : vector<16x16xf32>
    %66 = vector.extract_strided_slice %34 {offsets = [0, 0], sizes = [16, 16], strides = [1, 1]} : vector<16x64xf32> to vector<16x16xf32>
    %cst_30 = arith.constant dense<0.000000e+00> : vector<16xf32>
    %67 = vector.multi_reduction <add>, %66, %cst_30 [1] : vector<16x16xf32> to vector<16xf32>
    %68 = vector.shape_cast %67 : vector<16xf32> to vector<16x1xf32>
    %cst_31 = arith.constant 1.600000e+01 : f32
    %69 = vector.broadcast %cst_31 : f32 to vector<16x1xf32>
    %70 = arith.divf %68, %69 : vector<16x1xf32>
    %71 = vector.broadcast %70 : vector<16x1xf32> to vector<16x16xf32>
    %72 = arith.subf %66, %71 : vector<16x16xf32>
    %73 = arith.mulf %72, %72 : vector<16x16xf32>
    %cst_32 = arith.constant dense<0.000000e+00> : vector<16xf32>
    %74 = vector.multi_reduction <add>, %73, %cst_32 [1] : vector<16x16xf32> to vector<16xf32>
    %75 = vector.shape_cast %74 : vector<16xf32> to vector<16x1xf32>
    %cst_33 = arith.constant 1.600000e+01 : f32
    %76 = vector.broadcast %cst_33 : f32 to vector<16x1xf32>
    %77 = arith.divf %75, %76 : vector<16x1xf32>
    %78 = vector.broadcast %70 : vector<16x1xf32> to vector<16x16xf32>
    %79 = arith.subf %66, %78 : vector<16x16xf32>
    %cst_34 = arith.constant 9.99999974E-6 : f32
    %80 = vector.broadcast %cst_34 : f32 to vector<16x1xf32>
    %81 = arith.addf %77, %80 : vector<16x1xf32>
    %82 = math.rsqrt %81 : vector<16x1xf32>
    %83 = vector.broadcast %82 : vector<16x1xf32> to vector<16x16xf32>
    %84 = arith.mulf %79, %83 : vector<16x16xf32>
    %85 = vector.broadcast %38 : vector<1x16xf32> to vector<16x16xf32>
    %86 = arith.mulf %84, %85 : vector<16x16xf32>
    %87 = vector.broadcast %39 : vector<1x16xf32> to vector<16x16xf32>
    %88 = arith.addf %86, %87 : vector<16x16xf32>
    %89 = vector.extract_strided_slice %35 {offsets = [0, 0], sizes = [16, 16], strides = [1, 1]} : vector<16x64xf32> to vector<16x16xf32>
    %90 = arith.truncf %65 : vector<16x16xf32> to vector<16x16xbf16>
    %91 = arith.truncf %88 : vector<16x16xf32> to vector<16x16xbf16>
    %cst_35 = arith.constant dense<0.000000e+00> : vector<16x16xf32>
    %92 = tpu.matmul %90, %91, %cst_35 {dimension_numbers = #tpu.dot_dimension_numbers<[1], [1], [0], [0], [0, 0, 1, 0], [], []>} : vector<16x16xbf16>, vector<16x16xbf16>, vector<16x16xf32> -> vector<16x16xf32>
    %cst_36 = arith.constant dense<0xFF800000> : vector<16xf32>
    %93 = vector.multi_reduction <maximumf>, %92, %cst_36 [1] : vector<16x16xf32> to vector<16xf32>
    %94 = vector.shape_cast %93 : vector<16xf32> to vector<16x1xf32>
    %95 = vector.broadcast %94 : vector<16x1xf32> to vector<16x16xf32>
    %96 = arith.subf %92, %95 : vector<16x16xf32>
    %97 = math.exp %96 : vector<16x16xf32>
    %cst_37 = arith.constant dense<0.000000e+00> : vector<16xf32>
    %98 = vector.multi_reduction <add>, %97, %cst_37 [1] : vector<16x16xf32> to vector<16xf32>
    %99 = vector.shape_cast %98 : vector<16xf32> to vector<16x1xf32>
    %100 = arith.truncf %97 : vector<16x16xf32> to vector<16x16xbf16>
    %101 = arith.truncf %89 : vector<16x16xf32> to vector<16x16xbf16>
    %cst_38 = arith.constant dense<0.000000e+00> : vector<16x16xf32>
    %102 = tpu.matmul %100, %101, %cst_38 {dimension_numbers = #tpu.dot_dimension_numbers<[1], [0], [0], [1], [0, 0, 1, 1], [], []>} : vector<16x16xbf16>, vector<16x16xbf16>, vector<16x16xf32> -> vector<16x16xf32>
    %103 = tpu.reciprocal %99 {approx = true} : vector<16x1xf32> -> vector<16x1xf32>
    %104 = vector.broadcast %103 : vector<16x1xf32> to vector<16x16xf32>
    %105 = arith.mulf %102, %104 : vector<16x16xf32>
    %106 = arith.truncf %105 : vector<16x16xf32> to vector<16x16xbf16>
    %c0_39 = arith.constant 0 : index
    %c0_40 = arith.constant 0 : index
    %107 = vector.load %arg10[%c0_39, %c0_40] : memref<64x64xbf16, #tpu.memory_space<vmem>>, vector<16x64xbf16>
    %cst_41 = arith.constant dense<0.000000e+00> : vector<16x64xf32>
    %108 = tpu.matmul %106, %107, %cst_41 {dimension_numbers = #tpu.dot_dimension_numbers<[1], [0], [0], [1], [0, 0, 1, 1], [], []>} : vector<16x16xbf16>, vector<16x64xbf16>, vector<16x64xf32> -> vector<16x64xf32>
    %109 = arith.addf %40, %108 : vector<16x64xf32>
    %110 = vector.extract_strided_slice %33 {offsets = [0, 16], sizes = [16, 16], strides = [1, 1]} : vector<16x64xf32> to vector<16x16xf32>
    %cst_42 = arith.constant dense<0.000000e+00> : vector<16xf32>
    %111 = vector.multi_reduction <add>, %110, %cst_42 [1] : vector<16x16xf32> to vector<16xf32>
    %112 = vector.shape_cast %111 : vector<16xf32> to vector<16x1xf32>
    %cst_43 = arith.constant 1.600000e+01 : f32
    %113 = vector.broadcast %cst_43 : f32 to vector<16x1xf32>
    %114 = arith.divf %112, %113 : vector<16x1xf32>
    %115 = vector.broadcast %114 : vector<16x1xf32> to vector<16x16xf32>
    %116 = arith.subf %110, %115 : vector<16x16xf32>
    %117 = arith.mulf %116, %116 : vector<16x16xf32>
    %cst_44 = arith.constant dense<0.000000e+00> : vector<16xf32>
    %118 = vector.multi_reduction <add>, %117, %cst_44 [1] : vector<16x16xf32> to vector<16xf32>
    %119 = vector.shape_cast %118 : vector<16xf32> to vector<16x1xf32>
    %cst_45 = arith.constant 1.600000e+01 : f32
    %120 = vector.broadcast %cst_45 : f32 to vector<16x1xf32>
    %121 = arith.divf %119, %120 : vector<16x1xf32>
    %122 = vector.broadcast %114 : vector<16x1xf32> to vector<16x16xf32>
    %123 = arith.subf %110, %122 : vector<16x16xf32>
    %cst_46 = arith.constant 9.99999974E-6 : f32
    %124 = vector.broadcast %cst_46 : f32 to vector<16x1xf32>
    %125 = arith.addf %121, %124 : vector<16x1xf32>
    %126 = math.rsqrt %125 : vector<16x1xf32>
    %127 = vector.broadcast %126 : vector<16x1xf32> to vector<16x16xf32>
    %128 = arith.mulf %123, %127 : vector<16x16xf32>
    %129 = vector.broadcast %36 : vector<1x16xf32> to vector<16x16xf32>
    %130 = arith.mulf %128, %129 : vector<16x16xf32>
    %131 = vector.broadcast %37 : vector<1x16xf32> to vector<16x16xf32>
    %132 = arith.addf %130, %131 : vector<16x16xf32>
    %cst_47 = arith.constant 2.500000e-01 : f32
    %133 = vector.broadcast %cst_47 : f32 to vector<16x16xf32>
    %134 = arith.mulf %132, %133 : vector<16x16xf32>
    %135 = vector.extract_strided_slice %34 {offsets = [0, 16], sizes = [16, 16], strides = [1, 1]} : vector<16x64xf32> to vector<16x16xf32>
    %cst_48 = arith.constant dense<0.000000e+00> : vector<16xf32>
    %136 = vector.multi_reduction <add>, %135, %cst_48 [1] : vector<16x16xf32> to vector<16xf32>
    %137 = vector.shape_cast %136 : vector<16xf32> to vector<16x1xf32>
    %cst_49 = arith.constant 1.600000e+01 : f32
    %138 = vector.broadcast %cst_49 : f32 to vector<16x1xf32>
    %139 = arith.divf %137, %138 : vector<16x1xf32>
    %140 = vector.broadcast %139 : vector<16x1xf32> to vector<16x16xf32>
    %141 = arith.subf %135, %140 : vector<16x16xf32>
    %142 = arith.mulf %141, %141 : vector<16x16xf32>
    %cst_50 = arith.constant dense<0.000000e+00> : vector<16xf32>
    %143 = vector.multi_reduction <add>, %142, %cst_50 [1] : vector<16x16xf32> to vector<16xf32>
    %144 = vector.shape_cast %143 : vector<16xf32> to vector<16x1xf32>
    %cst_51 = arith.constant 1.600000e+01 : f32
    %145 = vector.broadcast %cst_51 : f32 to vector<16x1xf32>
    %146 = arith.divf %144, %145 : vector<16x1xf32>
    %147 = vector.broadcast %139 : vector<16x1xf32> to vector<16x16xf32>
    %148 = arith.subf %135, %147 : vector<16x16xf32>
    %cst_52 = arith.constant 9.99999974E-6 : f32
    %149 = vector.broadcast %cst_52 : f32 to vector<16x1xf32>
    %150 = arith.addf %146, %149 : vector<16x1xf32>
    %151 = math.rsqrt %150 : vector<16x1xf32>
    %152 = vector.broadcast %151 : vector<16x1xf32> to vector<16x16xf32>
    %153 = arith.mulf %148, %152 : vector<16x16xf32>
    %154 = vector.broadcast %38 : vector<1x16xf32> to vector<16x16xf32>
    %155 = arith.mulf %153, %154 : vector<16x16xf32>
    %156 = vector.broadcast %39 : vector<1x16xf32> to vector<16x16xf32>
    %157 = arith.addf %155, %156 : vector<16x16xf32>
    %158 = vector.extract_strided_slice %35 {offsets = [0, 16], sizes = [16, 16], strides = [1, 1]} : vector<16x64xf32> to vector<16x16xf32>
    %159 = arith.truncf %134 : vector<16x16xf32> to vector<16x16xbf16>
    %160 = arith.truncf %157 : vector<16x16xf32> to vector<16x16xbf16>
    %cst_53 = arith.constant dense<0.000000e+00> : vector<16x16xf32>
    %161 = tpu.matmul %159, %160, %cst_53 {dimension_numbers = #tpu.dot_dimension_numbers<[1], [1], [0], [0], [0, 0, 1, 0], [], []>} : vector<16x16xbf16>, vector<16x16xbf16>, vector<16x16xf32> -> vector<16x16xf32>
    %cst_54 = arith.constant dense<0xFF800000> : vector<16xf32>
    %162 = vector.multi_reduction <maximumf>, %161, %cst_54 [1] : vector<16x16xf32> to vector<16xf32>
    %163 = vector.shape_cast %162 : vector<16xf32> to vector<16x1xf32>
    %164 = vector.broadcast %163 : vector<16x1xf32> to vector<16x16xf32>
    %165 = arith.subf %161, %164 : vector<16x16xf32>
    %166 = math.exp %165 : vector<16x16xf32>
    %cst_55 = arith.constant dense<0.000000e+00> : vector<16xf32>
    %167 = vector.multi_reduction <add>, %166, %cst_55 [1] : vector<16x16xf32> to vector<16xf32>
    %168 = vector.shape_cast %167 : vector<16xf32> to vector<16x1xf32>
    %169 = arith.truncf %166 : vector<16x16xf32> to vector<16x16xbf16>
    %170 = arith.truncf %158 : vector<16x16xf32> to vector<16x16xbf16>
    %cst_56 = arith.constant dense<0.000000e+00> : vector<16x16xf32>
    %171 = tpu.matmul %169, %170, %cst_56 {dimension_numbers = #tpu.dot_dimension_numbers<[1], [0], [0], [1], [0, 0, 1, 1], [], []>} : vector<16x16xbf16>, vector<16x16xbf16>, vector<16x16xf32> -> vector<16x16xf32>
    %172 = tpu.reciprocal %168 {approx = true} : vector<16x1xf32> -> vector<16x1xf32>
    %173 = vector.broadcast %172 : vector<16x1xf32> to vector<16x16xf32>
    %174 = arith.mulf %171, %173 : vector<16x16xf32>
    %175 = arith.truncf %174 : vector<16x16xf32> to vector<16x16xbf16>
    %c16 = arith.constant 16 : index
    %c0_57 = arith.constant 0 : index
    %176 = vector.load %arg10[%c16, %c0_57] : memref<64x64xbf16, #tpu.memory_space<vmem>>, vector<16x64xbf16>
    %cst_58 = arith.constant dense<0.000000e+00> : vector<16x64xf32>
    %177 = tpu.matmul %175, %176, %cst_58 {dimension_numbers = #tpu.dot_dimension_numbers<[1], [0], [0], [1], [0, 0, 1, 1], [], []>} : vector<16x16xbf16>, vector<16x64xbf16>, vector<16x64xf32> -> vector<16x64xf32>
    %178 = arith.addf %109, %177 : vector<16x64xf32>
    %179 = vector.extract_strided_slice %33 {offsets = [0, 32], sizes = [16, 16], strides = [1, 1]} : vector<16x64xf32> to vector<16x16xf32>
    %cst_59 = arith.constant dense<0.000000e+00> : vector<16xf32>
    %180 = vector.multi_reduction <add>, %179, %cst_59 [1] : vector<16x16xf32> to vector<16xf32>
    %181 = vector.shape_cast %180 : vector<16xf32> to vector<16x1xf32>
    %cst_60 = arith.constant 1.600000e+01 : f32
    %182 = vector.broadcast %cst_60 : f32 to vector<16x1xf32>
    %183 = arith.divf %181, %182 : vector<16x1xf32>
    %184 = vector.broadcast %183 : vector<16x1xf32> to vector<16x16xf32>
    %185 = arith.subf %179, %184 : vector<16x16xf32>
    %186 = arith.mulf %185, %185 : vector<16x16xf32>
    %cst_61 = arith.constant dense<0.000000e+00> : vector<16xf32>
    %187 = vector.multi_reduction <add>, %186, %cst_61 [1] : vector<16x16xf32> to vector<16xf32>
    %188 = vector.shape_cast %187 : vector<16xf32> to vector<16x1xf32>
    %cst_62 = arith.constant 1.600000e+01 : f32
    %189 = vector.broadcast %cst_62 : f32 to vector<16x1xf32>
    %190 = arith.divf %188, %189 : vector<16x1xf32>
    %191 = vector.broadcast %183 : vector<16x1xf32> to vector<16x16xf32>
    %192 = arith.subf %179, %191 : vector<16x16xf32>
    %cst_63 = arith.constant 9.99999974E-6 : f32
    %193 = vector.broadcast %cst_63 : f32 to vector<16x1xf32>
    %194 = arith.addf %190, %193 : vector<16x1xf32>
    %195 = math.rsqrt %194 : vector<16x1xf32>
    %196 = vector.broadcast %195 : vector<16x1xf32> to vector<16x16xf32>
    %197 = arith.mulf %192, %196 : vector<16x16xf32>
    %198 = vector.broadcast %36 : vector<1x16xf32> to vector<16x16xf32>
    %199 = arith.mulf %197, %198 : vector<16x16xf32>
    %200 = vector.broadcast %37 : vector<1x16xf32> to vector<16x16xf32>
    %201 = arith.addf %199, %200 : vector<16x16xf32>
    %cst_64 = arith.constant 2.500000e-01 : f32
    %202 = vector.broadcast %cst_64 : f32 to vector<16x16xf32>
    %203 = arith.mulf %201, %202 : vector<16x16xf32>
    %204 = vector.extract_strided_slice %34 {offsets = [0, 32], sizes = [16, 16], strides = [1, 1]} : vector<16x64xf32> to vector<16x16xf32>
    %cst_65 = arith.constant dense<0.000000e+00> : vector<16xf32>
    %205 = vector.multi_reduction <add>, %204, %cst_65 [1] : vector<16x16xf32> to vector<16xf32>
    %206 = vector.shape_cast %205 : vector<16xf32> to vector<16x1xf32>
    %cst_66 = arith.constant 1.600000e+01 : f32
    %207 = vector.broadcast %cst_66 : f32 to vector<16x1xf32>
    %208 = arith.divf %206, %207 : vector<16x1xf32>
    %209 = vector.broadcast %208 : vector<16x1xf32> to vector<16x16xf32>
    %210 = arith.subf %204, %209 : vector<16x16xf32>
    %211 = arith.mulf %210, %210 : vector<16x16xf32>
    %cst_67 = arith.constant dense<0.000000e+00> : vector<16xf32>
    %212 = vector.multi_reduction <add>, %211, %cst_67 [1] : vector<16x16xf32> to vector<16xf32>
    %213 = vector.shape_cast %212 : vector<16xf32> to vector<16x1xf32>
    %cst_68 = arith.constant 1.600000e+01 : f32
    %214 = vector.broadcast %cst_68 : f32 to vector<16x1xf32>
    %215 = arith.divf %213, %214 : vector<16x1xf32>
    %216 = vector.broadcast %208 : vector<16x1xf32> to vector<16x16xf32>
    %217 = arith.subf %204, %216 : vector<16x16xf32>
    %cst_69 = arith.constant 9.99999974E-6 : f32
    %218 = vector.broadcast %cst_69 : f32 to vector<16x1xf32>
    %219 = arith.addf %215, %218 : vector<16x1xf32>
    %220 = math.rsqrt %219 : vector<16x1xf32>
    %221 = vector.broadcast %220 : vector<16x1xf32> to vector<16x16xf32>
    %222 = arith.mulf %217, %221 : vector<16x16xf32>
    %223 = vector.broadcast %38 : vector<1x16xf32> to vector<16x16xf32>
    %224 = arith.mulf %222, %223 : vector<16x16xf32>
    %225 = vector.broadcast %39 : vector<1x16xf32> to vector<16x16xf32>
    %226 = arith.addf %224, %225 : vector<16x16xf32>
    %227 = vector.extract_strided_slice %35 {offsets = [0, 32], sizes = [16, 16], strides = [1, 1]} : vector<16x64xf32> to vector<16x16xf32>
    %228 = arith.truncf %203 : vector<16x16xf32> to vector<16x16xbf16>
    %229 = arith.truncf %226 : vector<16x16xf32> to vector<16x16xbf16>
    %cst_70 = arith.constant dense<0.000000e+00> : vector<16x16xf32>
    %230 = tpu.matmul %228, %229, %cst_70 {dimension_numbers = #tpu.dot_dimension_numbers<[1], [1], [0], [0], [0, 0, 1, 0], [], []>} : vector<16x16xbf16>, vector<16x16xbf16>, vector<16x16xf32> -> vector<16x16xf32>
    %cst_71 = arith.constant dense<0xFF800000> : vector<16xf32>
    %231 = vector.multi_reduction <maximumf>, %230, %cst_71 [1] : vector<16x16xf32> to vector<16xf32>
    %232 = vector.shape_cast %231 : vector<16xf32> to vector<16x1xf32>
    %233 = vector.broadcast %232 : vector<16x1xf32> to vector<16x16xf32>
    %234 = arith.subf %230, %233 : vector<16x16xf32>
    %235 = math.exp %234 : vector<16x16xf32>
    %cst_72 = arith.constant dense<0.000000e+00> : vector<16xf32>
    %236 = vector.multi_reduction <add>, %235, %cst_72 [1] : vector<16x16xf32> to vector<16xf32>
    %237 = vector.shape_cast %236 : vector<16xf32> to vector<16x1xf32>
    %238 = arith.truncf %235 : vector<16x16xf32> to vector<16x16xbf16>
    %239 = arith.truncf %227 : vector<16x16xf32> to vector<16x16xbf16>
    %cst_73 = arith.constant dense<0.000000e+00> : vector<16x16xf32>
    %240 = tpu.matmul %238, %239, %cst_73 {dimension_numbers = #tpu.dot_dimension_numbers<[1], [0], [0], [1], [0, 0, 1, 1], [], []>} : vector<16x16xbf16>, vector<16x16xbf16>, vector<16x16xf32> -> vector<16x16xf32>
    %241 = tpu.reciprocal %237 {approx = true} : vector<16x1xf32> -> vector<16x1xf32>
    %242 = vector.broadcast %241 : vector<16x1xf32> to vector<16x16xf32>
    %243 = arith.mulf %240, %242 : vector<16x16xf32>
    %244 = arith.truncf %243 : vector<16x16xf32> to vector<16x16xbf16>
    %c32 = arith.constant 32 : index
    %c0_74 = arith.constant 0 : index
    %245 = vector.load %arg10[%c32, %c0_74] : memref<64x64xbf16, #tpu.memory_space<vmem>>, vector<16x64xbf16>
    %cst_75 = arith.constant dense<0.000000e+00> : vector<16x64xf32>
    %246 = tpu.matmul %244, %245, %cst_75 {dimension_numbers = #tpu.dot_dimension_numbers<[1], [0], [0], [1], [0, 0, 1, 1], [], []>} : vector<16x16xbf16>, vector<16x64xbf16>, vector<16x64xf32> -> vector<16x64xf32>
    %247 = arith.addf %178, %246 : vector<16x64xf32>
    %248 = vector.extract_strided_slice %33 {offsets = [0, 48], sizes = [16, 16], strides = [1, 1]} : vector<16x64xf32> to vector<16x16xf32>
    %cst_76 = arith.constant dense<0.000000e+00> : vector<16xf32>
    %249 = vector.multi_reduction <add>, %248, %cst_76 [1] : vector<16x16xf32> to vector<16xf32>
    %250 = vector.shape_cast %249 : vector<16xf32> to vector<16x1xf32>
    %cst_77 = arith.constant 1.600000e+01 : f32
    %251 = vector.broadcast %cst_77 : f32 to vector<16x1xf32>
    %252 = arith.divf %250, %251 : vector<16x1xf32>
    %253 = vector.broadcast %252 : vector<16x1xf32> to vector<16x16xf32>
    %254 = arith.subf %248, %253 : vector<16x16xf32>
    %255 = arith.mulf %254, %254 : vector<16x16xf32>
    %cst_78 = arith.constant dense<0.000000e+00> : vector<16xf32>
    %256 = vector.multi_reduction <add>, %255, %cst_78 [1] : vector<16x16xf32> to vector<16xf32>
    %257 = vector.shape_cast %256 : vector<16xf32> to vector<16x1xf32>
    %cst_79 = arith.constant 1.600000e+01 : f32
    %258 = vector.broadcast %cst_79 : f32 to vector<16x1xf32>
    %259 = arith.divf %257, %258 : vector<16x1xf32>
    %260 = vector.broadcast %252 : vector<16x1xf32> to vector<16x16xf32>
    %261 = arith.subf %248, %260 : vector<16x16xf32>
    %cst_80 = arith.constant 9.99999974E-6 : f32
    %262 = vector.broadcast %cst_80 : f32 to vector<16x1xf32>
    %263 = arith.addf %259, %262 : vector<16x1xf32>
    %264 = math.rsqrt %263 : vector<16x1xf32>
    %265 = vector.broadcast %264 : vector<16x1xf32> to vector<16x16xf32>
    %266 = arith.mulf %261, %265 : vector<16x16xf32>
    %267 = vector.broadcast %36 : vector<1x16xf32> to vector<16x16xf32>
    %268 = arith.mulf %266, %267 : vector<16x16xf32>
    %269 = vector.broadcast %37 : vector<1x16xf32> to vector<16x16xf32>
    %270 = arith.addf %268, %269 : vector<16x16xf32>
    %cst_81 = arith.constant 2.500000e-01 : f32
    %271 = vector.broadcast %cst_81 : f32 to vector<16x16xf32>
    %272 = arith.mulf %270, %271 : vector<16x16xf32>
    %273 = vector.extract_strided_slice %34 {offsets = [0, 48], sizes = [16, 16], strides = [1, 1]} : vector<16x64xf32> to vector<16x16xf32>
    %cst_82 = arith.constant dense<0.000000e+00> : vector<16xf32>
    %274 = vector.multi_reduction <add>, %273, %cst_82 [1] : vector<16x16xf32> to vector<16xf32>
    %275 = vector.shape_cast %274 : vector<16xf32> to vector<16x1xf32>
    %cst_83 = arith.constant 1.600000e+01 : f32
    %276 = vector.broadcast %cst_83 : f32 to vector<16x1xf32>
    %277 = arith.divf %275, %276 : vector<16x1xf32>
    %278 = vector.broadcast %277 : vector<16x1xf32> to vector<16x16xf32>
    %279 = arith.subf %273, %278 : vector<16x16xf32>
    %280 = arith.mulf %279, %279 : vector<16x16xf32>
    %cst_84 = arith.constant dense<0.000000e+00> : vector<16xf32>
    %281 = vector.multi_reduction <add>, %280, %cst_84 [1] : vector<16x16xf32> to vector<16xf32>
    %282 = vector.shape_cast %281 : vector<16xf32> to vector<16x1xf32>
    %cst_85 = arith.constant 1.600000e+01 : f32
    %283 = vector.broadcast %cst_85 : f32 to vector<16x1xf32>
    %284 = arith.divf %282, %283 : vector<16x1xf32>
    %285 = vector.broadcast %277 : vector<16x1xf32> to vector<16x16xf32>
    %286 = arith.subf %273, %285 : vector<16x16xf32>
    %cst_86 = arith.constant 9.99999974E-6 : f32
    %287 = vector.broadcast %cst_86 : f32 to vector<16x1xf32>
    %288 = arith.addf %284, %287 : vector<16x1xf32>
    %289 = math.rsqrt %288 : vector<16x1xf32>
    %290 = vector.broadcast %289 : vector<16x1xf32> to vector<16x16xf32>
    %291 = arith.mulf %286, %290 : vector<16x16xf32>
    %292 = vector.broadcast %38 : vector<1x16xf32> to vector<16x16xf32>
    %293 = arith.mulf %291, %292 : vector<16x16xf32>
    %294 = vector.broadcast %39 : vector<1x16xf32> to vector<16x16xf32>
    %295 = arith.addf %293, %294 : vector<16x16xf32>
    %296 = vector.extract_strided_slice %35 {offsets = [0, 48], sizes = [16, 16], strides = [1, 1]} : vector<16x64xf32> to vector<16x16xf32>
    %297 = arith.truncf %272 : vector<16x16xf32> to vector<16x16xbf16>
    %298 = arith.truncf %295 : vector<16x16xf32> to vector<16x16xbf16>
    %cst_87 = arith.constant dense<0.000000e+00> : vector<16x16xf32>
    %299 = tpu.matmul %297, %298, %cst_87 {dimension_numbers = #tpu.dot_dimension_numbers<[1], [1], [0], [0], [0, 0, 1, 0], [], []>} : vector<16x16xbf16>, vector<16x16xbf16>, vector<16x16xf32> -> vector<16x16xf32>
    %cst_88 = arith.constant dense<0xFF800000> : vector<16xf32>
    %300 = vector.multi_reduction <maximumf>, %299, %cst_88 [1] : vector<16x16xf32> to vector<16xf32>
    %301 = vector.shape_cast %300 : vector<16xf32> to vector<16x1xf32>
    %302 = vector.broadcast %301 : vector<16x1xf32> to vector<16x16xf32>
    %303 = arith.subf %299, %302 : vector<16x16xf32>
    %304 = math.exp %303 : vector<16x16xf32>
    %cst_89 = arith.constant dense<0.000000e+00> : vector<16xf32>
    %305 = vector.multi_reduction <add>, %304, %cst_89 [1] : vector<16x16xf32> to vector<16xf32>
    %306 = vector.shape_cast %305 : vector<16xf32> to vector<16x1xf32>
    %307 = arith.truncf %304 : vector<16x16xf32> to vector<16x16xbf16>
    %308 = arith.truncf %296 : vector<16x16xf32> to vector<16x16xbf16>
    %cst_90 = arith.constant dense<0.000000e+00> : vector<16x16xf32>
    %309 = tpu.matmul %307, %308, %cst_90 {dimension_numbers = #tpu.dot_dimension_numbers<[1], [0], [0], [1], [0, 0, 1, 1], [], []>} : vector<16x16xbf16>, vector<16x16xbf16>, vector<16x16xf32> -> vector<16x16xf32>
    %310 = tpu.reciprocal %306 {approx = true} : vector<16x1xf32> -> vector<16x1xf32>
    %311 = vector.broadcast %310 : vector<16x1xf32> to vector<16x16xf32>
    %312 = arith.mulf %309, %311 : vector<16x16xf32>
    %313 = arith.truncf %312 : vector<16x16xf32> to vector<16x16xbf16>
    %c48 = arith.constant 48 : index
    %c0_91 = arith.constant 0 : index
    %314 = vector.load %arg10[%c48, %c0_91] : memref<64x64xbf16, #tpu.memory_space<vmem>>, vector<16x64xbf16>
    %cst_92 = arith.constant dense<0.000000e+00> : vector<16x64xf32>
    %315 = tpu.matmul %313, %314, %cst_92 {dimension_numbers = #tpu.dot_dimension_numbers<[1], [0], [0], [1], [0, 0, 1, 1], [], []>} : vector<16x16xbf16>, vector<16x64xbf16>, vector<16x64xf32> -> vector<16x64xf32>
    %316 = arith.addf %247, %315 : vector<16x64xf32>
    %c0_93 = arith.constant 0 : index
    %c0_94 = arith.constant 0 : index
    %317 = vector.load %arg11[%c0_93, %c0_94] : memref<1x64xf32, #tpu.memory_space<vmem>>, vector<1x64xf32>
    %318 = vector.broadcast %317 : vector<1x64xf32> to vector<16x64xf32>
    %319 = arith.addf %316, %318 : vector<16x64xf32>
    %cst_95 = arith.constant 5.000000e-01 : f32
    %320 = vector.broadcast %cst_95 : f32 to vector<16x256xf32>
    %321 = arith.mulf %320, %32 : vector<16x256xf32>
    %cst_96 = arith.constant 0.707106769 : f32
    %322 = vector.broadcast %cst_96 : f32 to vector<16x256xf32>
    %323 = arith.mulf %32, %322 : vector<16x256xf32>
    %324 = math.erf %323 : vector<16x256xf32>
    %cst_97 = arith.constant 1.000000e+00 : f32
    %325 = vector.broadcast %cst_97 : f32 to vector<16x256xf32>
    %326 = arith.addf %325, %324 : vector<16x256xf32>
    %327 = arith.mulf %321, %326 : vector<16x256xf32>
    %328 = arith.truncf %327 : vector<16x256xf32> to vector<16x256xbf16>
    %c0_98 = arith.constant 0 : index
    %c0_99 = arith.constant 0 : index
    %329 = vector.load %arg12[%c0_98, %c0_99] : memref<256x64xbf16, #tpu.memory_space<vmem>>, vector<256x64xbf16>
    %cst_100 = arith.constant dense<0.000000e+00> : vector<16x64xf32>
    %330 = tpu.matmul %328, %329, %cst_100 {dimension_numbers = #tpu.dot_dimension_numbers<[1], [0], [0], [1], [0, 0, 1, 1], [], []>} : vector<16x256xbf16>, vector<256x64xbf16>, vector<16x64xf32> -> vector<16x64xf32>
    %c0_101 = arith.constant 0 : index
    %c0_102 = arith.constant 0 : index
    %331 = vector.load %arg13[%c0_101, %c0_102] : memref<1x64xf32, #tpu.memory_space<vmem>>, vector<1x64xf32>
    %332 = vector.broadcast %331 : vector<1x64xf32> to vector<16x64xf32>
    %333 = arith.addf %330, %332 : vector<16x64xf32>
    %334 = arith.addf %1, %319 : vector<16x64xf32>
    %335 = arith.addf %334, %333 : vector<16x64xf32>
    %c0_103 = arith.constant 0 : index
    %c0_104 = arith.constant 0 : index
    %c0_105 = arith.constant 0 : index
    %336 = vector.load %arg14[%c0_103, %c0_104, %c0_105] : memref<1x16x64xf32, #tpu.memory_space<vmem>>, vector<1x16x64xf32>
    %337 = vector.shape_cast %336 : vector<1x16x64xf32> to vector<16x64xf32>
    %338 = vector.shape_cast %335 : vector<16x64xf32> to vector<1x16x64xf32>
    tpu.vector_store %arg14[%c0_103, %c0_104, %c0_105], %338 {strides = array<i32>} : memref<1x16x64xf32, #tpu.memory_space<vmem>>, vector<1x16x64xf32>,
    return
  }
  func.func @transform_0(%arg0: i32) -> (i32, i32, i32) {
    %c0_i32 = arith.constant 0 : i32
    %c0_i32_0 = arith.constant 0 : i32
    %c0_i32_1 = arith.constant 0 : i32
    return %arg0, %c0_i32, %c0_i32_0 : i32, i32, i32
  }
  func.func @transform_1(%arg0: i32) -> (i32, i32) {
    %c0_i32 = arith.constant 0 : i32
    %c0_i32_0 = arith.constant 0 : i32
    %c0_i32_1 = arith.constant 0 : i32
    return %c0_i32, %c0_i32_0 : i32, i32
  }
  func.func @transform_2(%arg0: i32) -> (i32, i32) {
    %c0_i32 = arith.constant 0 : i32
    %c0_i32_0 = arith.constant 0 : i32
    %c0_i32_1 = arith.constant 0 : i32
    return %c0_i32, %c0_i32_0 : i32, i32
  }
  func.func @transform_3(%arg0: i32) -> (i32, i32) {
    %c0_i32 = arith.constant 0 : i32
    %c0_i32_0 = arith.constant 0 : i32
    %c0_i32_1 = arith.constant 0 : i32
    return %c0_i32, %c0_i32_0 : i32, i32
  }
  func.func @transform_4(%arg0: i32) -> (i32, i32) {
    %c0_i32 = arith.constant 0 : i32
    %c0_i32_0 = arith.constant 0 : i32
    %c0_i32_1 = arith.constant 0 : i32
    return %c0_i32, %c0_i32_0 : i32, i32
  }
  func.func @transform_5(%arg0: i32) -> (i32, i32) {
    %c0_i32 = arith.constant 0 : i32
    %c0_i32_0 = arith.constant 0 : i32
    %c0_i32_1 = arith.constant 0 : i32
    return %c0_i32, %c0_i32_0 : i32, i32
  }
  func.func @transform_6(%arg0: i32) -> (i32, i32) {
    %c0_i32 = arith.constant 0 : i32
    %c0_i32_0 = arith.constant 0 : i32
    %c0_i32_1 = arith.constant 0 : i32
    return %c0_i32, %c0_i32_0 : i32, i32
  }
  func.func @transform_7(%arg0: i32) -> (i32, i32) {
    %c0_i32 = arith.constant 0 : i32
    %c0_i32_0 = arith.constant 0 : i32
    %c0_i32_1 = arith.constant 0 : i32
    return %c0_i32, %c0_i32_0 : i32, i32
  }
  func.func @transform_8(%arg0: i32) -> (i32, i32) {
    %c0_i32 = arith.constant 0 : i32
    %c0_i32_0 = arith.constant 0 : i32
    %c0_i32_1 = arith.constant 0 : i32
    return %c0_i32, %c0_i32_0 : i32, i32
  }
  func.func @transform_9(%arg0: i32) -> (i32, i32) {
    %c0_i32 = arith.constant 0 : i32
    %c0_i32_0 = arith.constant 0 : i32
    %c0_i32_1 = arith.constant 0 : i32
    return %c0_i32, %c0_i32_0 : i32, i32
  }
  func.func @transform_10(%arg0: i32) -> (i32, i32) {
    %c0_i32 = arith.constant 0 : i32
    %c0_i32_0 = arith.constant 0 : i32
    %c0_i32_1 = arith.constant 0 : i32
    return %c0_i32, %c0_i32_0 : i32, i32
  }
  func.func @transform_11(%arg0: i32) -> (i32, i32) {
    %c0_i32 = arith.constant 0 : i32
    %c0_i32_0 = arith.constant 0 : i32
    %c0_i32_1 = arith.constant 0 : i32
    return %c0_i32, %c0_i32_0 : i32, i32
  }
  func.func @transform_12(%arg0: i32) -> (i32, i32) {
    %c0_i32 = arith.constant 0 : i32
    %c0_i32_0 = arith.constant 0 : i32
    %c0_i32_1 = arith.constant 0 : i32
    return %c0_i32, %c0_i32_0 : i32, i32
  }
  func.func @transform_13(%arg0: i32) -> (i32, i32, i32) {
    %c0_i32 = arith.constant 0 : i32
    %c0_i32_0 = arith.constant 0 : i32
    %c0_i32_1 = arith.constant 0 : i32
    return %arg0, %c0_i32, %c0_i32_0 : i32, i32, i32
  }
}

</mosaic_0001>

<llo_original>
// kernel: tpu_custom_call.1
$region0: #{tpu_custom_call.1}
  #allocation0 [shape = 'u32[]', space=smem, size = 0x4, offset = 0x4, fixed_abs, tag = 'smem constant byte address 0x4 - core index']
  #allocation1 [shape = 'u32[72,128]{1,0:T(1,128)}', space=vmem, size = 0x9000, scoped, tag = 'internal scratch']
  %s0 = inlined_call_operand.vmem [shape: f32[2,16,64], index: 0, kind: input, shape index: {}]
  %s1 = inlined_call_operand.vmem [shape: f32[1,64], index: 1, kind: input, shape index: {}]
  %s2 = inlined_call_operand.vmem [shape: f32[1,64], index: 2, kind: input, shape index: {}]
  %s3 = inlined_call_operand.vmem [shape: bf16[64,448], index: 3, kind: input, shape index: {}]
  %s4 = inlined_call_operand.hbm [shape: f32[1,448], index: 4, kind: input, shape index: {}]
  %s5 = inlined_call_operand.hbm [shape: f32[1,16], index: 5, kind: input, shape index: {}]
  %s6 = inlined_call_operand.vmem [shape: f32[1,16], index: 6, kind: input, shape index: {}]
  %s7 = inlined_call_operand.vmem [shape: f32[1,16], index: 7, kind: input, shape index: {}]
  %s8 = inlined_call_operand.vmem [shape: f32[1,16], index: 8, kind: input, shape index: {}]
  %s9 = inlined_call_operand.vmem [shape: bf16[64,64], index: 9, kind: input, shape index: {}]
  %s10 = inlined_call_operand.vmem [shape: f32[1,64], index: 10, kind: input, shape index: {}]
  %s11 = inlined_call_operand.vmem [shape: bf16[256,64], index: 11, kind: input, shape index: {}]
  %s12 = inlined_call_operand.vmem [shape: f32[1,64], index: 12, kind: input, shape index: {}]
  %s13 = inlined_call_operand.hbm [shape: f32[2,16,64], index: 13, kind: output, shape index: {}]
  %s14 = sld [smem:[#allocation0]]
  $region93: #{tpu_custom_call.1} parent=0
    _
  %s16 = ssub.s32 1, %s14
  %s17 = scalar_select 0, %s16, %s14
  $region1: #{tpu_custom_call.1} parent=0
    #allocation2 [shape = 'u8[2048]{0}', space=vmem, size = 0x800, scoped, tag = 'input window, operand 4, single buffered']
    #allocation3 [shape = 's32[2]{0}', space=sflag, size = 0x8, scoped, tag = 'scoped memory for tpu_custom_call.1']
    #allocation4 [shape = 's32[2]{0}', space=sflag, size = 0x8, scoped, tag = 'scoped memory for tpu_custom_call.1']
    #allocation5 [shape = 'u8[512]{0}', space=vmem, size = 0x400, scoped, tag = 'input window, operand 5, single buffered']
    #allocation6 [shape = 's32[1]{0}', space=sflag, size = 0x4, scoped, tag = 'scoped memory for tpu_custom_call.1']
    #allocation7 [shape = 'u8[16384]{0}', space=vmem, size = 0x4000, scoped, tag = 'output window, operand 0']
    %18 = vsyncpa [#allocation3], 0
    %19 = vsyncpa [#allocation6], 0
    %20 = vsyncpa [#allocation4], 0
    %s21 = scalar_lea.sflag [#allocation4], 1
    %22 = vsyncpa %s21, 0
    loop: start=0, step=1, limit=4
    $region2: #{tpu_custom_call.1} parent=1 // loop_pre_header
      _
    $region3: #{tpu_custom_call.1} parent=1 // loop_header
      %s24 = sphi 0, %s28
      %p25 = scmp.ge.s32.totalorder %s24, 4
      %s34 = sphi 0, %s36
      %s37 = sphi 0, %s34
      %s38 = sphi 0, %s37
      %s54 = sphi 0, %s38
      %s58 = sphi 0, %s58
      %s60 = sphi 0, %s58
      %s61 = sphi 0, %s60
      %s75 = sphi 0, %s61
      %s79 = sphi 0, %s79
      %s81 = sphi 0, %s79
      %s82 = sphi 0, %s81
      %s96 = sphi 0, %s82
      %s100 = sphi 0, %s100
      %s102 = sphi 0, %s100
      %s103 = sphi 0, %s102
      %s117 = sphi 0, %s103
      %s121 = sphi 0, %s121
      %s123 = sphi 0, %s121
      %s124 = sphi 0, %s123
      %s138 = sphi 0, %s124
      %s142 = sphi 0, %s142
      %s144 = sphi 0, %s142
      %s145 = sphi 0, %s144
      %s159 = sphi 0, %s145
      %s163 = sphi 0, %s163
      %s165 = sphi 0, %s163
      %s166 = sphi 0, %s165
      %s180 = sphi 0, %s166
      %s184 = sphi 0, %s184
      %s186 = sphi 0, %s184
      %s187 = sphi 0, %s186
      %s201 = sphi 0, %s187
      %s205 = sphi 0, %s205
      %s207 = sphi 0, %s205
      %s208 = sphi 0, %s207
      %s222 = sphi 0, %s208
      %s226 = sphi 0, %s226
      %s228 = sphi 0, %s226
      %s229 = sphi 0, %s228
      %s243 = sphi 0, %s229
      %s247 = sphi 0, %s247
      %s249 = sphi 0, %s247
      %s250 = sphi 0, %s249
      %s264 = sphi 0, %s250
      %s268 = sphi 0, %s268
      %s270 = sphi 0, %s268
      %s271 = sphi 0, %s270
      %s285 = sphi 0, %s271
      %s289 = sphi 0, %s289
      %s291 = sphi 0, %s289
      %s292 = sphi 0, %s291
      %s306 = sphi 0, %s292
      %s312 = sphi 0, %s314
      %s315 = sphi 0, %s312
      %s316 = sphi 0, %s315
      %s332 = sphi 0, %s316
    $region4: #{tpu_custom_call.1} parent=1 // loop_header_branch
      %27 = sbr.rel (%p25) target = $region8
    $region5: #{tpu_custom_call.1} parent=1 // loop_body
      %s29 = ssub.s32 %s24, 1
      %s30 = ssub.s32 %s24, 2
      %s31 = sadd.s32 %s24, 1
      %s32 = ssub.s32 %s24, %s31
      %p33 = scmp.eq.s32.totalorder %s32, 0
      %s35 = sadd.s32 %s34, 1
      %s36 = scalar_select %p33, %s34, %s35
      %p39 = pneg %p33
      %p40 = scmp.eq.s32.totalorder %s24, 1
      %p41 = por %p39, %p40
      %p42 = scmp.ne.s32.totalorder %s34, %s37
      %p43 = scmp.eq.s32.totalorder %s24, 0
      %p44 = por %p42, %p43
      %p45 = scmp.ne.s32.totalorder %s34, %s37
      %p46 = scmp.eq.s32.totalorder %s29, 1
      %p47 = por %p45, %p46
      %p48 = scmp.ne.s32.totalorder %s37, %s38
      %p49 = scmp.eq.s32.totalorder %s29, 0
      %p50 = por %p48, %p49
      %p51 = scmp.ne.s32.totalorder %s37, %s38
      %p52 = scmp.eq.s32.totalorder %s30, 1
      %p53 = por %p51, %p52
      %p55 = scmp.ne.s32.totalorder %s38, %s54
      %p56 = scmp.eq.s32.totalorder %s30, 0
      %p57 = por %p55, %p56
      %s59 = sadd.s32 %s58, 1
      %p62 = scmp.eq.s32.totalorder %s24, 1
      %p63 = scmp.ne.s32.totalorder %s58, %s60
      %p64 = scmp.eq.s32.totalorder %s24, 0
      %p65 = por %p63, %p64
      %p66 = scmp.ne.s32.totalorder %s58, %s60
      %p67 = scmp.eq.s32.totalorder %s29, 1
      %p68 = por %p66, %p67
      %p69 = scmp.ne.s32.totalorder %s60, %s61
      %p70 = scmp.eq.s32.totalorder %s29, 0
      %p71 = por %p69, %p70
      %p72 = scmp.ne.s32.totalorder %s60, %s61
      %p73 = scmp.eq.s32.totalorder %s30, 1
      %p74 = por %p72, %p73
      %p76 = scmp.ne.s32.totalorder %s61, %s75
      %p77 = scmp.eq.s32.totalorder %s30, 0
      %p78 = por %p76, %p77
      %s80 = sadd.s32 %s79, 1
      %p83 = scmp.eq.s32.totalorder %s24, 1
      %p84 = scmp.ne.s32.totalorder %s79, %s81
      %p85 = scmp.eq.s32.totalorder %s24, 0
      %p86 = por %p84, %p85
      %p87 = scmp.ne.s32.totalorder %s79, %s81
      %p88 = scmp.eq.s32.totalorder %s29, 1
      %p89 = por %p87, %p88
      %p90 = scmp.ne.s32.totalorder %s81, %s82
      %p91 = scmp.eq.s32.totalorder %s29, 0
      %p92 = por %p90, %p91
      %p93 = scmp.ne.s32.totalorder %s81, %s82
      %p94 = scmp.eq.s32.totalorder %s30, 1
      %p95 = por %p93, %p94
      %p97 = scmp.ne.s32.totalorder %s82, %s96
      %p98 = scmp.eq.s32.totalorder %s30, 0
      %p99 = por %p97, %p98
      %s101 = sadd.s32 %s100, 1
      %p104 = scmp.eq.s32.totalorder %s24, 1
      %p105 = scmp.ne.s32.totalorder %s100, %s102
      %p106 = scmp.eq.s32.totalorder %s24, 0
      %p107 = por %p105, %p106
      %p108 = scmp.ne.s32.totalorder %s100, %s102
      %p109 = scmp.eq.s32.totalorder %s29, 1
      %p110 = por %p108, %p109
      %p111 = scmp.ne.s32.totalorder %s102, %s103
      %p112 = scmp.eq.s32.totalorder %s29, 0
      %p113 = por %p111, %p112
      %p114 = scmp.ne.s32.totalorder %s102, %s103
      %p115 = scmp.eq.s32.totalorder %s30, 1
      %p116 = por %p114, %p115
      %p118 = scmp.ne.s32.totalorder %s103, %s117
      %p119 = scmp.eq.s32.totalorder %s30, 0
      %p120 = por %p118, %p119
      %s122 = sadd.s32 %s121, 1
      %p125 = scmp.eq.s32.totalorder %s24, 1
      %p126 = scmp.ne.s32.totalorder %s121, %s123
      %p127 = scmp.eq.s32.totalorder %s24, 0
      %p128 = por %p126, %p127
      %p129 = scmp.ne.s32.totalorder %s121, %s123
      %p130 = scmp.eq.s32.totalorder %s29, 1
      %p131 = por %p129, %p130
      %p132 = scmp.ne.s32.totalorder %s123, %s124
      %p133 = scmp.eq.s32.totalorder %s29, 0
      %p134 = por %p132, %p133
      %p135 = scmp.ne.s32.totalorder %s123, %s124
      %p136 = scmp.eq.s32.totalorder %s30, 1
      %p137 = por %p135, %p136
      %p139 = scmp.ne.s32.totalorder %s124, %s138
      %p140 = scmp.eq.s32.totalorder %s30, 0
      %p141 = por %p139, %p140
      %s143 = sadd.s32 %s142, 1
      %p146 = scmp.eq.s32.totalorder %s24, 1
      %p147 = scmp.ne.s32.totalorder %s142, %s144
      %p148 = scmp.eq.s32.totalorder %s24, 0
      %p149 = por %p147, %p148
      %p150 = scmp.ne.s32.totalorder %s142, %s144
      %p151 = scmp.eq.s32.totalorder %s29, 1
      %p152 = por %p150, %p151
      %p153 = scmp.ne.s32.totalorder %s144, %s145
      %p154 = scmp.eq.s32.totalorder %s29, 0
      %p155 = por %p153, %p154
      %p156 = scmp.ne.s32.totalorder %s144, %s145
      %p157 = scmp.eq.s32.totalorder %s30, 1
      %p158 = por %p156, %p157
      %p160 = scmp.ne.s32.totalorder %s145, %s159
      %p161 = scmp.eq.s32.totalorder %s30, 0
      %p162 = por %p160, %p161
      %s164 = sadd.s32 %s163, 1
      %p167 = scmp.eq.s32.totalorder %s24, 1
      %p168 = scmp.ne.s32.totalorder %s163, %s165
      %p169 = scmp.eq.s32.totalorder %s24, 0
      %p170 = por %p168, %p169
      %p171 = scmp.ne.s32.totalorder %s163, %s165
      %p172 = scmp.eq.s32.totalorder %s29, 1
      %p173 = por %p171, %p172
      %p174 = scmp.ne.s32.totalorder %s165, %s166
      %p175 = scmp.eq.s32.totalorder %s29, 0
      %p176 = por %p174, %p175
      %p177 = scmp.ne.s32.totalorder %s165, %s166
      %p178 = scmp.eq.s32.totalorder %s30, 1
      %p179 = por %p177, %p178
      %p181 = scmp.ne.s32.totalorder %s166, %s180
      %p182 = scmp.eq.s32.totalorder %s30, 0
      %p183 = por %p181, %p182
      %s185 = sadd.s32 %s184, 1
      %p188 = scmp.eq.s32.totalorder %s24, 1
      %p189 = scmp.ne.s32.totalorder %s184, %s186
      %p190 = scmp.eq.s32.totalorder %s24, 0
      %p191 = por %p189, %p190
      %p192 = scmp.ne.s32.totalorder %s184, %s186
      %p193 = scmp.eq.s32.totalorder %s29, 1
      %p194 = por %p192, %p193
      %p195 = scmp.ne.s32.totalorder %s186, %s187
      %p196 = scmp.eq.s32.totalorder %s29, 0
      %p197 = por %p195, %p196
      %p198 = scmp.ne.s32.totalorder %s186, %s187
      %p199 = scmp.eq.s32.totalorder %s30, 1
      %p200 = por %p198, %p199
      %p202 = scmp.ne.s32.totalorder %s187, %s201
      %p203 = scmp.eq.s32.totalorder %s30, 0
      %p204 = por %p202, %p203
      %s206 = sadd.s32 %s205, 1
      %p209 = scmp.eq.s32.totalorder %s24, 1
      %p210 = scmp.ne.s32.totalorder %s205, %s207
      %p211 = scmp.eq.s32.totalorder %s24, 0
      %p212 = por %p210, %p211
      %p213 = scmp.ne.s32.totalorder %s205, %s207
      %p214 = scmp.eq.s32.totalorder %s29, 1
      %p215 = por %p213, %p214
      %p216 = scmp.ne.s32.totalorder %s207, %s208
      %p217 = scmp.eq.s32.totalorder %s29, 0
      %p218 = por %p216, %p217
      %p219 = scmp.ne.s32.totalorder %s207, %s208
      %p220 = scmp.eq.s32.totalorder %s30, 1
      %p221 = por %p219, %p220
      %p223 = scmp.ne.s32.totalorder %s208, %s222
      %p224 = scmp.eq.s32.totalorder %s30, 0
      %p225 = por %p223, %p224
      %s227 = sadd.s32 %s226, 1
      %p230 = scmp.eq.s32.totalorder %s24, 1
      %p231 = scmp.ne.s32.totalorder %s226, %s228
      %p232 = scmp.eq.s32.totalorder %s24, 0
      %p233 = por %p231, %p232
      %p234 = scmp.ne.s32.totalorder %s226, %s228
      %p235 = scmp.eq.s32.totalorder %s29, 1
      %p236 = por %p234, %p235
      %p237 = scmp.ne.s32.totalorder %s228, %s229
      %p238 = scmp.eq.s32.totalorder %s29, 0
      %p239 = por %p237, %p238
      %p240 = scmp.ne.s32.totalorder %s228, %s229
      %p241 = scmp.eq.s32.totalorder %s30, 1
      %p242 = por %p240, %p241
      %p244 = scmp.ne.s32.totalorder %s229, %s243
      %p245 = scmp.eq.s32.totalorder %s30, 0
      %p246 = por %p244, %p245
      %s248 = sadd.s32 %s247, 1
      %p251 = scmp.eq.s32.totalorder %s24, 1
      %p252 = scmp.ne.s32.totalorder %s247, %s249
      %p253 = scmp.eq.s32.totalorder %s24, 0
      %p254 = por %p252, %p253
      %p255 = scmp.ne.s32.totalorder %s247, %s249
      %p256 = scmp.eq.s32.totalorder %s29, 1
      %p257 = por %p255, %p256
      %p258 = scmp.ne.s32.totalorder %s249, %s250
      %p259 = scmp.eq.s32.totalorder %s29, 0
      %p260 = por %p258, %p259
      %p261 = scmp.ne.s32.totalorder %s249, %s250
      %p262 = scmp.eq.s32.totalorder %s30, 1
      %p263 = por %p261, %p262
      %p265 = scmp.ne.s32.totalorder %s250, %s264
      %p266 = scmp.eq.s32.totalorder %s30, 0
      %p267 = por %p265, %p266
      %s269 = sadd.s32 %s268, 1
      %p272 = scmp.eq.s32.totalorder %s24, 1
      %p273 = scmp.ne.s32.totalorder %s268, %s270
      %p274 = scmp.eq.s32.totalorder %s24, 0
      %p275 = por %p273, %p274
      %p276 = scmp.ne.s32.totalorder %s268, %s270
      %p277 = scmp.eq.s32.totalorder %s29, 1
      %p278 = por %p276, %p277
      %p279 = scmp.ne.s32.totalorder %s270, %s271
      %p280 = scmp.eq.s32.totalorder %s29, 0
      %p281 = por %p279, %p280
      %p282 = scmp.ne.s32.totalorder %s270, %s271
      %p283 = scmp.eq.s32.totalorder %s30, 1
      %p284 = por %p282, %p283
      %p286 = scmp.ne.s32.totalorder %s271, %s285
      %p287 = scmp.eq.s32.totalorder %s30, 0
      %p288 = por %p286, %p287
      %s290 = sadd.s32 %s289, 1
      %p293 = scmp.eq.s32.totalorder %s24, 1
      %p294 = scmp.ne.s32.totalorder %s289, %s291
      %p295 = scmp.eq.s32.totalorder %s24, 0
      %p296 = por %p294, %p295
      %p297 = scmp.ne.s32.totalorder %s289, %s291
      %p298 = scmp.eq.s32.totalorder %s29, 1
      %p299 = por %p297, %p298
      %p300 = scmp.ne.s32.totalorder %s291, %s292
      %p301 = scmp.eq.s32.totalorder %s29, 0
      %p302 = por %p300, %p301
      %p303 = scmp.ne.s32.totalorder %s291, %s292
      %p304 = scmp.eq.s32.totalorder %s30, 1
      %p305 = por %p303, %p304
      %p307 = scmp.ne.s32.totalorder %s292, %s306
      %p308 = scmp.eq.s32.totalorder %s30, 0
      %p309 = por %p307, %p308
      %s310 = ssub.s32 %s24, %s31
      %p311 = scmp.eq.s32.totalorder %s310, 0
      %s313 = sadd.s32 %s312, 1
      %s314 = scalar_select %p311, %s312, %s313
      %p317 = pneg %p311
      %p318 = scmp.eq.s32.totalorder %s24, 1
      %p319 = por %p317, %p318
      %p320 = scmp.ne.s32.totalorder %s312, %s315
      %p321 = scmp.eq.s32.totalorder %s24, 0
      %p322 = por %p320, %p321
      %p323 = scmp.ne.s32.totalorder %s312, %s315
      %p324 = scmp.eq.s32.totalorder %s29, 1
      %p325 = por %p323, %p324
      %p326 = scmp.ne.s32.totalorder %s315, %s316
      %p327 = scmp.eq.s32.totalorder %s29, 0
      %p328 = por %p326, %p327
      %p329 = scmp.ne.s32.totalorder %s315, %s316
      %p330 = scmp.eq.s32.totalorder %s30, 1
      %p331 = por %p329, %p330
      %p333 = scmp.ne.s32.totalorder %s316, %s332
      %p334 = scmp.eq.s32.totalorder %s30, 0
      %p335 = por %p333, %p334
      %p336 = scmp.le.s32.totalorder 1, %s24
      %p337 = scmp.lt.s32.totalorder %s24, 3
      %p338 = pnand %p336, %p337
      %p339 = pneg %p338
      // Predicated region
      $region9: #{tpu_custom_call.1} parent=5 // pred_check
        _
      $region10: #{tpu_custom_call.1} parent=5 // pred_check_branch
        %341 = sbr.rel (%p338) target = $region12
      $region11: #{tpu_custom_call.1} parent=5 // pred_region
        %s342 = ssub.s32 %s24, 1
        // Predicated region
        $region13: #{tpu_custom_call.1} parent=11 // pred_check
          %p343 = pneg %p71
        $region14: #{tpu_custom_call.1} parent=11 // pred_check_branch
          %345 = sbr.rel (%p343) target = $region16
        $region15: #{tpu_custom_call.1} parent=11 // pred_region
          _
        $region16: #{tpu_custom_call.1} parent=11 // pred_fallthru
          _
        // Predicated region
        $region17: #{tpu_custom_call.1} parent=11 // pred_check
          %p346 = pneg %p92
        $region18: #{tpu_custom_call.1} parent=11 // pred_check_branch
          %348 = sbr.rel (%p346) target = $region20
        $region19: #{tpu_custom_call.1} parent=11 // pred_region
          _
        $region20: #{tpu_custom_call.1} parent=11 // pred_fallthru
          _
        // Predicated region
        $region21: #{tpu_custom_call.1} parent=11 // pred_check
          %p349 = pneg %p113
        $region22: #{tpu_custom_call.1} parent=11 // pred_check_branch
          %351 = sbr.rel (%p349) target = $region24
        $region23: #{tpu_custom_call.1} parent=11 // pred_region
          _
        $region24: #{tpu_custom_call.1} parent=11 // pred_fallthru
          _
        // Predicated region
        $region25: #{tpu_custom_call.1} parent=11 // pred_check
          %p352 = pneg %p134
        $region26: #{tpu_custom_call.1} parent=11 // pred_check_branch
          %354 = sbr.rel (%p352) target = $region28
        $region27: #{tpu_custom_call.1} parent=11 // pred_region
          %356 = vsyncadd [#allocation3], 0
          %s358 = sshll.u32 %s4, 4
          %s359 = int_to_ptr.hbm [resolvable:$true] %s358
          %s360 = sshll.u32 [#allocation2], 4
          %s361 = int_to_ptr.vmem [resolvable:$true] %s360
          %363 = dma.hbm_to_vmem [thread:$0]  %s359, 64, %s361, [#allocation3]
        $region28: #{tpu_custom_call.1} parent=11 // pred_fallthru
          _
        // Predicated region
        $region29: #{tpu_custom_call.1} parent=11 // pred_check
          %p364 = pneg %p155
        $region30: #{tpu_custom_call.1} parent=11 // pred_check_branch
          %366 = sbr.rel (%p364) target = $region32
        $region31: #{tpu_custom_call.1} parent=11 // pred_region
          %368 = vsyncadd [#allocation6], 0
          %s370 = sshll.u32 %s5, 4
          %s371 = int_to_ptr.hbm [resolvable:$true] %s370
          %s372 = sshll.u32 [#allocation5], 4
          %s373 = int_to_ptr.vmem [resolvable:$true] %s372
          %375 = dma.hbm_to_vmem [thread:$0]  %s371, 16, %s373, [#allocation6]
        $region32: #{tpu_custom_call.1} parent=11 // pred_fallthru
          _
        // Predicated region
        $region33: #{tpu_custom_call.1} parent=11 // pred_check
          %p376 = pneg %p176
        $region34: #{tpu_custom_call.1} parent=11 // pred_check_branch
          %378 = sbr.rel (%p376) target = $region36
        $region35: #{tpu_custom_call.1} parent=11 // pred_region
          _
        $region36: #{tpu_custom_call.1} parent=11 // pred_fallthru
          _
        // Predicated region
        $region37: #{tpu_custom_call.1} parent=11 // pred_check
          %p379 = pneg %p197
        $region38: #{tpu_custom_call.1} parent=11 // pred_check_branch
          %381 = sbr.rel (%p379) target = $region40
        $region39: #{tpu_custom_call.1} parent=11 // pred_region
          _
        $region40: #{tpu_custom_call.1} parent=11 // pred_fallthru
          _
        // Predicated region
        $region41: #{tpu_custom_call.1} parent=11 // pred_check
          %p382 = pneg %p218
        $region42: #{tpu_custom_call.1} parent=11 // pred_check_branch
          %384 = sbr.rel (%p382) target = $region44
        $region43: #{tpu_custom_call.1} parent=11 // pred_region
          _
        $region44: #{tpu_custom_call.1} parent=11 // pred_fallthru
          _
        // Predicated region
        $region45: #{tpu_custom_call.1} parent=11 // pred_check
          %p385 = pneg %p239
        $region46: #{tpu_custom_call.1} parent=11 // pred_check_branch
          %387 = sbr.rel (%p385) target = $region48
        $region47: #{tpu_custom_call.1} parent=11 // pred_region
          _
        $region48: #{tpu_custom_call.1} parent=11 // pred_fallthru
          _
        // Predicated region
        $region49: #{tpu_custom_call.1} parent=11 // pred_check
          %p388 = pneg %p260
        $region50: #{tpu_custom_call.1} parent=11 // pred_check_branch
          %390 = sbr.rel (%p388) target = $region52
        $region51: #{tpu_custom_call.1} parent=11 // pred_region
          _
        $region52: #{tpu_custom_call.1} parent=11 // pred_fallthru
          _
        // Predicated region
        $region53: #{tpu_custom_call.1} parent=11 // pred_check
          %p391 = pneg %p281
        $region54: #{tpu_custom_call.1} parent=11 // pred_check_branch
          %393 = sbr.rel (%p391) target = $region56
        $region55: #{tpu_custom_call.1} parent=11 // pred_region
          _
        $region56: #{tpu_custom_call.1} parent=11 // pred_fallthru
          _
        // Predicated region
        $region57: #{tpu_custom_call.1} parent=11 // pred_check
          %p394 = pneg %p302
        $region58: #{tpu_custom_call.1} parent=11 // pred_check_branch
          %396 = sbr.rel (%p394) target = $region60
        $region59: #{tpu_custom_call.1} parent=11 // pred_region
          _
        $region60: #{tpu_custom_call.1} parent=11 // pred_fallthru
          _
      $region12: #{tpu_custom_call.1} parent=5 // pred_fallthru
        _
      %p397 = scmp.lt.s32.totalorder %s24, 2
      // Predicated region
      $region61: #{tpu_custom_call.1} parent=5 // pred_check
        %p398 = pneg %p397
      $region62: #{tpu_custom_call.1} parent=5 // pred_check_branch
        %400 = sbr.rel (%p398) target = $region64
      $region63: #{tpu_custom_call.1} parent=5 // pred_region
        // Predicated region
        $region65: #{tpu_custom_call.1} parent=63 // pred_check
          %p401 = pneg %p44
        $region66: #{tpu_custom_call.1} parent=63 // pred_check_branch
          %403 = sbr.rel (%p401) target = $region68
        $region67: #{tpu_custom_call.1} parent=63 // pred_region
          %p404 = scmp.lt.s32.totalorder %s24, 1
          %s405 = scalar_select %p404, %s24, 1
          %s406 = smul.addr %s405, 2
          %s407 = smul.addr %s406, 8
          %s408 = scalar_lea.vmem %s0, %s407
        $region68: #{tpu_custom_call.1} parent=63 // pred_fallthru
          _
      $region64: #{tpu_custom_call.1} parent=5 // pred_fallthru
        _
      %p409 = scmp.le.s32.totalorder 1, %s24
      %p410 = scmp.lt.s32.totalorder %s24, 3
      %p411 = pnand %p409, %p410
      %p412 = pneg %p411
      // Predicated region
      $region69: #{tpu_custom_call.1} parent=5 // pred_check
        _
      $region70: #{tpu_custom_call.1} parent=5 // pred_check_branch
        %414 = sbr.rel (%p411) target = $region72
      $region71: #{tpu_custom_call.1} parent=5 // pred_region
        %s415 = ssub.s32 %s24, 1
        // Predicated region
        $region73: #{tpu_custom_call.1} parent=71 // pred_check
          %p416 = pneg %p134
        $region74: #{tpu_custom_call.1} parent=71 // pred_check_branch
          %418 = sbr.rel (%p416) target = $region76
        $region75: #{tpu_custom_call.1} parent=71 // pred_region
          %420 = dma.done [#allocation3], 64
        $region76: #{tpu_custom_call.1} parent=71 // pred_fallthru
          _
        // Predicated region
        $region77: #{tpu_custom_call.1} parent=71 // pred_check
          %p421 = pneg %p155
        $region78: #{tpu_custom_call.1} parent=71 // pred_check_branch
          %423 = sbr.rel (%p421) target = $region80
        $region79: #{tpu_custom_call.1} parent=71 // pred_region
          %425 = dma.done [#allocation6], 16
        $region80: #{tpu_custom_call.1} parent=71 // pred_fallthru
          _
        %p426 = scmp.lt.s32.totalorder %s29, 1
        %s427 = scalar_select %p426, %s29, 1
        %s428 = smul.addr %s427, 2
        %s429 = smul.addr %s428, 8
        %s430 = scalar_lea.vmem %s0, %s429
        %p431 = pneg %p50
        %p432 = pneg %p47
        %p433 = pneg %p71
        %p434 = pneg %p68
        %p435 = pneg %p92
        %p436 = pneg %p89
        %p437 = pneg %p113
        %p438 = pneg %p110
        %p439 = pneg %p134
        %p440 = pneg %p131
        %p441 = pneg %p155
        %p442 = pneg %p152
        %p443 = pneg %p176
        %p444 = pneg %p173
        %p445 = pneg %p197
        %p446 = pneg %p194
        %p447 = pneg %p218
        %p448 = pneg %p215
        %p449 = pneg %p239
        %p450 = pneg %p236
        %p451 = pneg %p260
        %p452 = pneg %p257
        %p453 = pneg %p281
        %p454 = pneg %p278
        %p455 = pneg %p302
        %p456 = pneg %p299
        %p457 = pneg %p328
        %p458 = pneg %p325
        %s459 = sand.u32 %s315, 1
        %s460 = scalar_lea.sflag [#allocation4], %s459
        %s461 = sand.u32 %s315, 1
        %s462 = smul.addr %s461, 16
        %s463 = scalar_lea.vmem [#allocation7], %s462
        %p464 = scmp.lt.s32.totalorder %s29, 1
        %s465 = scalar_select %p464, %s29, 1
        %s466 = smul.addr %s465, 2
        %s467 = smul.addr %s466, 8
        %s468 = scalar_lea.vmem %s0, %s467
        %v470 = vld [vmem:[%s468] sm:$0xff]
        %v471 = vld [vmem:[%s468 + $0x8] sm:$0xff]
        %v472 = vld [vmem:[%s1] sm:$0x1]
        %v473 = vld [vmem:[%s2] sm:$0x1]
        %vm474 = vcmask 523264
        %v475 = vsel %vm474, %v470, 0.0
        %476 = vadd.xlane.f32.xlu0 %v475
        %v477 = vpop.xlane.xlu0 %476
        %v478 = vsel %vm474, %v471, 0.0
        %479 = vadd.xlane.f32.xlu0 %v478
        %v480 = vpop.xlane.xlu0 %479
        %v481 = vrcp.pop 64.0
        %v482 = vmul.f32 64.0, %v481
        %v483 = vsub.f32 1.0, %v482
        %v484 = vmul.f32 %v481, %v483
        %v485 = vadd.f32 %v481, %v484
        %vm486 = vweird.f32 %v481
        %v487 = vsel %vm486, %v481, %v485
        %v488 = vmul.f32 %v477, %v487
        %v489 = vmul.f32 %v480, %v487
        %v490 = vsub.f32 %v470, %v488
        %v491 = vsub.f32 %v471, %v489
        %v492 = vmul.f32 %v490, %v490
        %v493 = vmul.f32 %v491, %v491
        %v494 = vsel %vm474, %v492, 0.0
        %495 = vadd.xlane.f32.xlu0 %v494
        %v496 = vpop.xlane.xlu0 %495
        %v497 = vsel %vm474, %v493, 0.0
        %498 = vadd.xlane.f32.xlu0 %v497
        %v499 = vpop.xlane.xlu0 %498
        %v500 = vmul.f32 %v496, %v487
        %v501 = vmul.f32 %v499, %v487
        %v502 = vadd.f32 %v500, 1e-05
        %v503 = vadd.f32 %v501, 1e-05
        %v504 = vrsqrt.pop %v502
        %v505 = vmul.f32 %v504, %v502
        %v506 = vmul.f32 %v505, %v504
        %v507 = vmul.f32 0.5, %v506
        %v508 = vsub.f32 1.5, %v507
        %v509 = vmul.f32 %v504, %v508
        %vm510 = vweird.f32 %v502
        %vm511 = vweird.f32 %v504
        %vm512 = vmor %vm510, %vm511
        %v513 = vsel %vm512, %v504, %v509
        %v514 = vrsqrt.pop %v503
        %v515 = vmul.f32 %v514, %v503
        %v516 = vmul.f32 %v515, %v514
        %v517 = vmul.f32 0.5, %v516
        %v518 = vsub.f32 1.5, %v517
        %v519 = vmul.f32 %v514, %v518
        %vm520 = vweird.f32 %v503
        %vm521 = vweird.f32 %v514
        %vm522 = vmor %vm520, %vm521
        %v523 = vsel %vm522, %v514, %v519
        %v524 = vmul.f32 %v490, %v513
        %v525 = vmul.f32 %v491, %v523
        %v527 = vperm.slane %v472, 0
        %v529 = vmul.f32 %v524, %v527
        %v530 = vmul.f32 %v525, %v527
        %v532 = vperm.slane %v473, 0
        %v534 = vadd.f32 %v529, %v532
        %v535 = vadd.f32 %v530, %v532
        %v536 = vpack.c.bf16 %v535, %v534
        %v537 = vld [vmem:[%s3] sm:$0xff]
        %v538 = vld [vmem:[%s3 + $0x8] sm:$0xff]
        %v539 = vld [vmem:[%s3 + $0x10] sm:$0xff]
        %v540 = vld [vmem:[%s3 + $0x18] sm:$0xff]
        %v541 = vld [vmem:[%s3 + $0x20] sm:$0xff]
        %v542 = vld [vmem:[%s3 + $0x28] sm:$0xff]
        %v543 = vld [vmem:[%s3 + $0x30] sm:$0xff]
        %v544 = vld [vmem:[%s3 + $0x38] sm:$0xff]
        %v545 = vld [vmem:[%s3 + $0x40] sm:$0xff]
        %v546 = vld [vmem:[%s3 + $0x48] sm:$0xff]
        %v547 = vld [vmem:[%s3 + $0x50] sm:$0xff]
        %v548 = vld [vmem:[%s3 + $0x58] sm:$0xff]
        %v549 = vld [vmem:[%s3 + $0x60] sm:$0xff]
        %v550 = vld [vmem:[%s3 + $0x68] sm:$0xff]
        %v551 = vld [vmem:[%s3 + $0x70] sm:$0xff]
        %v552 = vld [vmem:[%s3 + $0x78] sm:$0xff]
        %v553 = vld [vmem:[#allocation2] sm:$0xf]
        %v555 = vperm.slane %v553, 0
        %v556 = vperm.slane %v553, 1
        %v557 = vperm.slane %v553, 2
        %v558 = vperm.slane %v553, 3
        %v579 = vunpack.c.l.b16 %v537
        %v580 = vunpack.c.h.b16 %v537
        %v581 = vunpack.c.l.b16 %v538
        %v582 = vunpack.c.h.b16 %v538
        %v583 = vunpack.c.l.b16 %v539
        %v584 = vunpack.c.h.b16 %v539
        %v585 = vunpack.c.l.b16 %v540
        %v586 = vunpack.c.h.b16 %v540
        %v587 = vunpack.c.l.b16 %v541
        %v588 = vunpack.c.h.b16 %v541
        %v589 = vunpack.c.l.b16 %v542
        %v590 = vunpack.c.h.b16 %v542
        %v591 = vunpack.c.l.b16 %v543
        %v592 = vunpack.c.h.b16 %v543
        %v593 = vunpack.c.l.b16 %v544
        %v594 = vunpack.c.h.b16 %v544
        %v595 = vunpack.c.l.b16 %v545
        %v596 = vunpack.c.h.b16 %v545
        %v597 = vunpack.c.l.b16 %v546
        %v598 = vunpack.c.h.b16 %v546
        %v599 = vunpack.c.l.b16 %v547
        %v600 = vunpack.c.h.b16 %v547
        %v601 = vunpack.c.l.b16 %v548
        %v602 = vunpack.c.h.b16 %v548
        %v603 = vunpack.c.l.b16 %v549
        %v604 = vunpack.c.h.b16 %v549
        %v605 = vunpack.c.l.b16 %v550
        %v606 = vunpack.c.h.b16 %v550
        %v607 = vunpack.c.l.b16 %v551
        %v608 = vunpack.c.h.b16 %v551
        %v609 = vunpack.c.l.b16 %v552
        %v610 = vunpack.c.h.b16 %v552
        %v611 = vpack.c.b16 %v583, %v579
        %v612 = vpack.c.b16 %v584, %v580
        %v613 = vpack.c.b16 %v585, %v581
        %v614 = vpack.c.b16 %v586, %v582
        %v615 = vpack.c.b16 %v591, %v587
        %v616 = vpack.c.b16 %v592, %v588
        %v617 = vpack.c.b16 %v593, %v589
        %v618 = vpack.c.b16 %v594, %v590
        %v619 = vpack.c.b16 %v599, %v595
        %v620 = vpack.c.b16 %v600, %v596
        %v621 = vpack.c.b16 %v601, %v597
        %v622 = vpack.c.b16 %v602, %v598
        %v623 = vpack.c.b16 %v607, %v603
        %v624 = vpack.c.b16 %v608, %v604
        %v625 = vpack.c.b16 %v609, %v605
        %v626 = vpack.c.b16 %v610, %v606
        %v644 = vsel %vm474, %v536, 0
        %646 = vmatpush.bf16.msra.mxu0 0
        %647 = vmatpush.bf16.msra.mxu0 0
        %648 = vmatpush.bf16.msra.mxu0 0
        %649 = vmatpush.bf16.msra.mxu0 0
        %650 = vmatpush.bf16.msra.mxu0 %v623
        %651 = vmatpush.bf16.msra.mxu0 %v619
        %652 = vmatpush.bf16.msra.mxu0 %v615
        %653 = vmatpush.bf16.msra.mxu0 %v611
        %654 = vmatmul.bf16.gmra.mxu0 %v644
        %v655 = vpop.f32.mrf.mxu0
        %v656 = vadd.f32 %v555, %v655
        %v657 = vpop.f32.mrf.mxu0
        %v658 = vadd.f32 %v555, %v657
        %659 = vdwg.mxu0
        %660 = vmatpush.bf16.msra.mxu0 0
        %661 = vmatpush.bf16.msra.mxu0 0
        %662 = vmatpush.bf16.msra.mxu0 0
        %663 = vmatpush.bf16.msra.mxu0 0
        %664 = vmatpush.bf16.msra.mxu0 %v624
        %665 = vmatpush.bf16.msra.mxu0 %v620
        %666 = vmatpush.bf16.msra.mxu0 %v616
        %667 = vmatpush.bf16.msra.mxu0 %v612
        %668 = vmatmul.bf16.gmra.mxu0 %v644
        %v669 = vpop.f32.mrf.mxu0
        %v670 = vadd.f32 %v556, %v669
        %v671 = vpop.f32.mrf.mxu0
        %v672 = vadd.f32 %v556, %v671
        %673 = vdwg.mxu0
        %674 = vmatpush.bf16.msra.mxu0 0
        %675 = vmatpush.bf16.msra.mxu0 0
        %676 = vmatpush.bf16.msra.mxu0 0
        %677 = vmatpush.bf16.msra.mxu0 0
        %678 = vmatpush.bf16.msra.mxu0 %v625
        %679 = vmatpush.bf16.msra.mxu0 %v621
        %680 = vmatpush.bf16.msra.mxu0 %v617
        %681 = vmatpush.bf16.msra.mxu0 %v613
        %682 = vmatmul.bf16.gmra.mxu0 %v644
        %v683 = vpop.f32.mrf.mxu0
        %v684 = vadd.f32 %v557, %v683
        %v685 = vpop.f32.mrf.mxu0
        %v686 = vadd.f32 %v557, %v685
        %687 = vdwg.mxu0
        %688 = vmatpush.bf16.msra.mxu0 0
        %689 = vmatpush.bf16.msra.mxu0 0
        %690 = vmatpush.bf16.msra.mxu0 0
        %691 = vmatpush.bf16.msra.mxu0 0
        %692 = vmatpush.bf16.msra.mxu0 %v626
        %693 = vmatpush.bf16.msra.mxu0 %v622
        %694 = vmatpush.bf16.msra.mxu0 %v618
        %695 = vmatpush.bf16.msra.mxu0 %v614
        %696 = vmatmul.bf16.gmra.mxu0 %v644
        %v697 = vpop.f32.mrf.mxu0
        %v698 = vadd.f32 %v558, %v697
        %v699 = vpop.f32.mrf.mxu0
        %v700 = vadd.f32 %v558, %v699
        %701 = vdwg.mxu0
        %v702 = vld [vmem:[#allocation5] sm:$0x1]
        %v703 = vld [vmem:[%s6] sm:$0x1]
        %v704 = vld [vmem:[%s7] sm:$0x1]
        %v705 = vld [vmem:[%s8] sm:$0x1]
        %vm706 = vcmask 130048
        %v707 = vsel %vm706, %v684, 0.0
        %708 = vadd.xlane.f32.xlu0 %v707
        %v709 = vpop.xlane.xlu0 %708
        %v710 = vsel %vm706, %v686, 0.0
        %711 = vadd.xlane.f32.xlu0 %v710
        %v712 = vpop.xlane.xlu0 %711
        %v713 = vrcp.pop 16.0
        %v714 = vmul.f32 16.0, %v713
        %v715 = vsub.f32 1.0, %v714
        %v716 = vmul.f32 %v713, %v715
        %v717 = vadd.f32 %v713, %v716
        %vm718 = vweird.f32 %v713
        %v719 = vsel %vm718, %v713, %v717
        %v720 = vmul.f32 %v709, %v719
        %v721 = vmul.f32 %v712, %v719
        %v722 = vsub.f32 %v684, %v720
        %v723 = vsub.f32 %v686, %v721
        %v724 = vmul.f32 %v722, %v722
        %v725 = vmul.f32 %v723, %v723
        %v726 = vsel %vm706, %v724, 0.0
        %727 = vadd.xlane.f32.xlu0 %v726
        %v728 = vpop.xlane.xlu0 %727
        %v729 = vsel %vm706, %v725, 0.0
        %730 = vadd.xlane.f32.xlu0 %v729
        %v731 = vpop.xlane.xlu0 %730
        %v732 = vmul.f32 %v728, %v719
        %v733 = vmul.f32 %v731, %v719
        %v734 = vadd.f32 %v732, 1e-05
        %v735 = vadd.f32 %v733, 1e-05
        %v736 = vrsqrt.pop %v734
        %v737 = vmul.f32 %v736, %v734
        %v738 = vmul.f32 %v737, %v736
        %v739 = vmul.f32 0.5, %v738
        %v740 = vsub.f32 1.5, %v739
        %v741 = vmul.f32 %v736, %v740
        %vm742 = vweird.f32 %v734
        %vm743 = vweird.f32 %v736
        %vm744 = vmor %vm742, %vm743
        %v745 = vsel %vm744, %v736, %v741
        %v746 = vrsqrt.pop %v735
        %v747 = vmul.f32 %v746, %v735
        %v748 = vmul.f32 %v747, %v746
        %v749 = vmul.f32 0.5, %v748
        %v750 = vsub.f32 1.5, %v749
        %v751 = vmul.f32 %v746, %v750
        %vm752 = vweird.f32 %v735
        %vm753 = vweird.f32 %v746
        %vm754 = vmor %vm752, %vm753
        %v755 = vsel %vm754, %v746, %v751
        %v756 = vmul.f32 %v722, %v745
        %v757 = vmul.f32 %v723, %v755
        %v759 = vperm.slane %v702, 0
        %v761 = vmul.f32 %v756, %v759
        %v762 = vmul.f32 %v757, %v759
        %v764 = vperm.slane %v703, 0
        %v766 = vadd.f32 %v761, %v764
        %v767 = vadd.f32 %v762, %v764
        %v768 = vmul.f32 %v766, 0.25
        %v769 = vmul.f32 %v767, 0.25
        %772 = vrot.lane.b32.xlu0 %v684, 64
        %v773 = vpop.permute.xlu0 %772
        %774 = vrot.lane.b32.xlu0 %v686, 64
        %v775 = vpop.permute.xlu0 %774
        %v778 = vsel %vm706, %v773, 0.0
        %779 = vadd.xlane.f32.xlu0 %v778
        %v780 = vpop.xlane.xlu0 %779
        %v781 = vsel %vm706, %v775, 0.0
        %782 = vadd.xlane.f32.xlu0 %v781
        %v783 = vpop.xlane.xlu0 %782
        %v784 = vmul.f32 %v780, %v719
        %v785 = vmul.f32 %v783, %v719
        %v786 = vsub.f32 %v684, %v784
        %v787 = vsub.f32 %v686, %v785
        %v788 = vmul.f32 %v786, %v786
        %v789 = vmul.f32 %v787, %v787
        %792 = vrot.lane.b32.xlu0 %v788, 64
        %v793 = vpop.permute.xlu0 %792
        %794 = vrot.lane.b32.xlu0 %v789, 64
        %v795 = vpop.permute.xlu0 %794
        %v798 = vsel %vm706, %v793, 0.0
        %799 = vadd.xlane.f32.xlu0 %v798
        %v800 = vpop.xlane.xlu0 %799
        %v801 = vsel %vm706, %v795, 0.0
        %802 = vadd.xlane.f32.xlu0 %v801
        %v803 = vpop.xlane.xlu0 %802
        %v804 = vmul.f32 %v800, %v719
        %v805 = vmul.f32 %v803, %v719
        %v806 = vadd.f32 %v804, 1e-05
        %v807 = vadd.f32 %v805, 1e-05
        %v808 = vrsqrt.pop %v806
        %v809 = vmul.f32 %v808, %v806
        %v810 = vmul.f32 %v809, %v808
        %v811 = vmul.f32 0.5, %v810
        %v812 = vsub.f32 1.5, %v811
        %v813 = vmul.f32 %v808, %v812
        %vm814 = vweird.f32 %v806
        %vm815 = vweird.f32 %v808
        %vm816 = vmor %vm814, %vm815
        %v817 = vsel %vm816, %v808, %v813
        %v818 = vrsqrt.pop %v807
        %v819 = vmul.f32 %v818, %v807
        %v820 = vmul.f32 %v819, %v818
        %v821 = vmul.f32 0.5, %v820
        %v822 = vsub.f32 1.5, %v821
        %v823 = vmul.f32 %v818, %v822
        %vm824 = vweird.f32 %v807
        %vm825 = vweird.f32 %v818
        %vm826 = vmor %vm824, %vm825
        %v827 = vsel %vm826, %v818, %v823
        %v828 = vmul.f32 %v786, %v817
        %v829 = vmul.f32 %v787, %v827
        %v831 = vperm.slane %v704, 0
        %832 = vrot.lane.b32.xlu0 %v831, 64
        %v833 = vpop.permute.xlu0 %832
        %v835 = vmul.f32 %v828, %v833
        %v836 = vmul.f32 %v829, %v833
        %v838 = vperm.slane %v705, 0
        %839 = vrot.lane.b32.xlu0 %v838, 64
        %v840 = vpop.permute.xlu0 %839
        %v842 = vadd.f32 %v835, %v840
        %v843 = vadd.f32 %v836, %v840
        %v844 = vpack.c.bf16 %v769, %v768
        %v845 = vpack.c.bf16 %v843, %v842
        %847 = vrot.lane.b32.xlu0 %v845, 64
        %v848 = vpop.permute.xlu0 %847
        %v850 = vsel %vm706, %v844, 0
        %v853 = vsel %vm706, %v848, 0
        %855 = vmatpush.bf16.xpose.msra.mxu0 0
        %856 = vmatpush.bf16.xpose.msra.mxu0 0
        %857 = vmatpush.bf16.xpose.msra.mxu0 0
        %858 = vmatpush.bf16.xpose.msra.mxu0 0
        %859 = vmatpush.bf16.xpose.msra.mxu0 0
        %860 = vmatpush.bf16.xpose.msra.mxu0 0
        %861 = vmatpush.bf16.xpose.msra.mxu0 0
        %862 = vmatpush.bf16.xpose.msra.mxu0 %v853
        %863 = vmatmul.bf16.gmra.mxu0 %v850
        %v864 = vpop.f32.mrf.mxu0
        %v865 = vadd.f32 0.0, %v864
        %v866 = vpop.f32.mrf.mxu0
        %v867 = vadd.f32 0.0, %v866
        %868 = vdwg.mxu0
        %v869 = vsel %vm706, %v865, -inf
        %870 = vmax.xlane.f32.xlu0 %v869
        %v871 = vpop.xlane.xlu0 %870
        %v872 = vsel %vm706, %v867, -inf
        %873 = vmax.xlane.f32.xlu0 %v872
        %v874 = vpop.xlane.xlu0 %873
        %v875 = vsub.f32 %v865, %v871
        %v876 = vsub.f32 %v867, %v874
        %v877 = vmul.f32 %v875, 1.442695
        %v878 = vpow.pop %v877
        %v879 = vmul.f32 %v876, 1.442695
        %v880 = vpow.pop %v879
        %v881 = vsel %vm706, %v878, 0.0
        %882 = vadd.xlane.f32.xlu0 %v881
        %v883 = vpop.xlane.xlu0 %882
        %v884 = vsel %vm706, %v880, 0.0
        %885 = vadd.xlane.f32.xlu0 %v884
        %v886 = vpop.xlane.xlu0 %885
        %v887 = vpack.c.bf16 %v880, %v878
        %v888 = vpack.c.bf16 %v700, %v698
        %v890 = vsel %vm706, %v887, 0
        %892 = vmatpush.bf16.msra.mxu0 0
        %893 = vmatpush.bf16.msra.mxu0 0
        %894 = vmatpush.bf16.msra.mxu0 0
        %895 = vmatpush.bf16.msra.mxu0 0
        %896 = vmatpush.bf16.msra.mxu0 0
        %897 = vmatpush.bf16.msra.mxu0 0
        %898 = vmatpush.bf16.msra.mxu0 0
        %899 = vmatpush.bf16.msra.mxu0 %v888
        %900 = vmatmul.bf16.gmra.mxu0 %v890
        %v901 = vpop.f32.mrf.mxu0
        %v902 = vadd.f32 0.0, %v901
        %v903 = vpop.f32.mrf.mxu0
        %v904 = vadd.f32 0.0, %v903
        %905 = vdwg.mxu0
        %v906 = vrcp.pop %v883
        %v907 = vrcp.pop %v886
        %v908 = vmul.f32 %v902, %v906
        %v909 = vmul.f32 %v904, %v907
        %v910 = vpack.c.bf16 %v909, %v908
        %v911 = vld [vmem:[%s9] sm:$0xf]
        %v912 = vld [vmem:[%s9 + $0x4] sm:$0xf]
        %913 = vrot.lane.b32.xlu0 %v684, 112
        %v914 = vpop.permute.xlu0 %913
        %915 = vrot.lane.b32.xlu0 %v686, 112
        %v916 = vpop.permute.xlu0 %915
        %v919 = vsel %vm706, %v914, 0.0
        %920 = vadd.xlane.f32.xlu0 %v919
        %v921 = vpop.xlane.xlu0 %920
        %v922 = vsel %vm706, %v916, 0.0
        %923 = vadd.xlane.f32.xlu0 %v922
        %v924 = vpop.xlane.xlu0 %923
        %v925 = vmul.f32 %v921, %v719
        %v926 = vmul.f32 %v924, %v719
        %v927 = vsub.f32 %v684, %v925
        %v928 = vsub.f32 %v686, %v926
        %v929 = vmul.f32 %v927, %v927
        %v930 = vmul.f32 %v928, %v928
        %933 = vrot.lane.b32.xlu0 %v929, 112
        %v934 = vpop.permute.xlu0 %933
        %935 = vrot.lane.b32.xlu0 %v930, 112
        %v936 = vpop.permute.xlu0 %935
        %v939 = vsel %vm706, %v934, 0.0
        %940 = vadd.xlane.f32.xlu0 %v939
        %v941 = vpop.xlane.xlu0 %940
        %v942 = vsel %vm706, %v936, 0.0
        %943 = vadd.xlane.f32.xlu0 %v942
        %v944 = vpop.xlane.xlu0 %943
        %v945 = vmul.f32 %v941, %v719
        %v946 = vmul.f32 %v944, %v719
        %v947 = vadd.f32 %v945, 1e-05
        %v948 = vadd.f32 %v946, 1e-05
        %v949 = vrsqrt.pop %v947
        %v950 = vmul.f32 %v949, %v947
        %v951 = vmul.f32 %v950, %v949
        %v952 = vmul.f32 0.5, %v951
        %v953 = vsub.f32 1.5, %v952
        %v954 = vmul.f32 %v949, %v953
        %vm955 = vweird.f32 %v947
        %vm956 = vweird.f32 %v949
        %vm957 = vmor %vm955, %vm956
        %v958 = vsel %vm957, %v949, %v954
        %v959 = vrsqrt.pop %v948
        %v960 = vmul.f32 %v959, %v948
        %v961 = vmul.f32 %v960, %v959
        %v962 = vmul.f32 0.5, %v961
        %v963 = vsub.f32 1.5, %v962
        %v964 = vmul.f32 %v959, %v963
        %vm965 = vweird.f32 %v948
        %vm966 = vweird.f32 %v959
        %vm967 = vmor %vm965, %vm966
        %v968 = vsel %vm967, %v959, %v964
        %v969 = vmul.f32 %v927, %v958
        %v970 = vmul.f32 %v928, %v968
        %971 = vrot.lane.b32.xlu0 %v759, 16
        %v972 = vpop.permute.xlu0 %971
        %v974 = vmul.f32 %v969, %v972
        %v975 = vmul.f32 %v970, %v972
        %976 = vrot.lane.b32.xlu0 %v764, 16
        %v977 = vpop.permute.xlu0 %976
        %v979 = vadd.f32 %v974, %v977
        %v980 = vadd.f32 %v975, %v977
        %v981 = vmul.f32 %v979, 0.25
        %v982 = vmul.f32 %v980, 0.25
        %983 = vrot.lane.b32.xlu0 %v684, 48
        %v984 = vpop.permute.xlu0 %983
        %985 = vrot.lane.b32.xlu0 %v686, 48
        %v986 = vpop.permute.xlu0 %985
        %v989 = vsel %vm706, %v984, 0.0
        %990 = vadd.xlane.f32.xlu0 %v989
        %v991 = vpop.xlane.xlu0 %990
        %v992 = vsel %vm706, %v986, 0.0
        %993 = vadd.xlane.f32.xlu0 %v992
        %v994 = vpop.xlane.xlu0 %993
        %v995 = vmul.f32 %v991, %v719
        %v996 = vmul.f32 %v994, %v719
        %v997 = vsub.f32 %v684, %v995
        %v998 = vsub.f32 %v686, %v996
        %v999 = vmul.f32 %v997, %v997
        %v1000 = vmul.f32 %v998, %v998
        %1003 = vrot.lane.b32.xlu0 %v999, 48
        %v1004 = vpop.permute.xlu0 %1003
        %1005 = vrot.lane.b32.xlu0 %v1000, 48
        %v1006 = vpop.permute.xlu0 %1005
        %v1009 = vsel %vm706, %v1004, 0.0
        %1010 = vadd.xlane.f32.xlu0 %v1009
        %v1011 = vpop.xlane.xlu0 %1010
        %v1012 = vsel %vm706, %v1006, 0.0
        %1013 = vadd.xlane.f32.xlu0 %v1012
        %v1014 = vpop.xlane.xlu0 %1013
        %v1015 = vmul.f32 %v1011, %v719
        %v1016 = vmul.f32 %v1014, %v719
        %v1017 = vadd.f32 %v1015, 1e-05
        %v1018 = vadd.f32 %v1016, 1e-05
        %v1019 = vrsqrt.pop %v1017
        %v1020 = vmul.f32 %v1019, %v1017
        %v1021 = vmul.f32 %v1020, %v1019
        %v1022 = vmul.f32 0.5, %v1021
        %v1023 = vsub.f32 1.5, %v1022
        %v1024 = vmul.f32 %v1019, %v1023
        %vm1025 = vweird.f32 %v1017
        %vm1026 = vweird.f32 %v1019
        %vm1027 = vmor %vm1025, %vm1026
        %v1028 = vsel %vm1027, %v1019, %v1024
        %v1029 = vrsqrt.pop %v1018
        %v1030 = vmul.f32 %v1029, %v1018
        %v1031 = vmul.f32 %v1030, %v1029
        %v1032 = vmul.f32 0.5, %v1031
        %v1033 = vsub.f32 1.5, %v1032
        %v1034 = vmul.f32 %v1029, %v1033
        %vm1035 = vweird.f32 %v1018
        %vm1036 = vweird.f32 %v1029
        %vm1037 = vmor %vm1035, %vm1036
        %v1038 = vsel %vm1037, %v1029, %v1034
        %v1039 = vmul.f32 %v997, %v1028
        %v1040 = vmul.f32 %v998, %v1038
        %1041 = vrot.lane.b32.xlu0 %v831, 80
        %v1042 = vpop.permute.xlu0 %1041
        %v1044 = vmul.f32 %v1039, %v1042
        %v1045 = vmul.f32 %v1040, %v1042
        %1046 = vrot.lane.b32.xlu0 %v838, 80
        %v1047 = vpop.permute.xlu0 %1046
        %v1049 = vadd.f32 %v1044, %v1047
        %v1050 = vadd.f32 %v1045, %v1047
        %v1051 = vpack.c.bf16 %v982, %v981
        %v1052 = vpack.c.bf16 %v1050, %v1049
        %1054 = vrot.lane.b32.xlu0 %v1051, 112
        %v1055 = vpop.permute.xlu0 %1054
        %1057 = vrot.lane.b32.xlu0 %v1052, 48
        %v1058 = vpop.permute.xlu0 %1057
        %v1060 = vsel %vm706, %v1055, 0
        %v1063 = vsel %vm706, %v1058, 0
        %1065 = vmatpush.bf16.xpose.msra.mxu0 0
        %1066 = vmatpush.bf16.xpose.msra.mxu0 0
        %1067 = vmatpush.bf16.xpose.msra.mxu0 0
        %1068 = vmatpush.bf16.xpose.msra.mxu0 0
        %1069 = vmatpush.bf16.xpose.msra.mxu0 0
        %1070 = vmatpush.bf16.xpose.msra.mxu0 0
        %1071 = vmatpush.bf16.xpose.msra.mxu0 0
        %1072 = vmatpush.bf16.xpose.msra.mxu0 %v1063
        %1073 = vmatmul.bf16.gmra.mxu0 %v1060
        %v1074 = vpop.f32.mrf.mxu0
        %v1075 = vadd.f32 0.0, %v1074
        %v1076 = vpop.f32.mrf.mxu0
        %v1077 = vadd.f32 0.0, %v1076
        %1078 = vdwg.mxu0
        %v1079 = vsel %vm706, %v1075, -inf
        %1080 = vmax.xlane.f32.xlu0 %v1079
        %v1081 = vpop.xlane.xlu0 %1080
        %v1082 = vsel %vm706, %v1077, -inf
        %1083 = vmax.xlane.f32.xlu0 %v1082
        %v1084 = vpop.xlane.xlu0 %1083
        %v1085 = vsub.f32 %v1075, %v1081
        %v1086 = vsub.f32 %v1077, %v1084
        %v1087 = vmul.f32 %v1085, 1.442695
        %v1088 = vpow.pop %v1087
        %v1089 = vmul.f32 %v1086, 1.442695
        %v1090 = vpow.pop %v1089
        %v1091 = vsel %vm706, %v1088, 0.0
        %1092 = vadd.xlane.f32.xlu0 %v1091
        %v1093 = vpop.xlane.xlu0 %1092
        %v1094 = vsel %vm706, %v1090, 0.0
        %1095 = vadd.xlane.f32.xlu0 %v1094
        %v1096 = vpop.xlane.xlu0 %1095
        %v1097 = vpack.c.bf16 %v1090, %v1088
        %1099 = vrot.lane.b32.xlu0 %v888, 112
        %v1100 = vpop.permute.xlu0 %1099
        %v1103 = vsel %vm706, %v1097, 0
        %1105 = vmatpush.bf16.msra.mxu0 0
        %1106 = vmatpush.bf16.msra.mxu0 0
        %1107 = vmatpush.bf16.msra.mxu0 0
        %1108 = vmatpush.bf16.msra.mxu0 0
        %1109 = vmatpush.bf16.msra.mxu0 0
        %1110 = vmatpush.bf16.msra.mxu0 0
        %1111 = vmatpush.bf16.msra.mxu0 0
        %1112 = vmatpush.bf16.msra.mxu0 %v1100
        %1113 = vmatmul.bf16.gmra.mxu0 %v1103
        %v1114 = vpop.f32.mrf.mxu0
        %v1115 = vadd.f32 0.0, %v1114
        %v1116 = vpop.f32.mrf.mxu0
        %v1117 = vadd.f32 0.0, %v1116
        %1118 = vdwg.mxu0
        %v1119 = vrcp.pop %v1093
        %v1120 = vrcp.pop %v1096
        %v1121 = vmul.f32 %v1115, %v1119
        %v1122 = vmul.f32 %v1117, %v1120
        %v1123 = vpack.c.bf16 %v1122, %v1121
        %v1124 = vld [vmem:[%s9 + $0x8] sm:$0xf]
        %v1125 = vld [vmem:[%s9 + $0xc] sm:$0xf]
        %v1128 = vunpack.c.l.b16 %v1124
        %v1129 = vunpack.c.l.b16 %v1125
        %v1130 = vpack.c.b16 %v1129, %v1128
        %v1133 = vsel %vm706, %v1123, 0
        %1135 = vmatpush.bf16.msra.mxu0 0
        %1136 = vmatpush.bf16.msra.mxu0 0
        %1137 = vmatpush.bf16.msra.mxu0 0
        %1138 = vmatpush.bf16.msra.mxu0 0
        %1139 = vmatpush.bf16.msra.mxu0 0
        %1140 = vmatpush.bf16.msra.mxu0 0
        %1141 = vmatpush.bf16.msra.mxu0 0
        %1142 = vmatpush.bf16.msra.mxu0 %v1130
        %1143 = vmatmul.bf16.gmra.mxu0 %v1133
        %v1144 = vpop.f32.mrf.mxu0
        %v1145 = vadd.f32 0.0, %v1144
        %v1146 = vpop.f32.mrf.mxu0
        %v1147 = vadd.f32 0.0, %v1146
        %1148 = vdwg.mxu0
        %v1151 = vunpack.c.l.b16 %v911
        %v1152 = vunpack.c.l.b16 %v912
        %v1153 = vpack.c.b16 %v1152, %v1151
        %v1156 = vsel %vm706, %v910, 0
        %1158 = vmatpush.bf16.msra.mxu0 0
        %1159 = vmatpush.bf16.msra.mxu0 0
        %1160 = vmatpush.bf16.msra.mxu0 0
        %1161 = vmatpush.bf16.msra.mxu0 0
        %1162 = vmatpush.bf16.msra.mxu0 0
        %1163 = vmatpush.bf16.msra.mxu0 0
        %1164 = vmatpush.bf16.msra.mxu0 0
        %1165 = vmatpush.bf16.msra.mxu0 %v1153
        %1166 = vmatmul.bf16.gmra.mxu0 %v1156
        %v1167 = vpop.f32.mrf.mxu0
        %v1168 = vadd.f32 %v1145, %v1167
        %v1169 = vpop.f32.mrf.mxu0
        %v1170 = vadd.f32 %v1147, %v1169
        %1171 = vdwg.mxu0
        %1172 = vrot.lane.b32.xlu0 %v684, 96
        %v1173 = vpop.permute.xlu0 %1172
        %1174 = vrot.lane.b32.xlu0 %v686, 96
        %v1175 = vpop.permute.xlu0 %1174
        %v1178 = vsel %vm706, %v1173, 0.0
        %1179 = vadd.xlane.f32.xlu0 %v1178
        %v1180 = vpop.xlane.xlu0 %1179
        %v1181 = vsel %vm706, %v1175, 0.0
        %1182 = vadd.xlane.f32.xlu0 %v1181
        %v1183 = vpop.xlane.xlu0 %1182
        %v1184 = vmul.f32 %v1180, %v719
        %v1185 = vmul.f32 %v1183, %v719
        %v1186 = vsub.f32 %v684, %v1184
        %v1187 = vsub.f32 %v686, %v1185
        %v1188 = vmul.f32 %v1186, %v1186
        %v1189 = vmul.f32 %v1187, %v1187
        %1192 = vrot.lane.b32.xlu0 %v1188, 96
        %v1193 = vpop.permute.xlu0 %1192
        %1194 = vrot.lane.b32.xlu0 %v1189, 96
        %v1195 = vpop.permute.xlu0 %1194
        %v1198 = vsel %vm706, %v1193, 0.0
        %1199 = vadd.xlane.f32.xlu0 %v1198
        %v1200 = vpop.xlane.xlu0 %1199
        %v1201 = vsel %vm706, %v1195, 0.0
        %1202 = vadd.xlane.f32.xlu0 %v1201
        %v1203 = vpop.xlane.xlu0 %1202
        %v1204 = vmul.f32 %v1200, %v719
        %v1205 = vmul.f32 %v1203, %v719
        %v1206 = vadd.f32 %v1204, 1e-05
        %v1207 = vadd.f32 %v1205, 1e-05
        %v1208 = vrsqrt.pop %v1206
        %v1209 = vmul.f32 %v1208, %v1206
        %v1210 = vmul.f32 %v1209, %v1208
        %v1211 = vmul.f32 0.5, %v1210
        %v1212 = vsub.f32 1.5, %v1211
        %v1213 = vmul.f32 %v1208, %v1212
        %vm1214 = vweird.f32 %v1206
        %vm1215 = vweird.f32 %v1208
        %vm1216 = vmor %vm1214, %vm1215
        %v1217 = vsel %vm1216, %v1208, %v1213
        %v1218 = vrsqrt.pop %v1207
        %v1219 = vmul.f32 %v1218, %v1207
        %v1220 = vmul.f32 %v1219, %v1218
        %v1221 = vmul.f32 0.5, %v1220
        %v1222 = vsub.f32 1.5, %v1221
        %v1223 = vmul.f32 %v1218, %v1222
        %vm1224 = vweird.f32 %v1207
        %vm1225 = vweird.f32 %v1218
        %vm1226 = vmor %vm1224, %vm1225
        %v1227 = vsel %vm1226, %v1218, %v1223
        %v1228 = vmul.f32 %v1186, %v1217
        %v1229 = vmul.f32 %v1187, %v1227
        %1230 = vrot.lane.b32.xlu0 %v759, 32
        %v1231 = vpop.permute.xlu0 %1230
        %v1233 = vmul.f32 %v1228, %v1231
        %v1234 = vmul.f32 %v1229, %v1231
        %1235 = vrot.lane.b32.xlu0 %v764, 32
        %v1236 = vpop.permute.xlu0 %1235
        %v1238 = vadd.f32 %v1233, %v1236
        %v1239 = vadd.f32 %v1234, %v1236
        %v1240 = vmul.f32 %v1238, 0.25
        %v1241 = vmul.f32 %v1239, 0.25
        %1242 = vrot.lane.b32.xlu0 %v684, 32
        %v1243 = vpop.permute.xlu0 %1242
        %1244 = vrot.lane.b32.xlu0 %v686, 32
        %v1245 = vpop.permute.xlu0 %1244
        %v1248 = vsel %vm706, %v1243, 0.0
        %1249 = vadd.xlane.f32.xlu0 %v1248
        %v1250 = vpop.xlane.xlu0 %1249
        %v1251 = vsel %vm706, %v1245, 0.0
        %1252 = vadd.xlane.f32.xlu0 %v1251
        %v1253 = vpop.xlane.xlu0 %1252
        %v1254 = vmul.f32 %v1250, %v719
        %v1255 = vmul.f32 %v1253, %v719
        %v1256 = vsub.f32 %v684, %v1254
        %v1257 = vsub.f32 %v686, %v1255
        %v1258 = vmul.f32 %v1256, %v1256
        %v1259 = vmul.f32 %v1257, %v1257
        %1262 = vrot.lane.b32.xlu0 %v1258, 32
        %v1263 = vpop.permute.xlu0 %1262
        %1264 = vrot.lane.b32.xlu0 %v1259, 32
        %v1265 = vpop.permute.xlu0 %1264
        %v1268 = vsel %vm706, %v1263, 0.0
        %1269 = vadd.xlane.f32.xlu0 %v1268
        %v1270 = vpop.xlane.xlu0 %1269
        %v1271 = vsel %vm706, %v1265, 0.0
        %1272 = vadd.xlane.f32.xlu0 %v1271
        %v1273 = vpop.xlane.xlu0 %1272
        %v1274 = vmul.f32 %v1270, %v719
        %v1275 = vmul.f32 %v1273, %v719
        %v1276 = vadd.f32 %v1274, 1e-05
        %v1277 = vadd.f32 %v1275, 1e-05
        %v1278 = vrsqrt.pop %v1276
        %v1279 = vmul.f32 %v1278, %v1276
        %v1280 = vmul.f32 %v1279, %v1278
        %v1281 = vmul.f32 0.5, %v1280
        %v1282 = vsub.f32 1.5, %v1281
        %v1283 = vmul.f32 %v1278, %v1282
        %vm1284 = vweird.f32 %v1276
        %vm1285 = vweird.f32 %v1278
        %vm1286 = vmor %vm1284, %vm1285
        %v1287 = vsel %vm1286, %v1278, %v1283
        %v1288 = vrsqrt.pop %v1277
        %v1289 = vmul.f32 %v1288, %v1277
        %v1290 = vmul.f32 %v1289, %v1288
        %v1291 = vmul.f32 0.5, %v1290
        %v1292 = vsub.f32 1.5, %v1291
        %v1293 = vmul.f32 %v1288, %v1292
        %vm1294 = vweird.f32 %v1277
        %vm1295 = vweird.f32 %v1288
        %vm1296 = vmor %vm1294, %vm1295
        %v1297 = vsel %vm1296, %v1288, %v1293
        %v1298 = vmul.f32 %v1256, %v1287
        %v1299 = vmul.f32 %v1257, %v1297
        %1300 = vrot.lane.b32.xlu0 %v831, 96
        %v1301 = vpop.permute.xlu0 %1300
        %v1303 = vmul.f32 %v1298, %v1301
        %v1304 = vmul.f32 %v1299, %v1301
        %1305 = vrot.lane.b32.xlu0 %v838, 96
        %v1306 = vpop.permute.xlu0 %1305
        %v1308 = vadd.f32 %v1303, %v1306
        %v1309 = vadd.f32 %v1304, %v1306
        %v1310 = vpack.c.bf16 %v1241, %v1240
        %v1311 = vpack.c.bf16 %v1309, %v1308
        %1313 = vrot.lane.b32.xlu0 %v1310, 96
        %v1314 = vpop.permute.xlu0 %1313
        %1316 = vrot.lane.b32.xlu0 %v1311, 32
        %v1317 = vpop.permute.xlu0 %1316
        %v1319 = vsel %vm706, %v1314, 0
        %v1322 = vsel %vm706, %v1317, 0
        %1324 = vmatpush.bf16.xpose.msra.mxu0 0
        %1325 = vmatpush.bf16.xpose.msra.mxu0 0
        %1326 = vmatpush.bf16.xpose.msra.mxu0 0
        %1327 = vmatpush.bf16.xpose.msra.mxu0 0
        %1328 = vmatpush.bf16.xpose.msra.mxu0 0
        %1329 = vmatpush.bf16.xpose.msra.mxu0 0
        %1330 = vmatpush.bf16.xpose.msra.mxu0 0
        %1331 = vmatpush.bf16.xpose.msra.mxu0 %v1322
        %1332 = vmatmul.bf16.gmra.mxu0 %v1319
        %v1333 = vpop.f32.mrf.mxu0
        %v1334 = vadd.f32 0.0, %v1333
        %v1335 = vpop.f32.mrf.mxu0
        %v1336 = vadd.f32 0.0, %v1335
        %1337 = vdwg.mxu0
        %v1338 = vsel %vm706, %v1334, -inf
        %1339 = vmax.xlane.f32.xlu0 %v1338
        %v1340 = vpop.xlane.xlu0 %1339
        %v1341 = vsel %vm706, %v1336, -inf
        %1342 = vmax.xlane.f32.xlu0 %v1341
        %v1343 = vpop.xlane.xlu0 %1342
        %v1344 = vsub.f32 %v1334, %v1340
        %v1345 = vsub.f32 %v1336, %v1343
        %v1346 = vmul.f32 %v1344, 1.442695
        %v1347 = vpow.pop %v1346
        %v1348 = vmul.f32 %v1345, 1.442695
        %v1349 = vpow.pop %v1348
        %v1350 = vsel %vm706, %v1347, 0.0
        %1351 = vadd.xlane.f32.xlu0 %v1350
        %v1352 = vpop.xlane.xlu0 %1351
        %v1353 = vsel %vm706, %v1349, 0.0
        %1354 = vadd.xlane.f32.xlu0 %v1353
        %v1355 = vpop.xlane.xlu0 %1354
        %v1356 = vpack.c.bf16 %v1349, %v1347
        %1357 = vrot.lane.b32.xlu0 %v888, 96
        %v1358 = vpop.permute.xlu0 %1357
        %v1361 = vsel %vm706, %v1356, 0
        %1363 = vmatpush.bf16.msra.mxu0 0
        %1364 = vmatpush.bf16.msra.mxu0 0
        %1365 = vmatpush.bf16.msra.mxu0 0
        %1366 = vmatpush.bf16.msra.mxu0 0
        %1367 = vmatpush.bf16.msra.mxu0 0
        %1368 = vmatpush.bf16.msra.mxu0 0
        %1369 = vmatpush.bf16.msra.mxu0 0
        %1370 = vmatpush.bf16.msra.mxu0 %v1358
        %1371 = vmatmul.bf16.gmra.mxu0 %v1361
        %v1372 = vpop.f32.mrf.mxu0
        %v1373 = vadd.f32 0.0, %v1372
        %v1374 = vpop.f32.mrf.mxu0
        %v1375 = vadd.f32 0.0, %v1374
        %1376 = vdwg.mxu0
        %v1377 = vrcp.pop %v1352
        %v1378 = vrcp.pop %v1355
        %v1379 = vmul.f32 %v1373, %v1377
        %v1380 = vmul.f32 %v1375, %v1378
        %v1381 = vpack.c.bf16 %v1380, %v1379
        %v1382 = vld [vmem:[%s9 + $0x10] sm:$0xf]
        %v1383 = vld [vmem:[%s9 + $0x14] sm:$0xf]
        %v1386 = vunpack.c.l.b16 %v1382
        %v1387 = vunpack.c.l.b16 %v1383
        %v1388 = vpack.c.b16 %v1387, %v1386
        %v1391 = vsel %vm706, %v1381, 0
        %1393 = vmatpush.bf16.msra.mxu0 0
        %1394 = vmatpush.bf16.msra.mxu0 0
        %1395 = vmatpush.bf16.msra.mxu0 0
        %1396 = vmatpush.bf16.msra.mxu0 0
        %1397 = vmatpush.bf16.msra.mxu0 0
        %1398 = vmatpush.bf16.msra.mxu0 0
        %1399 = vmatpush.bf16.msra.mxu0 0
        %1400 = vmatpush.bf16.msra.mxu0 %v1388
        %1401 = vmatmul.bf16.gmra.mxu0 %v1391
        %v1402 = vpop.f32.mrf.mxu0
        %v1403 = vadd.f32 0.0, %v1402
        %v1404 = vpop.f32.mrf.mxu0
        %v1405 = vadd.f32 0.0, %v1404
        %1406 = vdwg.mxu0
        %v1407 = vadd.f32 %v1168, %v1403
        %v1408 = vadd.f32 %v1170, %v1405
        %1409 = vrot.lane.b32.xlu0 %v684, 80
        %v1410 = vpop.permute.xlu0 %1409
        %1411 = vrot.lane.b32.xlu0 %v686, 80
        %v1412 = vpop.permute.xlu0 %1411
        %v1415 = vsel %vm706, %v1410, 0.0
        %1416 = vadd.xlane.f32.xlu0 %v1415
        %v1417 = vpop.xlane.xlu0 %1416
        %v1418 = vsel %vm706, %v1412, 0.0
        %1419 = vadd.xlane.f32.xlu0 %v1418
        %v1420 = vpop.xlane.xlu0 %1419
        %v1421 = vmul.f32 %v1417, %v719
        %v1422 = vmul.f32 %v1420, %v719
        %v1423 = vsub.f32 %v684, %v1421
        %v1424 = vsub.f32 %v686, %v1422
        %v1425 = vmul.f32 %v1423, %v1423
        %v1426 = vmul.f32 %v1424, %v1424
        %1429 = vrot.lane.b32.xlu0 %v1425, 80
        %v1430 = vpop.permute.xlu0 %1429
        %1431 = vrot.lane.b32.xlu0 %v1426, 80
        %v1432 = vpop.permute.xlu0 %1431
        %v1435 = vsel %vm706, %v1430, 0.0
        %1436 = vadd.xlane.f32.xlu0 %v1435
        %v1437 = vpop.xlane.xlu0 %1436
        %v1438 = vsel %vm706, %v1432, 0.0
        %1439 = vadd.xlane.f32.xlu0 %v1438
        %v1440 = vpop.xlane.xlu0 %1439
        %v1441 = vmul.f32 %v1437, %v719
        %v1442 = vmul.f32 %v1440, %v719
        %v1443 = vadd.f32 %v1441, 1e-05
        %v1444 = vadd.f32 %v1442, 1e-05
        %v1445 = vrsqrt.pop %v1443
        %v1446 = vmul.f32 %v1445, %v1443
        %v1447 = vmul.f32 %v1446, %v1445
        %v1448 = vmul.f32 0.5, %v1447
        %v1449 = vsub.f32 1.5, %v1448
        %v1450 = vmul.f32 %v1445, %v1449
        %vm1451 = vweird.f32 %v1443
        %vm1452 = vweird.f32 %v1445
        %vm1453 = vmor %vm1451, %vm1452
        %v1454 = vsel %vm1453, %v1445, %v1450
        %v1455 = vrsqrt.pop %v1444
        %v1456 = vmul.f32 %v1455, %v1444
        %v1457 = vmul.f32 %v1456, %v1455
        %v1458 = vmul.f32 0.5, %v1457
        %v1459 = vsub.f32 1.5, %v1458
        %v1460 = vmul.f32 %v1455, %v1459
        %vm1461 = vweird.f32 %v1444
        %vm1462 = vweird.f32 %v1455
        %vm1463 = vmor %vm1461, %vm1462
        %v1464 = vsel %vm1463, %v1455, %v1460
        %v1465 = vmul.f32 %v1423, %v1454
        %v1466 = vmul.f32 %v1424, %v1464
        %1467 = vrot.lane.b32.xlu0 %v759, 48
        %v1468 = vpop.permute.xlu0 %1467
        %v1470 = vmul.f32 %v1465, %v1468
        %v1471 = vmul.f32 %v1466, %v1468
        %1472 = vrot.lane.b32.xlu0 %v764, 48
        %v1473 = vpop.permute.xlu0 %1472
        %v1475 = vadd.f32 %v1470, %v1473
        %v1476 = vadd.f32 %v1471, %v1473
        %v1477 = vmul.f32 %v1475, 0.25
        %v1478 = vmul.f32 %v1476, 0.25
        %1479 = vrot.lane.b32.xlu0 %v684, 16
        %v1480 = vpop.permute.xlu0 %1479
        %1481 = vrot.lane.b32.xlu0 %v686, 16
        %v1482 = vpop.permute.xlu0 %1481
        %v1485 = vsel %vm706, %v1480, 0.0
        %1486 = vadd.xlane.f32.xlu0 %v1485
        %v1487 = vpop.xlane.xlu0 %1486
        %v1488 = vsel %vm706, %v1482, 0.0
        %1489 = vadd.xlane.f32.xlu0 %v1488
        %v1490 = vpop.xlane.xlu0 %1489
        %v1491 = vmul.f32 %v1487, %v719
        %v1492 = vmul.f32 %v1490, %v719
        %v1493 = vsub.f32 %v684, %v1491
        %v1494 = vsub.f32 %v686, %v1492
        %v1495 = vmul.f32 %v1493, %v1493
        %v1496 = vmul.f32 %v1494, %v1494
        %1499 = vrot.lane.b32.xlu0 %v1495, 16
        %v1500 = vpop.permute.xlu0 %1499
        %1501 = vrot.lane.b32.xlu0 %v1496, 16
        %v1502 = vpop.permute.xlu0 %1501
        %v1505 = vsel %vm706, %v1500, 0.0
        %1506 = vadd.xlane.f32.xlu0 %v1505
        %v1507 = vpop.xlane.xlu0 %1506
        %v1508 = vsel %vm706, %v1502, 0.0
        %1509 = vadd.xlane.f32.xlu0 %v1508
        %v1510 = vpop.xlane.xlu0 %1509
        %v1511 = vmul.f32 %v1507, %v719
        %v1512 = vmul.f32 %v1510, %v719
        %v1513 = vadd.f32 %v1511, 1e-05
        %v1514 = vadd.f32 %v1512, 1e-05
        %v1515 = vrsqrt.pop %v1513
        %v1516 = vmul.f32 %v1515, %v1513
        %v1517 = vmul.f32 %v1516, %v1515
        %v1518 = vmul.f32 0.5, %v1517
        %v1519 = vsub.f32 1.5, %v1518
        %v1520 = vmul.f32 %v1515, %v1519
        %vm1521 = vweird.f32 %v1513
        %vm1522 = vweird.f32 %v1515
        %vm1523 = vmor %vm1521, %vm1522
        %v1524 = vsel %vm1523, %v1515, %v1520
        %v1525 = vrsqrt.pop %v1514
        %v1526 = vmul.f32 %v1525, %v1514
        %v1527 = vmul.f32 %v1526, %v1525
        %v1528 = vmul.f32 0.5, %v1527
        %v1529 = vsub.f32 1.5, %v1528
        %v1530 = vmul.f32 %v1525, %v1529
        %vm1531 = vweird.f32 %v1514
        %vm1532 = vweird.f32 %v1525
        %vm1533 = vmor %vm1531, %vm1532
        %v1534 = vsel %vm1533, %v1525, %v1530
        %v1535 = vmul.f32 %v1493, %v1524
        %v1536 = vmul.f32 %v1494, %v1534
        %1537 = vrot.lane.b32.xlu0 %v831, 112
        %v1538 = vpop.permute.xlu0 %1537
        %v1540 = vmul.f32 %v1535, %v1538
        %v1541 = vmul.f32 %v1536, %v1538
        %1542 = vrot.lane.b32.xlu0 %v838, 112
        %v1543 = vpop.permute.xlu0 %1542
        %v1545 = vadd.f32 %v1540, %v1543
        %v1546 = vadd.f32 %v1541, %v1543
        %v1547 = vpack.c.bf16 %v1478, %v1477
        %v1548 = vpack.c.bf16 %v1546, %v1545
        %1550 = vrot.lane.b32.xlu0 %v1547, 80
        %v1551 = vpop.permute.xlu0 %1550
        %1553 = vrot.lane.b32.xlu0 %v1548, 16
        %v1554 = vpop.permute.xlu0 %1553
        %v1556 = vsel %vm706, %v1551, 0
        %v1559 = vsel %vm706, %v1554, 0
        %1561 = vmatpush.bf16.xpose.msra.mxu0 0
        %1562 = vmatpush.bf16.xpose.msra.mxu0 0
        %1563 = vmatpush.bf16.xpose.msra.mxu0 0
        %1564 = vmatpush.bf16.xpose.msra.mxu0 0
        %1565 = vmatpush.bf16.xpose.msra.mxu0 0
        %1566 = vmatpush.bf16.xpose.msra.mxu0 0
        %1567 = vmatpush.bf16.xpose.msra.mxu0 0
        %1568 = vmatpush.bf16.xpose.msra.mxu0 %v1559
        %1569 = vmatmul.bf16.gmra.mxu0 %v1556
        %v1570 = vpop.f32.mrf.mxu0
        %v1571 = vadd.f32 0.0, %v1570
        %v1572 = vpop.f32.mrf.mxu0
        %v1573 = vadd.f32 0.0, %v1572
        %1574 = vdwg.mxu0
        %v1575 = vsel %vm706, %v1571, -inf
        %1576 = vmax.xlane.f32.xlu0 %v1575
        %v1577 = vpop.xlane.xlu0 %1576
        %v1578 = vsel %vm706, %v1573, -inf
        %1579 = vmax.xlane.f32.xlu0 %v1578
        %v1580 = vpop.xlane.xlu0 %1579
        %v1581 = vsub.f32 %v1571, %v1577
        %v1582 = vsub.f32 %v1573, %v1580
        %v1583 = vmul.f32 %v1581, 1.442695
        %v1584 = vpow.pop %v1583
        %v1585 = vmul.f32 %v1582, 1.442695
        %v1586 = vpow.pop %v1585
        %v1587 = vsel %vm706, %v1584, 0.0
        %1588 = vadd.xlane.f32.xlu0 %v1587
        %v1589 = vpop.xlane.xlu0 %1588
        %v1590 = vsel %vm706, %v1586, 0.0
        %1591 = vadd.xlane.f32.xlu0 %v1590
        %v1592 = vpop.xlane.xlu0 %1591
        %v1593 = vpack.c.bf16 %v1586, %v1584
        %1594 = vrot.lane.b32.xlu0 %v888, 80
        %v1595 = vpop.permute.xlu0 %1594
        %v1598 = vsel %vm706, %v1593, 0
        %1600 = vmatpush.bf16.msra.mxu0 0
        %1601 = vmatpush.bf16.msra.mxu0 0
        %1602 = vmatpush.bf16.msra.mxu0 0
        %1603 = vmatpush.bf16.msra.mxu0 0
        %1604 = vmatpush.bf16.msra.mxu0 0
        %1605 = vmatpush.bf16.msra.mxu0 0
        %1606 = vmatpush.bf16.msra.mxu0 0
        %1607 = vmatpush.bf16.msra.mxu0 %v1595
        %1608 = vmatmul.bf16.gmra.mxu0 %v1598
        %v1609 = vpop.f32.mrf.mxu0
        %v1610 = vadd.f32 0.0, %v1609
        %v1611 = vpop.f32.mrf.mxu0
        %v1612 = vadd.f32 0.0, %v1611
        %1613 = vdwg.mxu0
        %v1614 = vrcp.pop %v1589
        %v1615 = vrcp.pop %v1592
        %v1616 = vmul.f32 %v1610, %v1614
        %v1617 = vmul.f32 %v1612, %v1615
        %v1618 = vpack.c.bf16 %v1617, %v1616
        %v1619 = vld [vmem:[%s9 + $0x18] sm:$0xf]
        %v1620 = vld [vmem:[%s9 + $0x1c] sm:$0xf]
        %v1623 = vunpack.c.l.b16 %v1619
        %v1624 = vunpack.c.l.b16 %v1620
        %v1625 = vpack.c.b16 %v1624, %v1623
        %v1628 = vsel %vm706, %v1618, 0
        %1630 = vmatpush.bf16.msra.mxu0 0
        %1631 = vmatpush.bf16.msra.mxu0 0
        %1632 = vmatpush.bf16.msra.mxu0 0
        %1633 = vmatpush.bf16.msra.mxu0 0
        %1634 = vmatpush.bf16.msra.mxu0 0
        %1635 = vmatpush.bf16.msra.mxu0 0
        %1636 = vmatpush.bf16.msra.mxu0 0
        %1637 = vmatpush.bf16.msra.mxu0 %v1625
        %1638 = vmatmul.bf16.gmra.mxu0 %v1628
        %v1639 = vpop.f32.mrf.mxu0
        %v1640 = vadd.f32 0.0, %v1639
        %v1641 = vpop.f32.mrf.mxu0
        %v1642 = vadd.f32 0.0, %v1641
        %1643 = vdwg.mxu0
        %v1644 = vadd.f32 %v1407, %v1640
        %v1645 = vadd.f32 %v1408, %v1642
        %v1646 = vld [vmem:[%s10] sm:$0x1]
        %v1648 = vperm.slane %v1646, 0
        %v1650 = vadd.f32 %v1644, %v1648
        %v1651 = vadd.f32 %v1645, %v1648
        %v1652 = vmul.f32 %v656, 0.5
        %v1653 = vmul.f32 %v670, 0.5
        %v1654 = vmul.f32 %v658, 0.5
        %v1655 = vmul.f32 %v672, 0.5
        %v1656 = vmul.f32 %v656, 0.70710677
        %v1657 = vmul.f32 %v670, 0.70710677
        %v1658 = vmul.f32 %v658, 0.70710677
        %v1659 = vmul.f32 %v672, 0.70710677
        %v1660 = vmul.f32 %v1656, %v1656
        %v1661 = vmin.f32 16.0, %v1660
        %v1662 = vmul.f32 %v1661, 2.1237322e-06
        %v1663 = vadd.f32 %v1662, 0.00028619796
        %v1664 = vmul.f32 %v1661, %v1663
        %v1665 = vadd.f32 %v1664, 0.0036580483
        %v1666 = vmul.f32 %v1661, %v1665
        %v1667 = vadd.f32 %v1666, 0.05243302
        %v1668 = vmul.f32 %v1661, %v1667
        %v1669 = vadd.f32 %v1668, 0.18741608
        %v1670 = vmul.f32 %v1661, %v1669
        %v1671 = vadd.f32 %v1670, 1.1283791
        %v1672 = vmul.f32 %v1656, %v1671
        %v1673 = vmul.f32 %v1661, 3.8918573e-05
        %v1674 = vadd.f32 %v1673, 0.001143296
        %v1675 = vmul.f32 %v1661, %v1674
        %v1676 = vadd.f32 %v1675, 0.014752088
        %v1677 = vmul.f32 %v1661, %v1676
        %v1678 = vadd.f32 %v1677, 0.112945676
        %v1679 = vmul.f32 %v1661, %v1678
        %v1680 = vadd.f32 %v1679, 0.4994258
        %v1681 = vmul.f32 %v1661, %v1680
        %v1682 = vadd.f32 %v1681, 1.0
        %v1683 = vrcp.pop %v1682
        %v1684 = vmul.f32 %v1682, %v1683
        %v1685 = vsub.f32 1.0, %v1684
        %v1686 = vmul.f32 %v1683, %v1685
        %v1687 = vadd.f32 %v1683, %v1686
        %vm1688 = vweird.f32 %v1682
        %vm1689 = vweird.f32 %v1683
        %vm1690 = vmor %vm1688, %vm1689
        %v1691 = vsel %vm1690, %v1683, %v1687
        %v1692 = vand.u32 2147483647, %v1682
        %vm1693 = vcmp.eq.f32.partialorder %v1692, 8.507059e+37
        %v1694 = vand.u32 %v1682, 2147483648
        %v1695 = vor.u32 1.1754944e-38, %v1694
        %v1696 = vsel %vm1693, %v1695, %v1691
        %v1697 = vmul.f32 %v1672, %v1696
        %v1698 = vmin.f32 %v1697, 1.0
        %v1699 = vmax.f32 %v1698, -1.0
        %v1700 = vmul.f32 %v1657, %v1657
        %v1701 = vmin.f32 16.0, %v1700
        %v1702 = vmul.f32 %v1701, 2.1237322e-06
        %v1703 = vadd.f32 %v1702, 0.00028619796
        %v1704 = vmul.f32 %v1701, %v1703
        %v1705 = vadd.f32 %v1704, 0.0036580483
        %v1706 = vmul.f32 %v1701, %v1705
        %v1707 = vadd.f32 %v1706, 0.05243302
        %v1708 = vmul.f32 %v1701, %v1707
        %v1709 = vadd.f32 %v1708, 0.18741608
        %v1710 = vmul.f32 %v1701, %v1709
        %v1711 = vadd.f32 %v1710, 1.1283791
        %v1712 = vmul.f32 %v1657, %v1711
        %v1713 = vmul.f32 %v1701, 3.8918573e-05
        %v1714 = vadd.f32 %v1713, 0.001143296
        %v1715 = vmul.f32 %v1701, %v1714
        %v1716 = vadd.f32 %v1715, 0.014752088
        %v1717 = vmul.f32 %v1701, %v1716
        %v1718 = vadd.f32 %v1717, 0.112945676
        %v1719 = vmul.f32 %v1701, %v1718
        %v1720 = vadd.f32 %v1719, 0.4994258
        %v1721 = vmul.f32 %v1701, %v1720
        %v1722 = vadd.f32 %v1721, 1.0
        %v1723 = vrcp.pop %v1722
        %v1724 = vmul.f32 %v1722, %v1723
        %v1725 = vsub.f32 1.0, %v1724
        %v1726 = vmul.f32 %v1723, %v1725
        %v1727 = vadd.f32 %v1723, %v1726
        %vm1728 = vweird.f32 %v1722
        %vm1729 = vweird.f32 %v1723
        %vm1730 = vmor %vm1728, %vm1729
        %v1731 = vsel %vm1730, %v1723, %v1727
        %v1732 = vand.u32 2147483647, %v1722
        %vm1733 = vcmp.eq.f32.partialorder %v1732, 8.507059e+37
        %v1734 = vand.u32 %v1722, 2147483648
        %v1735 = vor.u32 1.1754944e-38, %v1734
        %v1736 = vsel %vm1733, %v1735, %v1731
        %v1737 = vmul.f32 %v1712, %v1736
        %v1738 = vmin.f32 %v1737, 1.0
        %v1739 = vmax.f32 %v1738, -1.0
        %v1740 = vmul.f32 %v1658, %v1658
        %v1741 = vmin.f32 16.0, %v1740
        %v1742 = vmul.f32 %v1741, 2.1237322e-06
        %v1743 = vadd.f32 %v1742, 0.00028619796
        %v1744 = vmul.f32 %v1741, %v1743
        %v1745 = vadd.f32 %v1744, 0.0036580483
        %v1746 = vmul.f32 %v1741, %v1745
        %v1747 = vadd.f32 %v1746, 0.05243302
        %v1748 = vmul.f32 %v1741, %v1747
        %v1749 = vadd.f32 %v1748, 0.18741608
        %v1750 = vmul.f32 %v1741, %v1749
        %v1751 = vadd.f32 %v1750, 1.1283791
        %v1752 = vmul.f32 %v1658, %v1751
        %v1753 = vmul.f32 %v1741, 3.8918573e-05
        %v1754 = vadd.f32 %v1753, 0.001143296
        %v1755 = vmul.f32 %v1741, %v1754
        %v1756 = vadd.f32 %v1755, 0.014752088
        %v1757 = vmul.f32 %v1741, %v1756
        %v1758 = vadd.f32 %v1757, 0.112945676
        %v1759 = vmul.f32 %v1741, %v1758
        %v1760 = vadd.f32 %v1759, 0.4994258
        %v1761 = vmul.f32 %v1741, %v1760
        %v1762 = vadd.f32 %v1761, 1.0
        %v1763 = vrcp.pop %v1762
        %v1764 = vmul.f32 %v1762, %v1763
        %v1765 = vsub.f32 1.0, %v1764
        %v1766 = vmul.f32 %v1763, %v1765
        %v1767 = vadd.f32 %v1763, %v1766
        %vm1768 = vweird.f32 %v1762
        %vm1769 = vweird.f32 %v1763
        %vm1770 = vmor %vm1768, %vm1769
        %v1771 = vsel %vm1770, %v1763, %v1767
        %v1772 = vand.u32 2147483647, %v1762
        %vm1773 = vcmp.eq.f32.partialorder %v1772, 8.507059e+37
        %v1774 = vand.u32 %v1762, 2147483648
        %v1775 = vor.u32 1.1754944e-38, %v1774
        %v1776 = vsel %vm1773, %v1775, %v1771
        %v1777 = vmul.f32 %v1752, %v1776
        %v1778 = vmin.f32 %v1777, 1.0
        %v1779 = vmax.f32 %v1778, -1.0
        %v1780 = vmul.f32 %v1659, %v1659
        %v1781 = vmin.f32 16.0, %v1780
        %v1782 = vmul.f32 %v1781, 2.1237322e-06
        %v1783 = vadd.f32 %v1782, 0.00028619796
        %v1784 = vmul.f32 %v1781, %v1783
        %v1785 = vadd.f32 %v1784, 0.0036580483
        %v1786 = vmul.f32 %v1781, %v1785
        %v1787 = vadd.f32 %v1786, 0.05243302
        %v1788 = vmul.f32 %v1781, %v1787
        %v1789 = vadd.f32 %v1788, 0.18741608
        %v1790 = vmul.f32 %v1781, %v1789
        %v1791 = vadd.f32 %v1790, 1.1283791
        %v1792 = vmul.f32 %v1659, %v1791
        %v1793 = vmul.f32 %v1781, 3.8918573e-05
        %v1794 = vadd.f32 %v1793, 0.001143296
        %v1795 = vmul.f32 %v1781, %v1794
        %v1796 = vadd.f32 %v1795, 0.014752088
        %v1797 = vmul.f32 %v1781, %v1796
        %v1798 = vadd.f32 %v1797, 0.112945676
        %v1799 = vmul.f32 %v1781, %v1798
        %v1800 = vadd.f32 %v1799, 0.4994258
        %v1801 = vmul.f32 %v1781, %v1800
        %v1802 = vadd.f32 %v1801, 1.0
        %v1803 = vrcp.pop %v1802
        %v1804 = vmul.f32 %v1802, %v1803
        %v1805 = vsub.f32 1.0, %v1804
        %v1806 = vmul.f32 %v1803, %v1805
        %v1807 = vadd.f32 %v1803, %v1806
        %vm1808 = vweird.f32 %v1802
        %vm1809 = vweird.f32 %v1803
        %vm1810 = vmor %vm1808, %vm1809
        %v1811 = vsel %vm1810, %v1803, %v1807
        %v1812 = vand.u32 2147483647, %v1802
        %vm1813 = vcmp.eq.f32.partialorder %v1812, 8.507059e+37
        %v1814 = vand.u32 %v1802, 2147483648
        %v1815 = vor.u32 1.1754944e-38, %v1814
        %v1816 = vsel %vm1813, %v1815, %v1811
        %v1817 = vmul.f32 %v1792, %v1816
        %v1818 = vmin.f32 %v1817, 1.0
        %v1819 = vmax.f32 %v1818, -1.0
        %v1820 = vadd.f32 %v1699, 1.0
        %v1821 = vadd.f32 %v1739, 1.0
        %v1822 = vadd.f32 %v1779, 1.0
        %v1823 = vadd.f32 %v1819, 1.0
        %v1824 = vmul.f32 %v1652, %v1820
        %v1825 = vmul.f32 %v1653, %v1821
        %v1826 = vmul.f32 %v1654, %v1822
        %v1827 = vmul.f32 %v1655, %v1823
        %v1828 = vpack.c.bf16 %v1826, %v1824
        %v1829 = vpack.c.bf16 %v1827, %v1825
        %v1830 = vld [vmem:[%s11] sm:$0xf]
        %v1831 = vld [vmem:[%s11 + $0x4] sm:$0xf]
        %v1832 = vld [vmem:[%s11 + $0x8] sm:$0xf]
        %v1833 = vld [vmem:[%s11 + $0xc] sm:$0xf]
        %v1834 = vld [vmem:[%s11 + $0x10] sm:$0xf]
        %v1835 = vld [vmem:[%s11 + $0x14] sm:$0xf]
        %v1836 = vld [vmem:[%s11 + $0x18] sm:$0xf]
        %v1837 = vld [vmem:[%s11 + $0x1c] sm:$0xf]
        %v1838 = vld [vmem:[%s11 + $0x20] sm:$0xf]
        %v1839 = vld [vmem:[%s11 + $0x24] sm:$0xf]
        %v1840 = vld [vmem:[%s11 + $0x28] sm:$0xf]
        %v1841 = vld [vmem:[%s11 + $0x2c] sm:$0xf]
        %v1842 = vld [vmem:[%s11 + $0x30] sm:$0xf]
        %v1843 = vld [vmem:[%s11 + $0x34] sm:$0xf]
        %v1844 = vld [vmem:[%s11 + $0x38] sm:$0xf]
        %v1845 = vld [vmem:[%s11 + $0x3c] sm:$0xf]
        %v1846 = vld [vmem:[%s11 + $0x40] sm:$0xf]
        %v1847 = vld [vmem:[%s11 + $0x44] sm:$0xf]
        %v1848 = vld [vmem:[%s11 + $0x48] sm:$0xf]
        %v1849 = vld [vmem:[%s11 + $0x4c] sm:$0xf]
        %v1850 = vld [vmem:[%s11 + $0x50] sm:$0xf]
        %v1851 = vld [vmem:[%s11 + $0x54] sm:$0xf]
        %v1852 = vld [vmem:[%s11 + $0x58] sm:$0xf]
        %v1853 = vld [vmem:[%s11 + $0x5c] sm:$0xf]
        %v1854 = vld [vmem:[%s11 + $0x60] sm:$0xf]
        %v1855 = vld [vmem:[%s11 + $0x64] sm:$0xf]
        %v1856 = vld [vmem:[%s11 + $0x68] sm:$0xf]
        %v1857 = vld [vmem:[%s11 + $0x6c] sm:$0xf]
        %v1858 = vld [vmem:[%s11 + $0x70] sm:$0xf]
        %v1859 = vld [vmem:[%s11 + $0x74] sm:$0xf]
        %v1860 = vld [vmem:[%s11 + $0x78] sm:$0xf]
        %v1861 = vld [vmem:[%s11 + $0x7c] sm:$0xf]
        %v1862 = vld [vmem:[%s12] sm:$0x1]
        %v1864 = vperm.slane %v1862, 0
        %v1898 = vunpack.c.l.b16 %v1830
        %v1899 = vunpack.c.l.b16 %v1831
        %v1900 = vunpack.c.l.b16 %v1832
        %v1901 = vunpack.c.l.b16 %v1833
        %v1902 = vunpack.c.l.b16 %v1834
        %v1903 = vunpack.c.l.b16 %v1835
        %v1904 = vunpack.c.l.b16 %v1836
        %v1905 = vunpack.c.l.b16 %v1837
        %v1906 = vunpack.c.l.b16 %v1838
        %v1907 = vunpack.c.l.b16 %v1839
        %v1908 = vunpack.c.l.b16 %v1840
        %v1909 = vunpack.c.l.b16 %v1841
        %v1910 = vunpack.c.l.b16 %v1842
        %v1911 = vunpack.c.l.b16 %v1843
        %v1912 = vunpack.c.l.b16 %v1844
        %v1913 = vunpack.c.l.b16 %v1845
        %v1914 = vunpack.c.l.b16 %v1846
        %v1915 = vunpack.c.l.b16 %v1847
        %v1916 = vunpack.c.l.b16 %v1848
        %v1917 = vunpack.c.l.b16 %v1849
        %v1918 = vunpack.c.l.b16 %v1850
        %v1919 = vunpack.c.l.b16 %v1851
        %v1920 = vunpack.c.l.b16 %v1852
        %v1921 = vunpack.c.l.b16 %v1853
        %v1922 = vunpack.c.l.b16 %v1854
        %v1923 = vunpack.c.l.b16 %v1855
        %v1924 = vunpack.c.l.b16 %v1856
        %v1925 = vunpack.c.l.b16 %v1857
        %v1926 = vunpack.c.l.b16 %v1858
        %v1927 = vunpack.c.l.b16 %v1859
        %v1928 = vunpack.c.l.b16 %v1860
        %v1929 = vunpack.c.l.b16 %v1861
        %v1930 = vpack.c.b16 %v1899, %v1898
        %v1931 = vpack.c.b16 %v1901, %v1900
        %v1932 = vpack.c.b16 %v1903, %v1902
        %v1933 = vpack.c.b16 %v1905, %v1904
        %v1934 = vpack.c.b16 %v1907, %v1906
        %v1935 = vpack.c.b16 %v1909, %v1908
        %v1936 = vpack.c.b16 %v1911, %v1910
        %v1937 = vpack.c.b16 %v1913, %v1912
        %v1938 = vpack.c.b16 %v1915, %v1914
        %v1939 = vpack.c.b16 %v1917, %v1916
        %v1940 = vpack.c.b16 %v1919, %v1918
        %v1941 = vpack.c.b16 %v1921, %v1920
        %v1942 = vpack.c.b16 %v1923, %v1922
        %v1943 = vpack.c.b16 %v1925, %v1924
        %v1944 = vpack.c.b16 %v1927, %v1926
        %v1945 = vpack.c.b16 %v1929, %v1928
        %1962 = vmatpush.bf16.msra.mxu0 %v1937
        %1963 = vmatpush.bf16.msra.mxu0 %v1936
        %1964 = vmatpush.bf16.msra.mxu0 %v1935
        %1965 = vmatpush.bf16.msra.mxu0 %v1934
        %1966 = vmatpush.bf16.msra.mxu0 %v1933
        %1967 = vmatpush.bf16.msra.mxu0 %v1932
        %1968 = vmatpush.bf16.msra.mxu0 %v1931
        %1969 = vmatpush.bf16.msra.mxu0 %v1930
        %1970 = vmatmul.bf16.gmra.mxu0 %v1828
        %v1971 = vpop.f32.mrf.mxu0
        %v1972 = vadd.f32 %v1864, %v1971
        %v1973 = vpop.f32.mrf.mxu0
        %v1974 = vadd.f32 %v1864, %v1973
        %1975 = vdwg.mxu0
        %1976 = vmatpush.bf16.msra.mxu0 %v1945
        %1977 = vmatpush.bf16.msra.mxu0 %v1944
        %1978 = vmatpush.bf16.msra.mxu0 %v1943
        %1979 = vmatpush.bf16.msra.mxu0 %v1942
        %1980 = vmatpush.bf16.msra.mxu0 %v1941
        %1981 = vmatpush.bf16.msra.mxu0 %v1940
        %1982 = vmatpush.bf16.msra.mxu0 %v1939
        %1983 = vmatpush.bf16.msra.mxu0 %v1938
        %1984 = vmatmul.bf16.gmra.mxu0 %v1829
        %v1985 = vpop.f32.mrf.mxu0
        %v1986 = vadd.f32 %v1972, %v1985
        %v1987 = vpop.f32.mrf.mxu0
        %v1988 = vadd.f32 %v1974, %v1987
        %1989 = vdwg.mxu0
        %v1990 = vadd.f32 %v470, %v1650
        %v1991 = vadd.f32 %v471, %v1651
        %v1992 = vadd.f32 %v1990, %v1986
        %v1993 = vadd.f32 %v1991, %v1988
        %1994 = vst.msk [vmem:[%s463] sm:$0xff] %vm474, %v1992
        %1995 = vst.msk [vmem:[%s463 + $0x8] sm:$0xff] %vm474, %v1993
        %s1996 = sand.u32 %s315, 1
        %s1997 = scalar_lea.sflag [#allocation4], %s1996
        %s1998 = sand.u32 %s315, 1
        %s1999 = smul.addr %s1998, 16
        %s2000 = scalar_lea.vmem [#allocation7], %s1999
        // Predicated region
        $region81: #{tpu_custom_call.1} parent=71 // pred_check
          %p2001 = pneg %p325
        $region82: #{tpu_custom_call.1} parent=71 // pred_check_branch
          %2003 = sbr.rel (%p2001) target = $region84
        $region83: #{tpu_custom_call.1} parent=71 // pred_region
          %2005 = vsyncadd %s1997, 0
          %s2006 = smul.addr %s29, 2
          %s2007 = smul.addr %s2006, 8
          %s2008 = scalar_lea.hbm %s13, %s2007
          %s2009 = sshll.u32 %s2000, 4
          %s2010 = int_to_ptr.vmem [resolvable:$true] %s2009
          %s2011 = sshll.u32 %s2008, 4
          %s2012 = int_to_ptr.hbm [resolvable:$true] %s2011
          %2017 = dma.vmem_to_hbm [thread:$0]  %s2010, 256, %s2012, %s1997, 128, 128, 8
        $region84: #{tpu_custom_call.1} parent=71 // pred_fallthru
          _
      $region72: #{tpu_custom_call.1} parent=5 // pred_fallthru
        _
      %p2018 = scmp.le.s32.totalorder 2, %s24
      // Predicated region
      $region85: #{tpu_custom_call.1} parent=5 // pred_check
        %p2019 = pneg %p2018
      $region86: #{tpu_custom_call.1} parent=5 // pred_check_branch
        %2021 = sbr.rel (%p2019) target = $region88
      $region87: #{tpu_custom_call.1} parent=5 // pred_region
        %s2022 = ssub.s32 %s24, 2
        // Predicated region
        $region89: #{tpu_custom_call.1} parent=87 // pred_check
          %p2023 = pneg %p331
        $region90: #{tpu_custom_call.1} parent=87 // pred_check_branch
          %2025 = sbr.rel (%p2023) target = $region92
        $region91: #{tpu_custom_call.1} parent=87 // pred_region
          %s2026 = sand.u32 %s316, 1
          %s2027 = scalar_lea.sflag [#allocation4], %s2026
          %s2028 = sand.u32 %s316, 1
          %s2029 = smul.addr %s2028, 16
          %s2030 = scalar_lea.vmem [#allocation7], %s2029
          %2032 = dma.done %s2027, 256
        $region92: #{tpu_custom_call.1} parent=87 // pred_fallthru
          _
      $region88: #{tpu_custom_call.1} parent=5 // pred_fallthru
        _
    $region6: #{tpu_custom_call.1} parent=1 // loop_footer
      %s28 = sadd.s32 1, %s24
    $region7: #{tpu_custom_call.1} parent=1 // loop_footer_branch
      %23 = sbr.rel target = $region3
    $region8: #{tpu_custom_call.1} parent=1 // loop_exit
      _
    %2033 = vsyncpa [#allocation3], 1
    %s2034 = scalar_lea.sflag [#allocation3], 1
    %2035 = vsyncpa %s2034, 1
    %2036 = vsyncpa [#allocation6], 1
    %2037 = vsyncpa [#allocation4], 1
    %s2038 = scalar_lea.sflag [#allocation4], 1
    %2039 = vsyncpa %s2038, 1

// kernel: tpu_custom_call.1
$region0: #{tpu_custom_call.1}
  #allocation0 [shape = 'u32[]', space=smem, size = 0x4, offset = 0x4, fixed_abs, tag = 'smem constant byte address 0x4 - core index']
  #allocation1 [shape = 'u32[72,128]{1,0:T(1,128)}', space=vmem, size = 0x9000, scoped, tag = 'internal scratch']
  %s0 = inlined_call_operand.vmem [shape: f32[2,16,64], index: 0, kind: input, shape index: {}]
  %s1 = inlined_call_operand.vmem [shape: f32[1,64], index: 1, kind: input, shape index: {}]
  %s2 = inlined_call_operand.vmem [shape: f32[1,64], index: 2, kind: input, shape index: {}]
  %s3 = inlined_call_operand.vmem [shape: bf16[64,448], index: 3, kind: input, shape index: {}]
  %s4 = inlined_call_operand.hbm [shape: f32[1,448], index: 4, kind: input, shape index: {}]
  %s5 = inlined_call_operand.hbm [shape: f32[1,16], index: 5, kind: input, shape index: {}]
  %s6 = inlined_call_operand.vmem [shape: f32[1,16], index: 6, kind: input, shape index: {}]
  %s7 = inlined_call_operand.vmem [shape: f32[1,16], index: 7, kind: input, shape index: {}]
  %s8 = inlined_call_operand.vmem [shape: f32[1,16], index: 8, kind: input, shape index: {}]
  %s9 = inlined_call_operand.vmem [shape: bf16[64,64], index: 9, kind: input, shape index: {}]
  %s10 = inlined_call_operand.vmem [shape: f32[1,64], index: 10, kind: input, shape index: {}]
  %s11 = inlined_call_operand.vmem [shape: bf16[256,64], index: 11, kind: input, shape index: {}]
  %s12 = inlined_call_operand.vmem [shape: f32[1,64], index: 12, kind: input, shape index: {}]
  %s13 = inlined_call_operand.hbm [shape: f32[2,16,64], index: 13, kind: output, shape index: {}]
  %s14 = sld [smem:[#allocation0]]
  $region93: #{tpu_custom_call.1} parent=0
    _
  %s16 = ssub.s32 1, %s14
  %s17 = scalar_select 0, %s16, %s14
  $region1: #{tpu_custom_call.1} parent=0
    #allocation2 [shape = 'u8[2048]{0}', space=vmem, size = 0x800, scoped, tag = 'input window, operand 4, single buffered']
    #allocation3 [shape = 's32[2]{0}', space=sflag, size = 0x8, scoped, tag = 'scoped memory for tpu_custom_call.1']
    #allocation4 [shape = 's32[2]{0}', space=sflag, size = 0x8, scoped, tag = 'scoped memory for tpu_custom_call.1']
    #allocation5 [shape = 'u8[512]{0}', space=vmem, size = 0x400, scoped, tag = 'input window, operand 5, single buffered']
    #allocation6 [shape = 's32[1]{0}', space=sflag, size = 0x4, scoped, tag = 'scoped memory for tpu_custom_call.1']
    #allocation7 [shape = 'u8[16384]{0}', space=vmem, size = 0x4000, scoped, tag = 'output window, operand 0']
    %18 = vsyncpa [#allocation3], 0
    %19 = vsyncpa [#allocation6], 0
    %20 = vsyncpa [#allocation4], 0
    %s21 = scalar_lea.sflag [#allocation4], 1
    %22 = vsyncpa %s21, 0
    loop: start=0, step=1, limit=4
    $region2: #{tpu_custom_call.1} parent=1 // loop_pre_header
      _
    $region3: #{tpu_custom_call.1} parent=1 // loop_header
      %s24 = sphi 0, %s28
      %p25 = scmp.ge.s32.totalorder %s24, 4
      %s34 = sphi 0, %s36
      %s37 = sphi 0, %s34
      %s38 = sphi 0, %s37
      %s54 = sphi 0, %s38
      %s58 = sphi 0, %s58
      %s60 = sphi 0, %s58
      %s61 = sphi 0, %s60
      %s75 = sphi 0, %s61
      %s79 = sphi 0, %s79
      %s81 = sphi 0, %s79
      %s82 = sphi 0, %s81
      %s96 = sphi 0, %s82
      %s100 = sphi 0, %s100
      %s102 = sphi 0, %s100
      %s103 = sphi 0, %s102
      %s117 = sphi 0, %s103
      %s121 = sphi 0, %s121
      %s123 = sphi 0, %s121
      %s124 = sphi 0, %s123
      %s138 = sphi 0, %s124
      %s142 = sphi 0, %s142
      %s144 = sphi 0, %s142
      %s145 = sphi 0, %s144
      %s159 = sphi 0, %s145
      %s163 = sphi 0, %s163
      %s165 = sphi 0, %s163
      %s166 = sphi 0, %s165
      %s180 = sphi 0, %s166
      %s184 = sphi 0, %s184
      %s186 = sphi 0, %s184
      %s187 = sphi 0, %s186
      %s201 = sphi 0, %s187
      %s205 = sphi 0, %s205
      %s207 = sphi 0, %s205
      %s208 = sphi 0, %s207
      %s222 = sphi 0, %s208
      %s226 = sphi 0, %s226
      %s228 = sphi 0, %s226
      %s229 = sphi 0, %s228
      %s243 = sphi 0, %s229
      %s247 = sphi 0, %s247
      %s249 = sphi 0, %s247
      %s250 = sphi 0, %s249
      %s264 = sphi 0, %s250
      %s268 = sphi 0, %s268
      %s270 = sphi 0, %s268
      %s271 = sphi 0, %s270
      %s285 = sphi 0, %s271
      %s289 = sphi 0, %s289
      %s291 = sphi 0, %s289
      %s292 = sphi 0, %s291
      %s306 = sphi 0, %s292
      %s312 = sphi 0, %s314
      %s315 = sphi 0, %s312
      %s316 = sphi 0, %s315
      %s332 = sphi 0, %s316
    $region4: #{tpu_custom_call.1} parent=1 // loop_header_branch
      %27 = sbr.rel (%p25) target = $region8
    $region5: #{tpu_custom_call.1} parent=1 // loop_body
      %s29 = ssub.s32 %s24, 1
      %s30 = ssub.s32 %s24, 2
      %s31 = sadd.s32 %s24, 1
      %s32 = ssub.s32 %s24, %s31
      %p33 = scmp.eq.s32.totalorder %s32, 0
      %s35 = sadd.s32 %s34, 1
      %s36 = scalar_select %p33, %s34, %s35
      %p39 = pneg %p33
      %p40 = scmp.eq.s32.totalorder %s24, 1
      %p41 = por %p39, %p40
      %p42 = scmp.ne.s32.totalorder %s34, %s37
      %p43 = scmp.eq.s32.totalorder %s24, 0
      %p44 = por %p42, %p43
      %p45 = scmp.ne.s32.totalorder %s34, %s37
      %p46 = scmp.eq.s32.totalorder %s29, 1
      %p47 = por %p45, %p46
      %p48 = scmp.ne.s32.totalorder %s37, %s38
      %p49 = scmp.eq.s32.totalorder %s29, 0
      %p50 = por %p48, %p49
      %p51 = scmp.ne.s32.totalorder %s37, %s38
      %p52 = scmp.eq.s32.totalorder %s30, 1
      %p53 = por %p51, %p52
      %p55 = scmp.ne.s32.totalorder %s38, %s54
      %p56 = scmp.eq.s32.totalorder %s30, 0
      %p57 = por %p55, %p56
      %s59 = sadd.s32 %s58, 1
      %p62 = scmp.eq.s32.totalorder %s24, 1
      %p63 = scmp.ne.s32.totalorder %s58, %s60
      %p64 = scmp.eq.s32.totalorder %s24, 0
      %p65 = por %p63, %p64
      %p66 = scmp.ne.s32.totalorder %s58, %s60
      %p67 = scmp.eq.s32.totalorder %s29, 1
      %p68 = por %p66, %p67
      %p69 = scmp.ne.s32.totalorder %s60, %s61
      %p70 = scmp.eq.s32.totalorder %s29, 0
      %p71 = por %p69, %p70
      %p72 = scmp.ne.s32.totalorder %s60, %s61
      %p73 = scmp.eq.s32.totalorder %s30, 1
      %p74 = por %p72, %p73
      %p76 = scmp.ne.s32.totalorder %s61, %s75
      %p77 = scmp.eq.s32.totalorder %s30, 0
      %p78 = por %p76, %p77
      %s80 = sadd.s32 %s79, 1
      %p83 = scmp.eq.s32.totalorder %s24, 1
      %p84 = scmp.ne.s32.totalorder %s79, %s81
      %p85 = scmp.eq.s32.totalorder %s24, 0
      %p86 = por %p84, %p85
      %p87 = scmp.ne.s32.totalorder %s79, %s81
      %p88 = scmp.eq.s32.totalorder %s29, 1
      %p89 = por %p87, %p88
      %p90 = scmp.ne.s32.totalorder %s81, %s82
      %p91 = scmp.eq.s32.totalorder %s29, 0
      %p92 = por %p90, %p91
      %p93 = scmp.ne.s32.totalorder %s81, %s82
      %p94 = scmp.eq.s32.totalorder %s30, 1
      %p95 = por %p93, %p94
      %p97 = scmp.ne.s32.totalorder %s82, %s96
      %p98 = scmp.eq.s32.totalorder %s30, 0
      %p99 = por %p97, %p98
      %s101 = sadd.s32 %s100, 1
      %p104 = scmp.eq.s32.totalorder %s24, 1
      %p105 = scmp.ne.s32.totalorder %s100, %s102
      %p106 = scmp.eq.s32.totalorder %s24, 0
      %p107 = por %p105, %p106
      %p108 = scmp.ne.s32.totalorder %s100, %s102
      %p109 = scmp.eq.s32.totalorder %s29, 1
      %p110 = por %p108, %p109
      %p111 = scmp.ne.s32.totalorder %s102, %s103
      %p112 = scmp.eq.s32.totalorder %s29, 0
      %p113 = por %p111, %p112
      %p114 = scmp.ne.s32.totalorder %s102, %s103
      %p115 = scmp.eq.s32.totalorder %s30, 1
      %p116 = por %p114, %p115
      %p118 = scmp.ne.s32.totalorder %s103, %s117
      %p119 = scmp.eq.s32.totalorder %s30, 0
      %p120 = por %p118, %p119
      %s122 = sadd.s32 %s121, 1
      %p125 = scmp.eq.s32.totalorder %s24, 1
      %p126 = scmp.ne.s32.totalorder %s121, %s123
      %p127 = scmp.eq.s32.totalorder %s24, 0
      %p128 = por %p126, %p127
      %p129 = scmp.ne.s32.totalorder %s121, %s123
      %p130 = scmp.eq.s32.totalorder %s29, 1
      %p131 = por %p129, %p130
      %p132 = scmp.ne.s32.totalorder %s123, %s124
      %p133 = scmp.eq.s32.totalorder %s29, 0
      %p134 = por %p132, %p133
      %p135 = scmp.ne.s32.totalorder %s123, %s124
      %p136 = scmp.eq.s32.totalorder %s30, 1
      %p137 = por %p135, %p136
      %p139 = scmp.ne.s32.totalorder %s124, %s138
      %p140 = scmp.eq.s32.totalorder %s30, 0
      %p141 = por %p139, %p140
      %s143 = sadd.s32 %s142, 1
      %p146 = scmp.eq.s32.totalorder %s24, 1
      %p147 = scmp.ne.s32.totalorder %s142, %s144
      %p148 = scmp.eq.s32.totalorder %s24, 0
      %p149 = por %p147, %p148
      %p150 = scmp.ne.s32.totalorder %s142, %s144
      %p151 = scmp.eq.s32.totalorder %s29, 1
      %p152 = por %p150, %p151
      %p153 = scmp.ne.s32.totalorder %s144, %s145
      %p154 = scmp.eq.s32.totalorder %s29, 0
      %p155 = por %p153, %p154
      %p156 = scmp.ne.s32.totalorder %s144, %s145
      %p157 = scmp.eq.s32.totalorder %s30, 1
      %p158 = por %p156, %p157
      %p160 = scmp.ne.s32.totalorder %s145, %s159
      %p161 = scmp.eq.s32.totalorder %s30, 0
      %p162 = por %p160, %p161
      %s164 = sadd.s32 %s163, 1
      %p167 = scmp.eq.s32.totalorder %s24, 1
      %p168 = scmp.ne.s32.totalorder %s163, %s165
      %p169 = scmp.eq.s32.totalorder %s24, 0
      %p170 = por %p168, %p169
      %p171 = scmp.ne.s32.totalorder %s163, %s165
      %p172 = scmp.eq.s32.totalorder %s29, 1
      %p173 = por %p171, %p172
      %p174 = scmp.ne.s32.totalorder %s165, %s166
      %p175 = scmp.eq.s32.totalorder %s29, 0
      %p176 = por %p174, %p175
      %p177 = scmp.ne.s32.totalorder %s165, %s166
      %p178 = scmp.eq.s32.totalorder %s30, 1
      %p179 = por %p177, %p178
      %p181 = scmp.ne.s32.totalorder %s166, %s180
      %p182 = scmp.eq.s32.totalorder %s30, 0
      %p183 = por %p181, %p182
      %s185 = sadd.s32 %s184, 1
      %p188 = scmp.eq.s32.totalorder %s24, 1
      %p189 = scmp.ne.s32.totalorder %s184, %s186
      %p190 = scmp.eq.s32.totalorder %s24, 0
      %p191 = por %p189, %p190
      %p192 = scmp.ne.s32.totalorder %s184, %s186
      %p193 = scmp.eq.s32.totalorder %s29, 1
      %p194 = por %p192, %p193
      %p195 = scmp.ne.s32.totalorder %s186, %s187
      %p196 = scmp.eq.s32.totalorder %s29, 0
      %p197 = por %p195, %p196
      %p198 = scmp.ne.s32.totalorder %s186, %s187
      %p199 = scmp.eq.s32.totalorder %s30, 1
      %p200 = por %p198, %p199
      %p202 = scmp.ne.s32.totalorder %s187, %s201
      %p203 = scmp.eq.s32.totalorder %s30, 0
      %p204 = por %p202, %p203
      %s206 = sadd.s32 %s205, 1
      %p209 = scmp.eq.s32.totalorder %s24, 1
      %p210 = scmp.ne.s32.totalorder %s205, %s207
      %p211 = scmp.eq.s32.totalorder %s24, 0
      %p212 = por %p210, %p211
      %p213 = scmp.ne.s32.totalorder %s205, %s207
      %p214 = scmp.eq.s32.totalorder %s29, 1
      %p215 = por %p213, %p214
      %p216 = scmp.ne.s32.totalorder %s207, %s208
      %p217 = scmp.eq.s32.totalorder %s29, 0
      %p218 = por %p216, %p217
      %p219 = scmp.ne.s32.totalorder %s207, %s208
      %p220 = scmp.eq.s32.totalorder %s30, 1
      %p221 = por %p219, %p220
      %p223 = scmp.ne.s32.totalorder %s208, %s222
      %p224 = scmp.eq.s32.totalorder %s30, 0
      %p225 = por %p223, %p224
      %s227 = sadd.s32 %s226, 1
      %p230 = scmp.eq.s32.totalorder %s24, 1
      %p231 = scmp.ne.s32.totalorder %s226, %s228
      %p232 = scmp.eq.s32.totalorder %s24, 0
      %p233 = por %p231, %p232
      %p234 = scmp.ne.s32.totalorder %s226, %s228
      %p235 = scmp.eq.s32.totalorder %s29, 1
      %p236 = por %p234, %p235
      %p237 = scmp.ne.s32.totalorder %s228, %s229
      %p238 = scmp.eq.s32.totalorder %s29, 0
      %p239 = por %p237, %p238
      %p240 = scmp.ne.s32.totalorder %s228, %s229
      %p241 = scmp.eq.s32.totalorder %s30, 1
      %p242 = por %p240, %p241
      %p244 = scmp.ne.s32.totalorder %s229, %s243
      %p245 = scmp.eq.s32.totalorder %s30, 0
      %p246 = por %p244, %p245
      %s248 = sadd.s32 %s247, 1
      %p251 = scmp.eq.s32.totalorder %s24, 1
      %p252 = scmp.ne.s32.totalorder %s247, %s249
      %p253 = scmp.eq.s32.totalorder %s24, 0
      %p254 = por %p252, %p253
      %p255 = scmp.ne.s32.totalorder %s247, %s249
      %p256 = scmp.eq.s32.totalorder %s29, 1
      %p257 = por %p255, %p256
      %p258 = scmp.ne.s32.totalorder %s249, %s250
      %p259 = scmp.eq.s32.totalorder %s29, 0
      %p260 = por %p258, %p259
      %p261 = scmp.ne.s32.totalorder %s249, %s250
      %p262 = scmp.eq.s32.totalorder %s30, 1
      %p263 = por %p261, %p262
      %p265 = scmp.ne.s32.totalorder %s250, %s264
      %p266 = scmp.eq.s32.totalorder %s30, 0
      %p267 = por %p265, %p266
      %s269 = sadd.s32 %s268, 1
      %p272 = scmp.eq.s32.totalorder %s24, 1
      %p273 = scmp.ne.s32.totalorder %s268, %s270
      %p274 = scmp.eq.s32.totalorder %s24, 0
      %p275 = por %p273, %p274
      %p276 = scmp.ne.s32.totalorder %s268, %s270
      %p277 = scmp.eq.s32.totalorder %s29, 1
      %p278 = por %p276, %p277
      %p279 = scmp.ne.s32.totalorder %s270, %s271
      %p280 = scmp.eq.s32.totalorder %s29, 0
      %p281 = por %p279, %p280
      %p282 = scmp.ne.s32.totalorder %s270, %s271
      %p283 = scmp.eq.s32.totalorder %s30, 1
      %p284 = por %p282, %p283
      %p286 = scmp.ne.s32.totalorder %s271, %s285
      %p287 = scmp.eq.s32.totalorder %s30, 0
      %p288 = por %p286, %p287
      %s290 = sadd.s32 %s289, 1
      %p293 = scmp.eq.s32.totalorder %s24, 1
      %p294 = scmp.ne.s32.totalorder %s289, %s291
      %p295 = scmp.eq.s32.totalorder %s24, 0
      %p296 = por %p294, %p295
      %p297 = scmp.ne.s32.totalorder %s289, %s291
      %p298 = scmp.eq.s32.totalorder %s29, 1
      %p299 = por %p297, %p298
      %p300 = scmp.ne.s32.totalorder %s291, %s292
      %p301 = scmp.eq.s32.totalorder %s29, 0
      %p302 = por %p300, %p301
      %p303 = scmp.ne.s32.totalorder %s291, %s292
      %p304 = scmp.eq.s32.totalorder %s30, 1
      %p305 = por %p303, %p304
      %p307 = scmp.ne.s32.totalorder %s292, %s306
      %p308 = scmp.eq.s32.totalorder %s30, 0
      %p309 = por %p307, %p308
      %s310 = ssub.s32 %s24, %s31
      %p311 = scmp.eq.s32.totalorder %s310, 0
      %s313 = sadd.s32 %s312, 1
      %s314 = scalar_select %p311, %s312, %s313
      %p317 = pneg %p311
      %p318 = scmp.eq.s32.totalorder %s24, 1
      %p319 = por %p317, %p318
      %p320 = scmp.ne.s32.totalorder %s312, %s315
      %p321 = scmp.eq.s32.totalorder %s24, 0
      %p322 = por %p320, %p321
      %p323 = scmp.ne.s32.totalorder %s312, %s315
      %p324 = scmp.eq.s32.totalorder %s29, 1
      %p325 = por %p323, %p324
      %p326 = scmp.ne.s32.totalorder %s315, %s316
      %p327 = scmp.eq.s32.totalorder %s29, 0
      %p328 = por %p326, %p327
      %p329 = scmp.ne.s32.totalorder %s315, %s316
      %p330 = scmp.eq.s32.totalorder %s30, 1
      %p331 = por %p329, %p330
      %p333 = scmp.ne.s32.totalorder %s316, %s332
      %p334 = scmp.eq.s32.totalorder %s30, 0
      %p335 = por %p333, %p334
      %p336 = scmp.le.s32.totalorder 1, %s24
      %p337 = scmp.lt.s32.totalorder %s24, 3
      %p338 = pnand %p336, %p337
      %p339 = pneg %p338
      // Predicated region
      $region9: #{tpu_custom_call.1} parent=5 // pred_check
        _
      $region10: #{tpu_custom_call.1} parent=5 // pred_check_branch
        %341 = sbr.rel (%p338) target = $region12
      $region11: #{tpu_custom_call.1} parent=5 // pred_region
        %s342 = ssub.s32 %s24, 1
        // Predicated region
        $region13: #{tpu_custom_call.1} parent=11 // pred_check
          %p343 = pneg %p71
        $region14: #{tpu_custom_call.1} parent=11 // pred_check_branch
          %345 = sbr.rel (%p343) target = $region16
        $region15: #{tpu_custom_call.1} parent=11 // pred_region
          _
        $region16: #{tpu_custom_call.1} parent=11 // pred_fallthru
          _
        // Predicated region
        $region17: #{tpu_custom_call.1} parent=11 // pred_check
          %p346 = pneg %p92
        $region18: #{tpu_custom_call.1} parent=11 // pred_check_branch
          %348 = sbr.rel (%p346) target = $region20
        $region19: #{tpu_custom_call.1} parent=11 // pred_region
          _
        $region20: #{tpu_custom_call.1} parent=11 // pred_fallthru
          _
        // Predicated region
        $region21: #{tpu_custom_call.1} parent=11 // pred_check
          %p349 = pneg %p113
        $region22: #{tpu_custom_call.1} parent=11 // pred_check_branch
          %351 = sbr.rel (%p349) target = $region24
        $region23: #{tpu_custom_call.1} parent=11 // pred_region
          _
        $region24: #{tpu_custom_call.1} parent=11 // pred_fallthru
          _
        // Predicated region
        $region25: #{tpu_custom_call.1} parent=11 // pred_check
          %p352 = pneg %p134
        $region26: #{tpu_custom_call.1} parent=11 // pred_check_branch
          %354 = sbr.rel (%p352) target = $region28
        $region27: #{tpu_custom_call.1} parent=11 // pred_region
          %356 = vsyncadd [#allocation3], 0
          %s358 = sshll.u32 %s4, 4
          %s359 = int_to_ptr.hbm [resolvable:$true] %s358
          %s360 = sshll.u32 [#allocation2], 4
          %s361 = int_to_ptr.vmem [resolvable:$true] %s360
          %363 = dma.hbm_to_vmem [thread:$0]  %s359, 64, %s361, [#allocation3]
        $region28: #{tpu_custom_call.1} parent=11 // pred_fallthru
          _
        // Predicated region
        $region29: #{tpu_custom_call.1} parent=11 // pred_check
          %p364 = pneg %p155
        $region30: #{tpu_custom_call.1} parent=11 // pred_check_branch
          %366 = sbr.rel (%p364) target = $region32
        $region31: #{tpu_custom_call.1} parent=11 // pred_region
          %368 = vsyncadd [#allocation6], 0
          %s370 = sshll.u32 %s5, 4
          %s371 = int_to_ptr.hbm [resolvable:$true] %s370
          %s372 = sshll.u32 [#allocation5], 4
          %s373 = int_to_ptr.vmem [resolvable:$true] %s372
          %375 = dma.hbm_to_vmem [thread:$0]  %s371, 16, %s373, [#allocation6]
        $region32: #{tpu_custom_call.1} parent=11 // pred_fallthru
          _
        // Predicated region
        $region33: #{tpu_custom_call.1} parent=11 // pred_check
          %p376 = pneg %p176
        $region34: #{tpu_custom_call.1} parent=11 // pred_check_branch
          %378 = sbr.rel (%p376) target = $region36
        $region35: #{tpu_custom_call.1} parent=11 // pred_region
          _
        $region36: #{tpu_custom_call.1} parent=11 // pred_fallthru
          _
        // Predicated region
        $region37: #{tpu_custom_call.1} parent=11 // pred_check
          %p379 = pneg %p197
        $region38: #{tpu_custom_call.1} parent=11 // pred_check_branch
          %381 = sbr.rel (%p379) target = $region40
        $region39: #{tpu_custom_call.1} parent=11 // pred_region
          _
        $region40: #{tpu_custom_call.1} parent=11 // pred_fallthru
          _
        // Predicated region
        $region41: #{tpu_custom_call.1} parent=11 // pred_check
          %p382 = pneg %p218
        $region42: #{tpu_custom_call.1} parent=11 // pred_check_branch
          %384 = sbr.rel (%p382) target = $region44
        $region43: #{tpu_custom_call.1} parent=11 // pred_region
          _
        $region44: #{tpu_custom_call.1} parent=11 // pred_fallthru
          _
        // Predicated region
        $region45: #{tpu_custom_call.1} parent=11 // pred_check
          %p385 = pneg %p239
        $region46: #{tpu_custom_call.1} parent=11 // pred_check_branch
          %387 = sbr.rel (%p385) target = $region48
        $region47: #{tpu_custom_call.1} parent=11 // pred_region
          _
        $region48: #{tpu_custom_call.1} parent=11 // pred_fallthru
          _
        // Predicated region
        $region49: #{tpu_custom_call.1} parent=11 // pred_check
          %p388 = pneg %p260
        $region50: #{tpu_custom_call.1} parent=11 // pred_check_branch
          %390 = sbr.rel (%p388) target = $region52
        $region51: #{tpu_custom_call.1} parent=11 // pred_region
          _
        $region52: #{tpu_custom_call.1} parent=11 // pred_fallthru
          _
        // Predicated region
        $region53: #{tpu_custom_call.1} parent=11 // pred_check
          %p391 = pneg %p281
        $region54: #{tpu_custom_call.1} parent=11 // pred_check_branch
          %393 = sbr.rel (%p391) target = $region56
        $region55: #{tpu_custom_call.1} parent=11 // pred_region
          _
        $region56: #{tpu_custom_call.1} parent=11 // pred_fallthru
          _
        // Predicated region
        $region57: #{tpu_custom_call.1} parent=11 // pred_check
          %p394 = pneg %p302
        $region58: #{tpu_custom_call.1} parent=11 // pred_check_branch
          %396 = sbr.rel (%p394) target = $region60
        $region59: #{tpu_custom_call.1} parent=11 // pred_region
          _
        $region60: #{tpu_custom_call.1} parent=11 // pred_fallthru
          _
      $region12: #{tpu_custom_call.1} parent=5 // pred_fallthru
        _
      %p397 = scmp.lt.s32.totalorder %s24, 2
      // Predicated region
      $region61: #{tpu_custom_call.1} parent=5 // pred_check
        %p398 = pneg %p397
      $region62: #{tpu_custom_call.1} parent=5 // pred_check_branch
        %400 = sbr.rel (%p398) target = $region64
      $region63: #{tpu_custom_call.1} parent=5 // pred_region
        // Predicated region
        $region65: #{tpu_custom_call.1} parent=63 // pred_check
          %p401 = pneg %p44
        $region66: #{tpu_custom_call.1} parent=63 // pred_check_branch
          %403 = sbr.rel (%p401) target = $region68
        $region67: #{tpu_custom_call.1} parent=63 // pred_region
          %p404 = scmp.lt.s32.totalorder %s24, 1
          %s405 = scalar_select %p404, %s24, 1
          %s406 = smul.addr %s405, 2
          %s407 = smul.addr %s406, 8
          %s408 = scalar_lea.vmem %s0, %s407
        $region68: #{tpu_custom_call.1} parent=63 // pred_fallthru
          _
      $region64: #{tpu_custom_call.1} parent=5 // pred_fallthru
        _
      %p409 = scmp.le.s32.totalorder 1, %s24
      %p410 = scmp.lt.s32.totalorder %s24, 3
      %p411 = pnand %p409, %p410
      %p412 = pneg %p411
      // Predicated region
      $region69: #{tpu_custom_call.1} parent=5 // pred_check
        _
      $region70: #{tpu_custom_call.1} parent=5 // pred_check_branch
        %414 = sbr.rel (%p411) target = $region72
      $region71: #{tpu_custom_call.1} parent=5 // pred_region
        %s415 = ssub.s32 %s24, 1
        // Predicated region
        $region73: #{tpu_custom_call.1} parent=71 // pred_check
          %p416 = pneg %p134
        $region74: #{tpu_custom_call.1} parent=71 // pred_check_branch
          %418 = sbr.rel (%p416) target = $region76
        $region75: #{tpu_custom_call.1} parent=71 // pred_region
          %420 = dma.done [#allocation3], 64
        $region76: #{tpu_custom_call.1} parent=71 // pred_fallthru
          _
        // Predicated region
        $region77: #{tpu_custom_call.1} parent=71 // pred_check
          %p421 = pneg %p155
        $region78: #{tpu_custom_call.1} parent=71 // pred_check_branch
          %423 = sbr.rel (%p421) target = $region80
        $region79: #{tpu_custom_call.1} parent=71 // pred_region
          %425 = dma.done [#allocation6], 16
        $region80: #{tpu_custom_call.1} parent=71 // pred_fallthru
          _
        %p426 = scmp.lt.s32.totalorder %s29, 1
        %s427 = scalar_select %p426, %s29, 1
        %s428 = smul.addr %s427, 2
        %s429 = smul.addr %s428, 8
        %s430 = scalar_lea.vmem %s0, %s429
        %p431 = pneg %p50
        %p432 = pneg %p47
        %p433 = pneg %p71
        %p434 = pneg %p68
        %p435 = pneg %p92
        %p436 = pneg %p89
        %p437 = pneg %p113
        %p438 = pneg %p110
        %p439 = pneg %p134
        %p440 = pneg %p131
        %p441 = pneg %p155
        %p442 = pneg %p152
        %p443 = pneg %p176
        %p444 = pneg %p173
        %p445 = pneg %p197
        %p446 = pneg %p194
        %p447 = pneg %p218
        %p448 = pneg %p215
        %p449 = pneg %p239
        %p450 = pneg %p236
        %p451 = pneg %p260
        %p452 = pneg %p257
        %p453 = pneg %p281
        %p454 = pneg %p278
        %p455 = pneg %p302
        %p456 = pneg %p299
        %p457 = pneg %p328
        %p458 = pneg %p325
        %s459 = sand.u32 %s315, 1
        %s460 = scalar_lea.sflag [#allocation4], %s459
        %s461 = sand.u32 %s315, 1
        %s462 = smul.addr %s461, 16
        %s463 = scalar_lea.vmem [#allocation7], %s462
        %p464 = scmp.lt.s32.totalorder %s29, 1
        %s465 = scalar_select %p464, %s29, 1
        %s466 = smul.addr %s465, 2
        %s467 = smul.addr %s466, 8
        %s468 = scalar_lea.vmem %s0, %s467
        %v470 = vld [vmem:[%s468] sm:$0xff]
        %v471 = vld [vmem:[%s468 + $0x8] sm:$0xff]
        %v472 = vld [vmem:[%s1] sm:$0x1]
        %v473 = vld [vmem:[%s2] sm:$0x1]
        %vm474 = vcmask 523264
        %v475 = vsel %vm474, %v470, 0.0
        %476 = vadd.xlane.f32.xlu0 %v475
        %v477 = vpop.xlane.xlu0 %476
        %v478 = vsel %vm474, %v471, 0.0
        %479 = vadd.xlane.f32.xlu0 %v478
        %v480 = vpop.xlane.xlu0 %479
        %v481 = vrcp.pop 64.0
        %v482 = vmul.f32 64.0, %v481
        %v483 = vsub.f32 1.0, %v482
        %v484 = vmul.f32 %v481, %v483
        %v485 = vadd.f32 %v481, %v484
        %vm486 = vweird.f32 %v481
        %v487 = vsel %vm486, %v481, %v485
        %v488 = vmul.f32 %v477, %v487
        %v489 = vmul.f32 %v480, %v487
        %v490 = vsub.f32 %v470, %v488
        %v491 = vsub.f32 %v471, %v489
        %v492 = vmul.f32 %v490, %v490
        %v493 = vmul.f32 %v491, %v491
        %v494 = vsel %vm474, %v492, 0.0
        %495 = vadd.xlane.f32.xlu0 %v494
        %v496 = vpop.xlane.xlu0 %495
        %v497 = vsel %vm474, %v493, 0.0
        %498 = vadd.xlane.f32.xlu0 %v497
        %v499 = vpop.xlane.xlu0 %498
        %v500 = vmul.f32 %v496, %v487
        %v501 = vmul.f32 %v499, %v487
        %v502 = vadd.f32 %v500, 1e-05
        %v503 = vadd.f32 %v501, 1e-05
        %v504 = vrsqrt.pop %v502
        %v505 = vmul.f32 %v504, %v502
        %v506 = vmul.f32 %v505, %v504
        %v507 = vmul.f32 0.5, %v506
        %v508 = vsub.f32 1.5, %v507
        %v509 = vmul.f32 %v504, %v508
        %vm510 = vweird.f32 %v502
        %vm511 = vweird.f32 %v504
        %vm512 = vmor %vm510, %vm511
        %v513 = vsel %vm512, %v504, %v509
        %v514 = vrsqrt.pop %v503
        %v515 = vmul.f32 %v514, %v503
        %v516 = vmul.f32 %v515, %v514
        %v517 = vmul.f32 0.5, %v516
        %v518 = vsub.f32 1.5, %v517
        %v519 = vmul.f32 %v514, %v518
        %vm520 = vweird.f32 %v503
        %vm521 = vweird.f32 %v514
        %vm522 = vmor %vm520, %vm521
        %v523 = vsel %vm522, %v514, %v519
        %v524 = vmul.f32 %v490, %v513
        %v525 = vmul.f32 %v491, %v523
        %v527 = vperm.slane %v472, 0
        %v529 = vmul.f32 %v524, %v527
        %v530 = vmul.f32 %v525, %v527
        %v532 = vperm.slane %v473, 0
        %v534 = vadd.f32 %v529, %v532
        %v535 = vadd.f32 %v530, %v532
        %v536 = vpack.c.bf16 %v535, %v534
        %v537 = vld [vmem:[%s3] sm:$0xff]
        %v538 = vld [vmem:[%s3 + $0x8] sm:$0xff]
        %v539 = vld [vmem:[%s3 + $0x10] sm:$0xff]
        %v540 = vld [vmem:[%s3 + $0x18] sm:$0xff]
        %v541 = vld [vmem:[%s3 + $0x20] sm:$0xff]
        %v542 = vld [vmem:[%s3 + $0x28] sm:$0xff]
        %v543 = vld [vmem:[%s3 + $0x30] sm:$0xff]
        %v544 = vld [vmem:[%s3 + $0x38] sm:$0xff]
        %v545 = vld [vmem:[%s3 + $0x40] sm:$0xff]
        %v546 = vld [vmem:[%s3 + $0x48] sm:$0xff]
        %v547 = vld [vmem:[%s3 + $0x50] sm:$0xff]
        %v548 = vld [vmem:[%s3 + $0x58] sm:$0xff]
        %v549 = vld [vmem:[%s3 + $0x60] sm:$0xff]
        %v550 = vld [vmem:[%s3 + $0x68] sm:$0xff]
        %v551 = vld [vmem:[%s3 + $0x70] sm:$0xff]
        %v552 = vld [vmem:[%s3 + $0x78] sm:$0xff]
        %v553 = vld [vmem:[#allocation2] sm:$0xf]
        %v555 = vperm.slane %v553, 0
        %v556 = vperm.slane %v553, 1
        %v557 = vperm.slane %v553, 2
        %v558 = vperm.slane %v553, 3
        %v579 = vunpack.c.l.b16 %v537
        %v580 = vunpack.c.h.b16 %v537
        %v581 = vunpack.c.l.b16 %v538
        %v582 = vunpack.c.h.b16 %v538
        %v583 = vunpack.c.l.b16 %v539
        %v584 = vunpack.c.h.b16 %v539
        %v585 = vunpack.c.l.b16 %v540
        %v586 = vunpack.c.h.b16 %v540
        %v587 = vunpack.c.l.b16 %v541
        %v588 = vunpack.c.h.b16 %v541
        %v589 = vunpack.c.l.b16 %v542
        %v590 = vunpack.c.h.b16 %v542
        %v591 = vunpack.c.l.b16 %v543
        %v592 = vunpack.c.h.b16 %v543
        %v593 = vunpack.c.l.b16 %v544
        %v594 = vunpack.c.h.b16 %v544
        %v595 = vunpack.c.l.b16 %v545
        %v596 = vunpack.c.h.b16 %v545
        %v597 = vunpack.c.l.b16 %v546
        %v598 = vunpack.c.h.b16 %v546
        %v599 = vunpack.c.l.b16 %v547
        %v600 = vunpack.c.h.b16 %v547
        %v601 = vunpack.c.l.b16 %v548
        %v602 = vunpack.c.h.b16 %v548
        %v603 = vunpack.c.l.b16 %v549
        %v604 = vunpack.c.h.b16 %v549
        %v605 = vunpack.c.l.b16 %v550
        %v606 = vunpack.c.h.b16 %v550
        %v607 = vunpack.c.l.b16 %v551
        %v608 = vunpack.c.h.b16 %v551
        %v609 = vunpack.c.l.b16 %v552
        %v610 = vunpack.c.h.b16 %v552
        %v611 = vpack.c.b16 %v583, %v579
        %v612 = vpack.c.b16 %v584, %v580
        %v613 = vpack.c.b16 %v585, %v581
        %v614 = vpack.c.b16 %v586, %v582
        %v615 = vpack.c.b16 %v591, %v587
        %v616 = vpack.c.b16 %v592, %v588
        %v617 = vpack.c.b16 %v593, %v589
        %v618 = vpack.c.b16 %v594, %v590
        %v619 = vpack.c.b16 %v599, %v595
        %v620 = vpack.c.b16 %v600, %v596
        %v621 = vpack.c.b16 %v601, %v597
        %v622 = vpack.c.b16 %v602, %v598
        %v623 = vpack.c.b16 %v607, %v603
        %v624 = vpack.c.b16 %v608, %v604
        %v625 = vpack.c.b16 %v609, %v605
        %v626 = vpack.c.b16 %v610, %v606
        %v644 = vsel %vm474, %v536, 0
        %646 = vmatpush.bf16.msra.mxu0 0
        %647 = vmatpush.bf16.msra.mxu0 0
        %648 = vmatpush.bf16.msra.mxu0 0
        %649 = vmatpush.bf16.msra.mxu0 0
        %650 = vmatpush.bf16.msra.mxu0 %v623
        %651 = vmatpush.bf16.msra.mxu0 %v619
        %652 = vmatpush.bf16.msra.mxu0 %v615
        %653 = vmatpush.bf16.msra.mxu0 %v611
        %654 = vmatmul.bf16.gmra.mxu0 %v644
        %v655 = vpop.f32.mrf.mxu0
        %v656 = vadd.f32 %v555, %v655
        %v657 = vpop.f32.mrf.mxu0
        %v658 = vadd.f32 %v555, %v657
        %659 = vdwg.mxu0
        %660 = vmatpush.bf16.msra.mxu0 0
        %661 = vmatpush.bf16.msra.mxu0 0
        %662 = vmatpush.bf16.msra.mxu0 0
        %663 = vmatpush.bf16.msra.mxu0 0
        %664 = vmatpush.bf16.msra.mxu0 %v624
        %665 = vmatpush.bf16.msra.mxu0 %v620
        %666 = vmatpush.bf16.msra.mxu0 %v616
        %667 = vmatpush.bf16.msra.mxu0 %v612
        %668 = vmatmul.bf16.gmra.mxu0 %v644
        %v669 = vpop.f32.mrf.mxu0
        %v670 = vadd.f32 %v556, %v669
        %v671 = vpop.f32.mrf.mxu0
        %v672 = vadd.f32 %v556, %v671
        %673 = vdwg.mxu0
        %674 = vmatpush.bf16.msra.mxu0 0
        %675 = vmatpush.bf16.msra.mxu0 0
        %676 = vmatpush.bf16.msra.mxu0 0
        %677 = vmatpush.bf16.msra.mxu0 0
        %678 = vmatpush.bf16.msra.mxu0 %v625
        %679 = vmatpush.bf16.msra.mxu0 %v621
        %680 = vmatpush.bf16.msra.mxu0 %v617
        %681 = vmatpush.bf16.msra.mxu0 %v613
        %682 = vmatmul.bf16.gmra.mxu0 %v644
        %v683 = vpop.f32.mrf.mxu0
        %v684 = vadd.f32 %v557, %v683
        %v685 = vpop.f32.mrf.mxu0
        %v686 = vadd.f32 %v557, %v685
        %687 = vdwg.mxu0
        %688 = vmatpush.bf16.msra.mxu0 0
        %689 = vmatpush.bf16.msra.mxu0 0
        %690 = vmatpush.bf16.msra.mxu0 0
        %691 = vmatpush.bf16.msra.mxu0 0
        %692 = vmatpush.bf16.msra.mxu0 %v626
        %693 = vmatpush.bf16.msra.mxu0 %v622
        %694 = vmatpush.bf16.msra.mxu0 %v618
        %695 = vmatpush.bf16.msra.mxu0 %v614
        %696 = vmatmul.bf16.gmra.mxu0 %v644
        %v697 = vpop.f32.mrf.mxu0
        %v698 = vadd.f32 %v558, %v697
        %v699 = vpop.f32.mrf.mxu0
        %v700 = vadd.f32 %v558, %v699
        %701 = vdwg.mxu0
        %v702 = vld [vmem:[#allocation5] sm:$0x1]
        %v703 = vld [vmem:[%s6] sm:$0x1]
        %v704 = vld [vmem:[%s7] sm:$0x1]
        %v705 = vld [vmem:[%s8] sm:$0x1]
        %vm706 = vcmask 130048
        %v707 = vsel %vm706, %v684, 0.0
        %708 = vadd.xlane.f32.xlu0 %v707
        %v709 = vpop.xlane.xlu0 %708
        %v710 = vsel %vm706, %v686, 0.0
        %711 = vadd.xlane.f32.xlu0 %v710
        %v712 = vpop.xlane.xlu0 %711
        %v713 = vrcp.pop 16.0
        %v714 = vmul.f32 16.0, %v713
        %v715 = vsub.f32 1.0, %v714
        %v716 = vmul.f32 %v713, %v715
        %v717 = vadd.f32 %v713, %v716
        %vm718 = vweird.f32 %v713
        %v719 = vsel %vm718, %v713, %v717
        %v720 = vmul.f32 %v709, %v719
        %v721 = vmul.f32 %v712, %v719
        %v722 = vsub.f32 %v684, %v720
        %v723 = vsub.f32 %v686, %v721
        %v724 = vmul.f32 %v722, %v722
        %v725 = vmul.f32 %v723, %v723
        %v726 = vsel %vm706, %v724, 0.0
        %727 = vadd.xlane.f32.xlu0 %v726
        %v728 = vpop.xlane.xlu0 %727
        %v729 = vsel %vm706, %v725, 0.0
        %730 = vadd.xlane.f32.xlu0 %v729
        %v731 = vpop.xlane.xlu0 %730
        %v732 = vmul.f32 %v728, %v719
        %v733 = vmul.f32 %v731, %v719
        %v734 = vadd.f32 %v732, 1e-05
        %v735 = vadd.f32 %v733, 1e-05
        %v736 = vrsqrt.pop %v734
        %v737 = vmul.f32 %v736, %v734
        %v738 = vmul.f32 %v737, %v736
        %v739 = vmul.f32 0.5, %v738
        %v740 = vsub.f32 1.5, %v739
        %v741 = vmul.f32 %v736, %v740
        %vm742 = vweird.f32 %v734
        %vm743 = vweird.f32 %v736
        %vm744 = vmor %vm742, %vm743
        %v745 = vsel %vm744, %v736, %v741
        %v746 = vrsqrt.pop %v735
        %v747 = vmul.f32 %v746, %v735
        %v748 = vmul.f32 %v747, %v746
        %v749 = vmul.f32 0.5, %v748
        %v750 = vsub.f32 1.5, %v749
        %v751 = vmul.f32 %v746, %v750
        %vm752 = vweird.f32 %v735
        %vm753 = vweird.f32 %v746
        %vm754 = vmor %vm752, %vm753
        %v755 = vsel %vm754, %v746, %v751
        %v756 = vmul.f32 %v722, %v745
        %v757 = vmul.f32 %v723, %v755
        %v759 = vperm.slane %v702, 0
        %v761 = vmul.f32 %v756, %v759
        %v762 = vmul.f32 %v757, %v759
        %v764 = vperm.slane %v703, 0
        %v766 = vadd.f32 %v761, %v764
        %v767 = vadd.f32 %v762, %v764
        %v768 = vmul.f32 %v766, 0.25
        %v769 = vmul.f32 %v767, 0.25
        %772 = vrot.lane.b32.xlu0 %v684, 64
        %v773 = vpop.permute.xlu0 %772
        %774 = vrot.lane.b32.xlu0 %v686, 64
        %v775 = vpop.permute.xlu0 %774
        %v778 = vsel %vm706, %v773, 0.0
        %779 = vadd.xlane.f32.xlu0 %v778
        %v780 = vpop.xlane.xlu0 %779
        %v781 = vsel %vm706, %v775, 0.0
        %782 = vadd.xlane.f32.xlu0 %v781
        %v783 = vpop.xlane.xlu0 %782
        %v784 = vmul.f32 %v780, %v719
        %v785 = vmul.f32 %v783, %v719
        %v786 = vsub.f32 %v684, %v784
        %v787 = vsub.f32 %v686, %v785
        %v788 = vmul.f32 %v786, %v786
        %v789 = vmul.f32 %v787, %v787
        %792 = vrot.lane.b32.xlu0 %v788, 64
        %v793 = vpop.permute.xlu0 %792
        %794 = vrot.lane.b32.xlu0 %v789, 64
        %v795 = vpop.permute.xlu0 %794
        %v798 = vsel %vm706, %v793, 0.0
        %799 = vadd.xlane.f32.xlu0 %v798
        %v800 = vpop.xlane.xlu0 %799
        %v801 = vsel %vm706, %v795, 0.0
        %802 = vadd.xlane.f32.xlu0 %v801
        %v803 = vpop.xlane.xlu0 %802
        %v804 = vmul.f32 %v800, %v719
        %v805 = vmul.f32 %v803, %v719
        %v806 = vadd.f32 %v804, 1e-05
        %v807 = vadd.f32 %v805, 1e-05
        %v808 = vrsqrt.pop %v806
        %v809 = vmul.f32 %v808, %v806
        %v810 = vmul.f32 %v809, %v808
        %v811 = vmul.f32 0.5, %v810
        %v812 = vsub.f32 1.5, %v811
        %v813 = vmul.f32 %v808, %v812
        %vm814 = vweird.f32 %v806
        %vm815 = vweird.f32 %v808
        %vm816 = vmor %vm814, %vm815
        %v817 = vsel %vm816, %v808, %v813
        %v818 = vrsqrt.pop %v807
        %v819 = vmul.f32 %v818, %v807
        %v820 = vmul.f32 %v819, %v818
        %v821 = vmul.f32 0.5, %v820
        %v822 = vsub.f32 1.5, %v821
        %v823 = vmul.f32 %v818, %v822
        %vm824 = vweird.f32 %v807
        %vm825 = vweird.f32 %v818
        %vm826 = vmor %vm824, %vm825
        %v827 = vsel %vm826, %v818, %v823
        %v828 = vmul.f32 %v786, %v817
        %v829 = vmul.f32 %v787, %v827
        %v831 = vperm.slane %v704, 0
        %832 = vrot.lane.b32.xlu0 %v831, 64
        %v833 = vpop.permute.xlu0 %832
        %v835 = vmul.f32 %v828, %v833
        %v836 = vmul.f32 %v829, %v833
        %v838 = vperm.slane %v705, 0
        %839 = vrot.lane.b32.xlu0 %v838, 64
        %v840 = vpop.permute.xlu0 %839
        %v842 = vadd.f32 %v835, %v840
        %v843 = vadd.f32 %v836, %v840
        %v844 = vpack.c.bf16 %v769, %v768
        %v845 = vpack.c.bf16 %v843, %v842
        %847 = vrot.lane.b32.xlu0 %v845, 64
        %v848 = vpop.permute.xlu0 %847
        %v850 = vsel %vm706, %v844, 0
        %v853 = vsel %vm706, %v848, 0
        %855 = vmatpush.bf16.xpose.msra.mxu0 0
        %856 = vmatpush.bf16.xpose.msra.mxu0 0
        %857 = vmatpush.bf16.xpose.msra.mxu0 0
        %858 = vmatpush.bf16.xpose.msra.mxu0 0
        %859 = vmatpush.bf16.xpose.msra.mxu0 0
        %860 = vmatpush.bf16.xpose.msra.mxu0 0
        %861 = vmatpush.bf16.xpose.msra.mxu0 0
        %862 = vmatpush.bf16.xpose.msra.mxu0 %v853
        %863 = vmatmul.bf16.gmra.mxu0 %v850
        %v864 = vpop.f32.mrf.mxu0
        %v865 = vadd.f32 0.0, %v864
        %v866 = vpop.f32.mrf.mxu0
        %v867 = vadd.f32 0.0, %v866
        %868 = vdwg.mxu0
        %v869 = vsel %vm706, %v865, -inf
        %870 = vmax.xlane.f32.xlu0 %v869
        %v871 = vpop.xlane.xlu0 %870
        %v872 = vsel %vm706, %v867, -inf
        %873 = vmax.xlane.f32.xlu0 %v872
        %v874 = vpop.xlane.xlu0 %873
        %v875 = vsub.f32 %v865, %v871
        %v876 = vsub.f32 %v867, %v874
        %v877 = vmul.f32 %v875, 1.442695
        %v878 = vpow.pop %v877
        %v879 = vmul.f32 %v876, 1.442695
        %v880 = vpow.pop %v879
        %v881 = vsel %vm706, %v878, 0.0
        %882 = vadd.xlane.f32.xlu0 %v881
        %v883 = vpop.xlane.xlu0 %882
        %v884 = vsel %vm706, %v880, 0.0
        %885 = vadd.xlane.f32.xlu0 %v884
        %v886 = vpop.xlane.xlu0 %885
        %v887 = vpack.c.bf16 %v880, %v878
        %v888 = vpack.c.bf16 %v700, %v698
        %v890 = vsel %vm706, %v887, 0
        %892 = vmatpush.bf16.msra.mxu0 0
        %893 = vmatpush.bf16.msra.mxu0 0
        %894 = vmatpush.bf16.msra.mxu0 0
        %895 = vmatpush.bf16.msra.mxu0 0
        %896 = vmatpush.bf16.msra.mxu0 0
        %897 = vmatpush.bf16.msra.mxu0 0
        %898 = vmatpush.bf16.msra.mxu0 0
        %899 = vmatpush.bf16.msra.mxu0 %v888
        %900 = vmatmul.bf16.gmra.mxu0 %v890
        %v901 = vpop.f32.mrf.mxu0
        %v902 = vadd.f32 0.0, %v901
        %v903 = vpop.f32.mrf.mxu0
        %v904 = vadd.f32 0.0, %v903
        %905 = vdwg.mxu0
        %v906 = vrcp.pop %v883
        %v907 = vrcp.pop %v886
        %v908 = vmul.f32 %v902, %v906
        %v909 = vmul.f32 %v904, %v907
        %v910 = vpack.c.bf16 %v909, %v908
        %v911 = vld [vmem:[%s9] sm:$0xf]
        %v912 = vld [vmem:[%s9 + $0x4] sm:$0xf]
        %913 = vrot.lane.b32.xlu0 %v684, 112
        %v914 = vpop.permute.xlu0 %913
        %915 = vrot.lane.b32.xlu0 %v686, 112
        %v916 = vpop.permute.xlu0 %915
        %v919 = vsel %vm706, %v914, 0.0
        %920 = vadd.xlane.f32.xlu0 %v919
        %v921 = vpop.xlane.xlu0 %920
        %v922 = vsel %vm706, %v916, 0.0
        %923 = vadd.xlane.f32.xlu0 %v922
        %v924 = vpop.xlane.xlu0 %923
        %v925 = vmul.f32 %v921, %v719
        %v926 = vmul.f32 %v924, %v719
        %v927 = vsub.f32 %v684, %v925
        %v928 = vsub.f32 %v686, %v926
        %v929 = vmul.f32 %v927, %v927
        %v930 = vmul.f32 %v928, %v928
        %933 = vrot.lane.b32.xlu0 %v929, 112
        %v934 = vpop.permute.xlu0 %933
        %935 = vrot.lane.b32.xlu0 %v930, 112
        %v936 = vpop.permute.xlu0 %935
        %v939 = vsel %vm706, %v934, 0.0
        %940 = vadd.xlane.f32.xlu0 %v939
        %v941 = vpop.xlane.xlu0 %940
        %v942 = vsel %vm706, %v936, 0.0
        %943 = vadd.xlane.f32.xlu0 %v942
        %v944 = vpop.xlane.xlu0 %943
        %v945 = vmul.f32 %v941, %v719
        %v946 = vmul.f32 %v944, %v719
        %v947 = vadd.f32 %v945, 1e-05
        %v948 = vadd.f32 %v946, 1e-05
        %v949 = vrsqrt.pop %v947
        %v950 = vmul.f32 %v949, %v947
        %v951 = vmul.f32 %v950, %v949
        %v952 = vmul.f32 0.5, %v951
        %v953 = vsub.f32 1.5, %v952
        %v954 = vmul.f32 %v949, %v953
        %vm955 = vweird.f32 %v947
        %vm956 = vweird.f32 %v949
        %vm957 = vmor %vm955, %vm956
        %v958 = vsel %vm957, %v949, %v954
        %v959 = vrsqrt.pop %v948
        %v960 = vmul.f32 %v959, %v948
        %v961 = vmul.f32 %v960, %v959
        %v962 = vmul.f32 0.5, %v961
        %v963 = vsub.f32 1.5, %v962
        %v964 = vmul.f32 %v959, %v963
        %vm965 = vweird.f32 %v948
        %vm966 = vweird.f32 %v959
        %vm967 = vmor %vm965, %vm966
        %v968 = vsel %vm967, %v959, %v964
        %v969 = vmul.f32 %v927, %v958
        %v970 = vmul.f32 %v928, %v968
        %971 = vrot.lane.b32.xlu0 %v759, 16
        %v972 = vpop.permute.xlu0 %971
        %v974 = vmul.f32 %v969, %v972
        %v975 = vmul.f32 %v970, %v972
        %976 = vrot.lane.b32.xlu0 %v764, 16
        %v977 = vpop.permute.xlu0 %976
        %v979 = vadd.f32 %v974, %v977
        %v980 = vadd.f32 %v975, %v977
        %v981 = vmul.f32 %v979, 0.25
        %v982 = vmul.f32 %v980, 0.25
        %983 = vrot.lane.b32.xlu0 %v684, 48
        %v984 = vpop.permute.xlu0 %983
        %985 = vrot.lane.b32.xlu0 %v686, 48
        %v986 = vpop.permute.xlu0 %985
        %v989 = vsel %vm706, %v984, 0.0
        %990 = vadd.xlane.f32.xlu0 %v989
        %v991 = vpop.xlane.xlu0 %990
        %v992 = vsel %vm706, %v986, 0.0
        %993 = vadd.xlane.f32.xlu0 %v992
        %v994 = vpop.xlane.xlu0 %993
        %v995 = vmul.f32 %v991, %v719
        %v996 = vmul.f32 %v994, %v719
        %v997 = vsub.f32 %v684, %v995
        %v998 = vsub.f32 %v686, %v996
        %v999 = vmul.f32 %v997, %v997
        %v1000 = vmul.f32 %v998, %v998
        %1003 = vrot.lane.b32.xlu0 %v999, 48
        %v1004 = vpop.permute.xlu0 %1003
        %1005 = vrot.lane.b32.xlu0 %v1000, 48
        %v1006 = vpop.permute.xlu0 %1005
        %v1009 = vsel %vm706, %v1004, 0.0
        %1010 = vadd.xlane.f32.xlu0 %v1009
        %v1011 = vpop.xlane.xlu0 %1010
        %v1012 = vsel %vm706, %v1006, 0.0
        %1013 = vadd.xlane.f32.xlu0 %v1012
        %v1014 = vpop.xlane.xlu0 %1013
        %v1015 = vmul.f32 %v1011, %v719
        %v1016 = vmul.f32 %v1014, %v719
        %v1017 = vadd.f32 %v1015, 1e-05
        %v1018 = vadd.f32 %v1016, 1e-05
        %v1019 = vrsqrt.pop %v1017
        %v1020 = vmul.f32 %v1019, %v1017
        %v1021 = vmul.f32 %v1020, %v1019
        %v1022 = vmul.f32 0.5, %v1021
        %v1023 = vsub.f32 1.5, %v1022
        %v1024 = vmul.f32 %v1019, %v1023
        %vm1025 = vweird.f32 %v1017
        %vm1026 = vweird.f32 %v1019
        %vm1027 = vmor %vm1025, %vm1026
        %v1028 = vsel %vm1027, %v1019, %v1024
        %v1029 = vrsqrt.pop %v1018
        %v1030 = vmul.f32 %v1029, %v1018
        %v1031 = vmul.f32 %v1030, %v1029
        %v1032 = vmul.f32 0.5, %v1031
        %v1033 = vsub.f32 1.5, %v1032
        %v1034 = vmul.f32 %v1029, %v1033
        %vm1035 = vweird.f32 %v1018
        %vm1036 = vweird.f32 %v1029
        %vm1037 = vmor %vm1035, %vm1036
        %v1038 = vsel %vm1037, %v1029, %v1034
        %v1039 = vmul.f32 %v997, %v1028
        %v1040 = vmul.f32 %v998, %v1038
        %1041 = vrot.lane.b32.xlu0 %v831, 80
        %v1042 = vpop.permute.xlu0 %1041
        %v1044 = vmul.f32 %v1039, %v1042
        %v1045 = vmul.f32 %v1040, %v1042
        %1046 = vrot.lane.b32.xlu0 %v838, 80
        %v1047 = vpop.permute.xlu0 %1046
        %v1049 = vadd.f32 %v1044, %v1047
        %v1050 = vadd.f32 %v1045, %v1047
        %v1051 = vpack.c.bf16 %v982, %v981
        %v1052 = vpack.c.bf16 %v1050, %v1049
        %1054 = vrot.lane.b32.xlu0 %v1051, 112
        %v1055 = vpop.permute.xlu0 %1054
        %1057 = vrot.lane.b32.xlu0 %v1052, 48
        %v1058 = vpop.permute.xlu0 %1057
        %v1060 = vsel %vm706, %v1055, 0
        %v1063 = vsel %vm706, %v1058, 0
        %1065 = vmatpush.bf16.xpose.msra.mxu0 0
        %1066 = vmatpush.bf16.xpose.msra.mxu0 0
        %1067 = vmatpush.bf16.xpose.msra.mxu0 0
        %1068 = vmatpush.bf16.xpose.msra.mxu0 0
        %1069 = vmatpush.bf16.xpose.msra.mxu0 0
        %1070 = vmatpush.bf16.xpose.msra.mxu0 0
        %1071 = vmatpush.bf16.xpose.msra.mxu0 0
        %1072 = vmatpush.bf16.xpose.msra.mxu0 %v1063
        %1073 = vmatmul.bf16.gmra.mxu0 %v1060
        %v1074 = vpop.f32.mrf.mxu0
        %v1075 = vadd.f32 0.0, %v1074
        %v1076 = vpop.f32.mrf.mxu0
        %v1077 = vadd.f32 0.0, %v1076
        %1078 = vdwg.mxu0
        %v1079 = vsel %vm706, %v1075, -inf
        %1080 = vmax.xlane.f32.xlu0 %v1079
        %v1081 = vpop.xlane.xlu0 %1080
        %v1082 = vsel %vm706, %v1077, -inf
        %1083 = vmax.xlane.f32.xlu0 %v1082
        %v1084 = vpop.xlane.xlu0 %1083
        %v1085 = vsub.f32 %v1075, %v1081
        %v1086 = vsub.f32 %v1077, %v1084
        %v1087 = vmul.f32 %v1085, 1.442695
        %v1088 = vpow.pop %v1087
        %v1089 = vmul.f32 %v1086, 1.442695
        %v1090 = vpow.pop %v1089
        %v1091 = vsel %vm706, %v1088, 0.0
        %1092 = vadd.xlane.f32.xlu0 %v1091
        %v1093 = vpop.xlane.xlu0 %1092
        %v1094 = vsel %vm706, %v1090, 0.0
        %1095 = vadd.xlane.f32.xlu0 %v1094
        %v1096 = vpop.xlane.xlu0 %1095
        %v1097 = vpack.c.bf16 %v1090, %v1088
        %1099 = vrot.lane.b32.xlu0 %v888, 112
        %v1100 = vpop.permute.xlu0 %1099
        %v1103 = vsel %vm706, %v1097, 0
        %1105 = vmatpush.bf16.msra.mxu0 0
        %1106 = vmatpush.bf16.msra.mxu0 0
        %1107 = vmatpush.bf16.msra.mxu0 0
        %1108 = vmatpush.bf16.msra.mxu0 0
        %1109 = vmatpush.bf16.msra.mxu0 0
        %1110 = vmatpush.bf16.msra.mxu0 0
        %1111 = vmatpush.bf16.msra.mxu0 0
        %1112 = vmatpush.bf16.msra.mxu0 %v1100
        %1113 = vmatmul.bf16.gmra.mxu0 %v1103
        %v1114 = vpop.f32.mrf.mxu0
        %v1115 = vadd.f32 0.0, %v1114
        %v1116 = vpop.f32.mrf.mxu0
        %v1117 = vadd.f32 0.0, %v1116
        %1118 = vdwg.mxu0
        %v1119 = vrcp.pop %v1093
        %v1120 = vrcp.pop %v1096
        %v1121 = vmul.f32 %v1115, %v1119
        %v1122 = vmul.f32 %v1117, %v1120
        %v1123 = vpack.c.bf16 %v1122, %v1121
        %v1124 = vld [vmem:[%s9 + $0x8] sm:$0xf]
        %v1125 = vld [vmem:[%s9 + $0xc] sm:$0xf]
        %v1128 = vunpack.c.l.b16 %v1124
        %v1129 = vunpack.c.l.b16 %v1125
        %v1130 = vpack.c.b16 %v1129, %v1128
        %v1133 = vsel %vm706, %v1123, 0
        %1135 = vmatpush.bf16.msra.mxu0 0
        %1136 = vmatpush.bf16.msra.mxu0 0
        %1137 = vmatpush.bf16.msra.mxu0 0
        %1138 = vmatpush.bf16.msra.mxu0 0
        %1139 = vmatpush.bf16.msra.mxu0 0
        %1140 = vmatpush.bf16.msra.mxu0 0
        %1141 = vmatpush.bf16.msra.mxu0 0
        %1142 = vmatpush.bf16.msra.mxu0 %v1130
        %1143 = vmatmul.bf16.gmra.mxu0 %v1133
        %v1144 = vpop.f32.mrf.mxu0
        %v1145 = vadd.f32 0.0, %v1144
        %v1146 = vpop.f32.mrf.mxu0
        %v1147 = vadd.f32 0.0, %v1146
        %1148 = vdwg.mxu0
        %v1151 = vunpack.c.l.b16 %v911
        %v1152 = vunpack.c.l.b16 %v912
        %v1153 = vpack.c.b16 %v1152, %v1151
        %v1156 = vsel %vm706, %v910, 0
        %1158 = vmatpush.bf16.msra.mxu0 0
        %1159 = vmatpush.bf16.msra.mxu0 0
        %1160 = vmatpush.bf16.msra.mxu0 0
        %1161 = vmatpush.bf16.msra.mxu0 0
        %1162 = vmatpush.bf16.msra.mxu0 0
        %1163 = vmatpush.bf16.msra.mxu0 0
        %1164 = vmatpush.bf16.msra.mxu0 0
        %1165 = vmatpush.bf16.msra.mxu0 %v1153
        %1166 = vmatmul.bf16.gmra.mxu0 %v1156
        %v1167 = vpop.f32.mrf.mxu0
        %v1168 = vadd.f32 %v1145, %v1167
        %v1169 = vpop.f32.mrf.mxu0
        %v1170 = vadd.f32 %v1147, %v1169
        %1171 = vdwg.mxu0
        %1172 = vrot.lane.b32.xlu0 %v684, 96
        %v1173 = vpop.permute.xlu0 %1172
        %1174 = vrot.lane.b32.xlu0 %v686, 96
        %v1175 = vpop.permute.xlu0 %1174
        %v1178 = vsel %vm706, %v1173, 0.0
        %1179 = vadd.xlane.f32.xlu0 %v1178
        %v1180 = vpop.xlane.xlu0 %1179
        %v1181 = vsel %vm706, %v1175, 0.0
        %1182 = vadd.xlane.f32.xlu0 %v1181
        %v1183 = vpop.xlane.xlu0 %1182
        %v1184 = vmul.f32 %v1180, %v719
        %v1185 = vmul.f32 %v1183, %v719
        %v1186 = vsub.f32 %v684, %v1184
        %v1187 = vsub.f32 %v686, %v1185
        %v1188 = vmul.f32 %v1186, %v1186
        %v1189 = vmul.f32 %v1187, %v1187
        %1192 = vrot.lane.b32.xlu0 %v1188, 96
        %v1193 = vpop.permute.xlu0 %1192
        %1194 = vrot.lane.b32.xlu0 %v1189, 96
        %v1195 = vpop.permute.xlu0 %1194
        %v1198 = vsel %vm706, %v1193, 0.0
        %1199 = vadd.xlane.f32.xlu0 %v1198
        %v1200 = vpop.xlane.xlu0 %1199
        %v1201 = vsel %vm706, %v1195, 0.0
        %1202 = vadd.xlane.f32.xlu0 %v1201
        %v1203 = vpop.xlane.xlu0 %1202
        %v1204 = vmul.f32 %v1200, %v719
        %v1205 = vmul.f32 %v1203, %v719
        %v1206 = vadd.f32 %v1204, 1e-05
        %v1207 = vadd.f32 %v1205, 1e-05
        %v1208 = vrsqrt.pop %v1206
        %v1209 = vmul.f32 %v1208, %v1206
        %v1210 = vmul.f32 %v1209, %v1208
        %v1211 = vmul.f32 0.5, %v1210
        %v1212 = vsub.f32 1.5, %v1211
        %v1213 = vmul.f32 %v1208, %v1212
        %vm1214 = vweird.f32 %v1206
        %vm1215 = vweird.f32 %v1208
        %vm1216 = vmor %vm1214, %vm1215
        %v1217 = vsel %vm1216, %v1208, %v1213
        %v1218 = vrsqrt.pop %v1207
        %v1219 = vmul.f32 %v1218, %v1207
        %v1220 = vmul.f32 %v1219, %v1218
        %v1221 = vmul.f32 0.5, %v1220
        %v1222 = vsub.f32 1.5, %v1221
        %v1223 = vmul.f32 %v1218, %v1222
        %vm1224 = vweird.f32 %v1207
        %vm1225 = vweird.f32 %v1218
        %vm1226 = vmor %vm1224, %vm1225
        %v1227 = vsel %vm1226, %v1218, %v1223
        %v1228 = vmul.f32 %v1186, %v1217
        %v1229 = vmul.f32 %v1187, %v1227
        %1230 = vrot.lane.b32.xlu0 %v759, 32
        %v1231 = vpop.permute.xlu0 %1230
        %v1233 = vmul.f32 %v1228, %v1231
        %v1234 = vmul.f32 %v1229, %v1231
        %1235 = vrot.lane.b32.xlu0 %v764, 32
        %v1236 = vpop.permute.xlu0 %1235
        %v1238 = vadd.f32 %v1233, %v1236
        %v1239 = vadd.f32 %v1234, %v1236
        %v1240 = vmul.f32 %v1238, 0.25
        %v1241 = vmul.f32 %v1239, 0.25
        %1242 = vrot.lane.b32.xlu0 %v684, 32
        %v1243 = vpop.permute.xlu0 %1242
        %1244 = vrot.lane.b32.xlu0 %v686, 32
        %v1245 = vpop.permute.xlu0 %1244
        %v1248 = vsel %vm706, %v1243, 0.0
        %1249 = vadd.xlane.f32.xlu0 %v1248
        %v1250 = vpop.xlane.xlu0 %1249
        %v1251 = vsel %vm706, %v1245, 0.0
        %1252 = vadd.xlane.f32.xlu0 %v1251
        %v1253 = vpop.xlane.xlu0 %1252
        %v1254 = vmul.f32 %v1250, %v719
        %v1255 = vmul.f32 %v1253, %v719
        %v1256 = vsub.f32 %v684, %v1254
        %v1257 = vsub.f32 %v686, %v1255
        %v1258 = vmul.f32 %v1256, %v1256
        %v1259 = vmul.f32 %v1257, %v1257
        %1262 = vrot.lane.b32.xlu0 %v1258, 32
        %v1263 = vpop.permute.xlu0 %1262
        %1264 = vrot.lane.b32.xlu0 %v1259, 32
        %v1265 = vpop.permute.xlu0 %1264
        %v1268 = vsel %vm706, %v1263, 0.0
        %1269 = vadd.xlane.f32.xlu0 %v1268
        %v1270 = vpop.xlane.xlu0 %1269
        %v1271 = vsel %vm706, %v1265, 0.0
        %1272 = vadd.xlane.f32.xlu0 %v1271
        %v1273 = vpop.xlane.xlu0 %1272
        %v1274 = vmul.f32 %v1270, %v719
        %v1275 = vmul.f32 %v1273, %v719
        %v1276 = vadd.f32 %v1274, 1e-05
        %v1277 = vadd.f32 %v1275, 1e-05
        %v1278 = vrsqrt.pop %v1276
        %v1279 = vmul.f32 %v1278, %v1276
        %v1280 = vmul.f32 %v1279, %v1278
        %v1281 = vmul.f32 0.5, %v1280
        %v1282 = vsub.f32 1.5, %v1281
        %v1283 = vmul.f32 %v1278, %v1282
        %vm1284 = vweird.f32 %v1276
        %vm1285 = vweird.f32 %v1278
        %vm1286 = vmor %vm1284, %vm1285
        %v1287 = vsel %vm1286, %v1278, %v1283
        %v1288 = vrsqrt.pop %v1277
        %v1289 = vmul.f32 %v1288, %v1277
        %v1290 = vmul.f32 %v1289, %v1288
        %v1291 = vmul.f32 0.5, %v1290
        %v1292 = vsub.f32 1.5, %v1291
        %v1293 = vmul.f32 %v1288, %v1292
        %vm1294 = vweird.f32 %v1277
        %vm1295 = vweird.f32 %v1288
        %vm1296 = vmor %vm1294, %vm1295
        %v1297 = vsel %vm1296, %v1288, %v1293
        %v1298 = vmul.f32 %v1256, %v1287
        %v1299 = vmul.f32 %v1257, %v1297
        %1300 = vrot.lane.b32.xlu0 %v831, 96
        %v1301 = vpop.permute.xlu0 %1300
        %v1303 = vmul.f32 %v1298, %v1301
        %v1304 = vmul.f32 %v1299, %v1301
        %1305 = vrot.lane.b32.xlu0 %v838, 96
        %v1306 = vpop.permute.xlu0 %1305
        %v1308 = vadd.f32 %v1303, %v1306
        %v1309 = vadd.f32 %v1304, %v1306
        %v1310 = vpack.c.bf16 %v1241, %v1240
        %v1311 = vpack.c.bf16 %v1309, %v1308
        %1313 = vrot.lane.b32.xlu0 %v1310, 96
        %v1314 = vpop.permute.xlu0 %1313
        %1316 = vrot.lane.b32.xlu0 %v1311, 32
        %v1317 = vpop.permute.xlu0 %1316
        %v1319 = vsel %vm706, %v1314, 0
        %v1322 = vsel %vm706, %v1317, 0
        %1324 = vmatpush.bf16.xpose.msra.mxu0 0
        %1325 = vmatpush.bf16.xpose.msra.mxu0 0
        %1326 = vmatpush.bf16.xpose.msra.mxu0 0
        %1327 = vmatpush.bf16.xpose.msra.mxu0 0
        %1328 = vmatpush.bf16.xpose.msra.mxu0 0
        %1329 = vmatpush.bf16.xpose.msra.mxu0 0
        %1330 = vmatpush.bf16.xpose.msra.mxu0 0
        %1331 = vmatpush.bf16.xpose.msra.mxu0 %v1322
        %1332 = vmatmul.bf16.gmra.mxu0 %v1319
        %v1333 = vpop.f32.mrf.mxu0
        %v1334 = vadd.f32 0.0, %v1333
        %v1335 = vpop.f32.mrf.mxu0
        %v1336 = vadd.f32 0.0, %v1335
        %1337 = vdwg.mxu0
        %v1338 = vsel %vm706, %v1334, -inf
        %1339 = vmax.xlane.f32.xlu0 %v1338
        %v1340 = vpop.xlane.xlu0 %1339
        %v1341 = vsel %vm706, %v1336, -inf
        %1342 = vmax.xlane.f32.xlu0 %v1341
        %v1343 = vpop.xlane.xlu0 %1342
        %v1344 = vsub.f32 %v1334, %v1340
        %v1345 = vsub.f32 %v1336, %v1343
        %v1346 = vmul.f32 %v1344, 1.442695
        %v1347 = vpow.pop %v1346
        %v1348 = vmul.f32 %v1345, 1.442695
        %v1349 = vpow.pop %v1348
        %v1350 = vsel %vm706, %v1347, 0.0
        %1351 = vadd.xlane.f32.xlu0 %v1350
        %v1352 = vpop.xlane.xlu0 %1351
        %v1353 = vsel %vm706, %v1349, 0.0
        %1354 = vadd.xlane.f32.xlu0 %v1353
        %v1355 = vpop.xlane.xlu0 %1354
        %v1356 = vpack.c.bf16 %v1349, %v1347
        %1357 = vrot.lane.b32.xlu0 %v888, 96
        %v1358 = vpop.permute.xlu0 %1357
        %v1361 = vsel %vm706, %v1356, 0
        %1363 = vmatpush.bf16.msra.mxu0 0
        %1364 = vmatpush.bf16.msra.mxu0 0
        %1365 = vmatpush.bf16.msra.mxu0 0
        %1366 = vmatpush.bf16.msra.mxu0 0
        %1367 = vmatpush.bf16.msra.mxu0 0
        %1368 = vmatpush.bf16.msra.mxu0 0
        %1369 = vmatpush.bf16.msra.mxu0 0
        %1370 = vmatpush.bf16.msra.mxu0 %v1358
        %1371 = vmatmul.bf16.gmra.mxu0 %v1361
        %v1372 = vpop.f32.mrf.mxu0
        %v1373 = vadd.f32 0.0, %v1372
        %v1374 = vpop.f32.mrf.mxu0
        %v1375 = vadd.f32 0.0, %v1374
        %1376 = vdwg.mxu0
        %v1377 = vrcp.pop %v1352
        %v1378 = vrcp.pop %v1355
        %v1379 = vmul.f32 %v1373, %v1377
        %v1380 = vmul.f32 %v1375, %v1378
        %v1381 = vpack.c.bf16 %v1380, %v1379
        %v1382 = vld [vmem:[%s9 + $0x10] sm:$0xf]
        %v1383 = vld [vmem:[%s9 + $0x14] sm:$0xf]
        %v1386 = vunpack.c.l.b16 %v1382
        %v1387 = vunpack.c.l.b16 %v1383
        %v1388 = vpack.c.b16 %v1387, %v1386
        %v1391 = vsel %vm706, %v1381, 0
        %1393 = vmatpush.bf16.msra.mxu0 0
        %1394 = vmatpush.bf16.msra.mxu0 0
        %1395 = vmatpush.bf16.msra.mxu0 0
        %1396 = vmatpush.bf16.msra.mxu0 0
        %1397 = vmatpush.bf16.msra.mxu0 0
        %1398 = vmatpush.bf16.msra.mxu0 0
        %1399 = vmatpush.bf16.msra.mxu0 0
        %1400 = vmatpush.bf16.msra.mxu0 %v1388
        %1401 = vmatmul.bf16.gmra.mxu0 %v1391
        %v1402 = vpop.f32.mrf.mxu0
        %v1403 = vadd.f32 0.0, %v1402
        %v1404 = vpop.f32.mrf.mxu0
        %v1405 = vadd.f32 0.0, %v1404
        %1406 = vdwg.mxu0
        %v1407 = vadd.f32 %v1168, %v1403
        %v1408 = vadd.f32 %v1170, %v1405
        %1409 = vrot.lane.b32.xlu0 %v684, 80
        %v1410 = vpop.permute.xlu0 %1409
        %1411 = vrot.lane.b32.xlu0 %v686, 80
        %v1412 = vpop.permute.xlu0 %1411
        %v1415 = vsel %vm706, %v1410, 0.0
        %1416 = vadd.xlane.f32.xlu0 %v1415
        %v1417 = vpop.xlane.xlu0 %1416
        %v1418 = vsel %vm706, %v1412, 0.0
        %1419 = vadd.xlane.f32.xlu0 %v1418
        %v1420 = vpop.xlane.xlu0 %1419
        %v1421 = vmul.f32 %v1417, %v719
        %v1422 = vmul.f32 %v1420, %v719
        %v1423 = vsub.f32 %v684, %v1421
        %v1424 = vsub.f32 %v686, %v1422
        %v1425 = vmul.f32 %v1423, %v1423
        %v1426 = vmul.f32 %v1424, %v1424
        %1429 = vrot.lane.b32.xlu0 %v1425, 80
        %v1430 = vpop.permute.xlu0 %1429
        %1431 = vrot.lane.b32.xlu0 %v1426, 80
        %v1432 = vpop.permute.xlu0 %1431
        %v1435 = vsel %vm706, %v1430, 0.0
        %1436 = vadd.xlane.f32.xlu0 %v1435
        %v1437 = vpop.xlane.xlu0 %1436
        %v1438 = vsel %vm706, %v1432, 0.0
        %1439 = vadd.xlane.f32.xlu0 %v1438
        %v1440 = vpop.xlane.xlu0 %1439
        %v1441 = vmul.f32 %v1437, %v719
        %v1442 = vmul.f32 %v1440, %v719
        %v1443 = vadd.f32 %v1441, 1e-05
        %v1444 = vadd.f32 %v1442, 1e-05
        %v1445 = vrsqrt.pop %v1443
        %v1446 = vmul.f32 %v1445, %v1443
        %v1447 = vmul.f32 %v1446, %v1445
        %v1448 = vmul.f32 0.5, %v1447
        %v1449 = vsub.f32 1.5, %v1448
        %v1450 = vmul.f32 %v1445, %v1449
        %vm1451 = vweird.f32 %v1443
        %vm1452 = vweird.f32 %v1445
        %vm1453 = vmor %vm1451, %vm1452
        %v1454 = vsel %vm1453, %v1445, %v1450
        %v1455 = vrsqrt.pop %v1444
        %v1456 = vmul.f32 %v1455, %v1444
        %v1457 = vmul.f32 %v1456, %v1455
        %v1458 = vmul.f32 0.5, %v1457
        %v1459 = vsub.f32 1.5, %v1458
        %v1460 = vmul.f32 %v1455, %v1459
        %vm1461 = vweird.f32 %v1444
        %vm1462 = vweird.f32 %v1455
        %vm1463 = vmor %vm1461, %vm1462
        %v1464 = vsel %vm1463, %v1455, %v1460
        %v1465 = vmul.f32 %v1423, %v1454
        %v1466 = vmul.f32 %v1424, %v1464
        %1467 = vrot.lane.b32.xlu0 %v759, 48
        %v1468 = vpop.permute.xlu0 %1467
        %v1470 = vmul.f32 %v1465, %v1468
        %v1471 = vmul.f32 %v1466, %v1468
        %1472 = vrot.lane.b32.xlu0 %v764, 48
        %v1473 = vpop.permute.xlu0 %1472
        %v1475 = vadd.f32 %v1470, %v1473
        %v1476 = vadd.f32 %v1471, %v1473
        %v1477 = vmul.f32 %v1475, 0.25
        %v1478 = vmul.f32 %v1476, 0.25
        %1479 = vrot.lane.b32.xlu0 %v684, 16
        %v1480 = vpop.permute.xlu0 %1479
        %1481 = vrot.lane.b32.xlu0 %v686, 16
        %v1482 = vpop.permute.xlu0 %1481
        %v1485 = vsel %vm706, %v1480, 0.0
        %1486 = vadd.xlane.f32.xlu0 %v1485
        %v1487 = vpop.xlane.xlu0 %1486
        %v1488 = vsel %vm706, %v1482, 0.0
        %1489 = vadd.xlane.f32.xlu0 %v1488
        %v1490 = vpop.xlane.xlu0 %1489
        %v1491 = vmul.f32 %v1487, %v719
        %v1492 = vmul.f32 %v1490, %v719
        %v1493 = vsub.f32 %v684, %v1491
        %v1494 = vsub.f32 %v686, %v1492
        %v1495 = vmul.f32 %v1493, %v1493
        %v1496 = vmul.f32 %v1494, %v1494
        %1499 = vrot.lane.b32.xlu0 %v1495, 16
        %v1500 = vpop.permute.xlu0 %1499
        %1501 = vrot.lane.b32.xlu0 %v1496, 16
        %v1502 = vpop.permute.xlu0 %1501
        %v1505 = vsel %vm706, %v1500, 0.0
        %1506 = vadd.xlane.f32.xlu0 %v1505
        %v1507 = vpop.xlane.xlu0 %1506
        %v1508 = vsel %vm706, %v1502, 0.0
        %1509 = vadd.xlane.f32.xlu0 %v1508
        %v1510 = vpop.xlane.xlu0 %1509
        %v1511 = vmul.f32 %v1507, %v719
        %v1512 = vmul.f32 %v1510, %v719
        %v1513 = vadd.f32 %v1511, 1e-05
        %v1514 = vadd.f32 %v1512, 1e-05
        %v1515 = vrsqrt.pop %v1513
        %v1516 = vmul.f32 %v1515, %v1513
        %v1517 = vmul.f32 %v1516, %v1515
        %v1518 = vmul.f32 0.5, %v1517
        %v1519 = vsub.f32 1.5, %v1518
        %v1520 = vmul.f32 %v1515, %v1519
        %vm1521 = vweird.f32 %v1513
        %vm1522 = vweird.f32 %v1515
        %vm1523 = vmor %vm1521, %vm1522
        %v1524 = vsel %vm1523, %v1515, %v1520
        %v1525 = vrsqrt.pop %v1514
        %v1526 = vmul.f32 %v1525, %v1514
        %v1527 = vmul.f32 %v1526, %v1525
        %v1528 = vmul.f32 0.5, %v1527
        %v1529 = vsub.f32 1.5, %v1528
        %v1530 = vmul.f32 %v1525, %v1529
        %vm1531 = vweird.f32 %v1514
        %vm1532 = vweird.f32 %v1525
        %vm1533 = vmor %vm1531, %vm1532
        %v1534 = vsel %vm1533, %v1525, %v1530
        %v1535 = vmul.f32 %v1493, %v1524
        %v1536 = vmul.f32 %v1494, %v1534
        %1537 = vrot.lane.b32.xlu0 %v831, 112
        %v1538 = vpop.permute.xlu0 %1537
        %v1540 = vmul.f32 %v1535, %v1538
        %v1541 = vmul.f32 %v1536, %v1538
        %1542 = vrot.lane.b32.xlu0 %v838, 112
        %v1543 = vpop.permute.xlu0 %1542
        %v1545 = vadd.f32 %v1540, %v1543
        %v1546 = vadd.f32 %v1541, %v1543
        %v1547 = vpack.c.bf16 %v1478, %v1477
        %v1548 = vpack.c.bf16 %v1546, %v1545
        %1550 = vrot.lane.b32.xlu0 %v1547, 80
        %v1551 = vpop.permute.xlu0 %1550
        %1553 = vrot.lane.b32.xlu0 %v1548, 16
        %v1554 = vpop.permute.xlu0 %1553
        %v1556 = vsel %vm706, %v1551, 0
        %v1559 = vsel %vm706, %v1554, 0
        %1561 = vmatpush.bf16.xpose.msra.mxu0 0
        %1562 = vmatpush.bf16.xpose.msra.mxu0 0
        %1563 = vmatpush.bf16.xpose.msra.mxu0 0
        %1564 = vmatpush.bf16.xpose.msra.mxu0 0
        %1565 = vmatpush.bf16.xpose.msra.mxu0 0
        %1566 = vmatpush.bf16.xpose.msra.mxu0 0
        %1567 = vmatpush.bf16.xpose.msra.mxu0 0
        %1568 = vmatpush.bf16.xpose.msra.mxu0 %v1559
        %1569 = vmatmul.bf16.gmra.mxu0 %v1556
        %v1570 = vpop.f32.mrf.mxu0
        %v1571 = vadd.f32 0.0, %v1570
        %v1572 = vpop.f32.mrf.mxu0
        %v1573 = vadd.f32 0.0, %v1572
        %1574 = vdwg.mxu0
        %v1575 = vsel %vm706, %v1571, -inf
        %1576 = vmax.xlane.f32.xlu0 %v1575
        %v1577 = vpop.xlane.xlu0 %1576
        %v1578 = vsel %vm706, %v1573, -inf
        %1579 = vmax.xlane.f32.xlu0 %v1578
        %v1580 = vpop.xlane.xlu0 %1579
        %v1581 = vsub.f32 %v1571, %v1577
        %v1582 = vsub.f32 %v1573, %v1580
        %v1583 = vmul.f32 %v1581, 1.442695
        %v1584 = vpow.pop %v1583
        %v1585 = vmul.f32 %v1582, 1.442695
        %v1586 = vpow.pop %v1585
        %v1587 = vsel %vm706, %v1584, 0.0
        %1588 = vadd.xlane.f32.xlu0 %v1587
        %v1589 = vpop.xlane.xlu0 %1588
        %v1590 = vsel %vm706, %v1586, 0.0
        %1591 = vadd.xlane.f32.xlu0 %v1590
        %v1592 = vpop.xlane.xlu0 %1591
        %v1593 = vpack.c.bf16 %v1586, %v1584
        %1594 = vrot.lane.b32.xlu0 %v888, 80
        %v1595 = vpop.permute.xlu0 %1594
        %v1598 = vsel %vm706, %v1593, 0
        %1600 = vmatpush.bf16.msra.mxu0 0
        %1601 = vmatpush.bf16.msra.mxu0 0
        %1602 = vmatpush.bf16.msra.mxu0 0
        %1603 = vmatpush.bf16.msra.mxu0 0
        %1604 = vmatpush.bf16.msra.mxu0 0
        %1605 = vmatpush.bf16.msra.mxu0 0
        %1606 = vmatpush.bf16.msra.mxu0 0
        %1607 = vmatpush.bf16.msra.mxu0 %v1595
        %1608 = vmatmul.bf16.gmra.mxu0 %v1598
        %v1609 = vpop.f32.mrf.mxu0
        %v1610 = vadd.f32 0.0, %v1609
        %v1611 = vpop.f32.mrf.mxu0
        %v1612 = vadd.f32 0.0, %v1611
        %1613 = vdwg.mxu0
        %v1614 = vrcp.pop %v1589
        %v1615 = vrcp.pop %v1592
        %v1616 = vmul.f32 %v1610, %v1614
        %v1617 = vmul.f32 %v1612, %v1615
        %v1618 = vpack.c.bf16 %v1617, %v1616
        %v1619 = vld [vmem:[%s9 + $0x18] sm:$0xf]
        %v1620 = vld [vmem:[%s9 + $0x1c] sm:$0xf]
        %v1623 = vunpack.c.l.b16 %v1619
        %v1624 = vunpack.c.l.b16 %v1620
        %v1625 = vpack.c.b16 %v1624, %v1623
        %v1628 = vsel %vm706, %v1618, 0
        %1630 = vmatpush.bf16.msra.mxu0 0
        %1631 = vmatpush.bf16.msra.mxu0 0
        %1632 = vmatpush.bf16.msra.mxu0 0
        %1633 = vmatpush.bf16.msra.mxu0 0
        %1634 = vmatpush.bf16.msra.mxu0 0
        %1635 = vmatpush.bf16.msra.mxu0 0
        %1636 = vmatpush.bf16.msra.mxu0 0
        %1637 = vmatpush.bf16.msra.mxu0 %v1625
        %1638 = vmatmul.bf16.gmra.mxu0 %v1628
        %v1639 = vpop.f32.mrf.mxu0
        %v1640 = vadd.f32 0.0, %v1639
        %v1641 = vpop.f32.mrf.mxu0
        %v1642 = vadd.f32 0.0, %v1641
        %1643 = vdwg.mxu0
        %v1644 = vadd.f32 %v1407, %v1640
        %v1645 = vadd.f32 %v1408, %v1642
        %v1646 = vld [vmem:[%s10] sm:$0x1]
        %v1648 = vperm.slane %v1646, 0
        %v1650 = vadd.f32 %v1644, %v1648
        %v1651 = vadd.f32 %v1645, %v1648
        %v1652 = vmul.f32 %v656, 0.5
        %v1653 = vmul.f32 %v670, 0.5
        %v1654 = vmul.f32 %v658, 0.5
        %v1655 = vmul.f32 %v672, 0.5
        %v1656 = vmul.f32 %v656, 0.70710677
        %v1657 = vmul.f32 %v670, 0.70710677
        %v1658 = vmul.f32 %v658, 0.70710677
        %v1659 = vmul.f32 %v672, 0.70710677
        %v1660 = vmul.f32 %v1656, %v1656
        %v1661 = vmin.f32 16.0, %v1660
        %v1662 = vmul.f32 %v1661, 2.1237322e-06
        %v1663 = vadd.f32 %v1662, 0.00028619796
        %v1664 = vmul.f32 %v1661, %v1663
        %v1665 = vadd.f32 %v1664, 0.0036580483
        %v1666 = vmul.f32 %v1661, %v1665
        %v1667 = vadd.f32 %v1666, 0.05243302
        %v1668 = vmul.f32 %v1661, %v1667
        %v1669 = vadd.f32 %v1668, 0.18741608
        %v1670 = vmul.f32 %v1661, %v1669
        %v1671 = vadd.f32 %v1670, 1.1283791
        %v1672 = vmul.f32 %v1656, %v1671
        %v1673 = vmul.f32 %v1661, 3.8918573e-05
        %v1674 = vadd.f32 %v1673, 0.001143296
        %v1675 = vmul.f32 %v1661, %v1674
        %v1676 = vadd.f32 %v1675, 0.014752088
        %v1677 = vmul.f32 %v1661, %v1676
        %v1678 = vadd.f32 %v1677, 0.112945676
        %v1679 = vmul.f32 %v1661, %v1678
        %v1680 = vadd.f32 %v1679, 0.4994258
        %v1681 = vmul.f32 %v1661, %v1680
        %v1682 = vadd.f32 %v1681, 1.0
        %v1683 = vrcp.pop %v1682
        %v1684 = vmul.f32 %v1682, %v1683
        %v1685 = vsub.f32 1.0, %v1684
        %v1686 = vmul.f32 %v1683, %v1685
        %v1687 = vadd.f32 %v1683, %v1686
        %vm1688 = vweird.f32 %v1682
        %vm1689 = vweird.f32 %v1683
        %vm1690 = vmor %vm1688, %vm1689
        %v1691 = vsel %vm1690, %v1683, %v1687
        %v1692 = vand.u32 2147483647, %v1682
        %vm1693 = vcmp.eq.f32.partialorder %v1692, 8.507059e+37
        %v1694 = vand.u32 %v1682, 2147483648
        %v1695 = vor.u32 1.1754944e-38, %v1694
        %v1696 = vsel %vm1693, %v1695, %v1691
        %v1697 = vmul.f32 %v1672, %v1696
        %v1698 = vmin.f32 %v1697, 1.0
        %v1699 = vmax.f32 %v1698, -1.0
        %v1700 = vmul.f32 %v1657, %v1657
        %v1701 = vmin.f32 16.0, %v1700
        %v1702 = vmul.f32 %v1701, 2.1237322e-06
        %v1703 = vadd.f32 %v1702, 0.00028619796
        %v1704 = vmul.f32 %v1701, %v1703
        %v1705 = vadd.f32 %v1704, 0.0036580483
        %v1706 = vmul.f32 %v1701, %v1705
        %v1707 = vadd.f32 %v1706, 0.05243302
        %v1708 = vmul.f32 %v1701, %v1707
        %v1709 = vadd.f32 %v1708, 0.18741608
        %v1710 = vmul.f32 %v1701, %v1709
        %v1711 = vadd.f32 %v1710, 1.1283791
        %v1712 = vmul.f32 %v1657, %v1711
        %v1713 = vmul.f32 %v1701, 3.8918573e-05
        %v1714 = vadd.f32 %v1713, 0.001143296
        %v1715 = vmul.f32 %v1701, %v1714
        %v1716 = vadd.f32 %v1715, 0.014752088
        %v1717 = vmul.f32 %v1701, %v1716
        %v1718 = vadd.f32 %v1717, 0.112945676
        %v1719 = vmul.f32 %v1701, %v1718
        %v1720 = vadd.f32 %v1719, 0.4994258
        %v1721 = vmul.f32 %v1701, %v1720
        %v1722 = vadd.f32 %v1721, 1.0
        %v1723 = vrcp.pop %v1722
        %v1724 = vmul.f32 %v1722, %v1723
        %v1725 = vsub.f32 1.0, %v1724
        %v1726 = vmul.f32 %v1723, %v1725
        %v1727 = vadd.f32 %v1723, %v1726
        %vm1728 = vweird.f32 %v1722
        %vm1729 = vweird.f32 %v1723
        %vm1730 = vmor %vm1728, %vm1729
        %v1731 = vsel %vm1730, %v1723, %v1727
        %v1732 = vand.u32 2147483647, %v1722
        %vm1733 = vcmp.eq.f32.partialorder %v1732, 8.507059e+37
        %v1734 = vand.u32 %v1722, 2147483648
        %v1735 = vor.u32 1.1754944e-38, %v1734
        %v1736 = vsel %vm1733, %v1735, %v1731
        %v1737 = vmul.f32 %v1712, %v1736
        %v1738 = vmin.f32 %v1737, 1.0
        %v1739 = vmax.f32 %v1738, -1.0
        %v1740 = vmul.f32 %v1658, %v1658
        %v1741 = vmin.f32 16.0, %v1740
        %v1742 = vmul.f32 %v1741, 2.1237322e-06
        %v1743 = vadd.f32 %v1742, 0.00028619796
        %v1744 = vmul.f32 %v1741, %v1743
        %v1745 = vadd.f32 %v1744, 0.0036580483
        %v1746 = vmul.f32 %v1741, %v1745
        %v1747 = vadd.f32 %v1746, 0.05243302
        %v1748 = vmul.f32 %v1741, %v1747
        %v1749 = vadd.f32 %v1748, 0.18741608
        %v1750 = vmul.f32 %v1741, %v1749
        %v1751 = vadd.f32 %v1750, 1.1283791
        %v1752 = vmul.f32 %v1658, %v1751
        %v1753 = vmul.f32 %v1741, 3.8918573e-05
        %v1754 = vadd.f32 %v1753, 0.001143296
        %v1755 = vmul.f32 %v1741, %v1754
        %v1756 = vadd.f32 %v1755, 0.014752088
        %v1757 = vmul.f32 %v1741, %v1756
        %v1758 = vadd.f32 %v1757, 0.112945676
        %v1759 = vmul.f32 %v1741, %v1758
        %v1760 = vadd.f32 %v1759, 0.4994258
        %v1761 = vmul.f32 %v1741, %v1760
        %v1762 = vadd.f32 %v1761, 1.0
        %v1763 = vrcp.pop %v1762
        %v1764 = vmul.f32 %v1762, %v1763
        %v1765 = vsub.f32 1.0, %v1764
        %v1766 = vmul.f32 %v1763, %v1765
        %v1767 = vadd.f32 %v1763, %v1766
        %vm1768 = vweird.f32 %v1762
        %vm1769 = vweird.f32 %v1763
        %vm1770 = vmor %vm1768, %vm1769
        %v1771 = vsel %vm1770, %v1763, %v1767
        %v1772 = vand.u32 2147483647, %v1762
        %vm1773 = vcmp.eq.f32.partialorder %v1772, 8.507059e+37
        %v1774 = vand.u32 %v1762, 2147483648
        %v1775 = vor.u32 1.1754944e-38, %v1774
        %v1776 = vsel %vm1773, %v1775, %v1771
        %v1777 = vmul.f32 %v1752, %v1776
        %v1778 = vmin.f32 %v1777, 1.0
        %v1779 = vmax.f32 %v1778, -1.0
        %v1780 = vmul.f32 %v1659, %v1659
        %v1781 = vmin.f32 16.0, %v1780
        %v1782 = vmul.f32 %v1781, 2.1237322e-06
        %v1783 = vadd.f32 %v1782, 0.00028619796
        %v1784 = vmul.f32 %v1781, %v1783
        %v1785 = vadd.f32 %v1784, 0.0036580483
        %v1786 = vmul.f32 %v1781, %v1785
        %v1787 = vadd.f32 %v1786, 0.05243302
        %v1788 = vmul.f32 %v1781, %v1787
        %v1789 = vadd.f32 %v1788, 0.18741608
        %v1790 = vmul.f32 %v1781, %v1789
        %v1791 = vadd.f32 %v1790, 1.1283791
        %v1792 = vmul.f32 %v1659, %v1791
        %v1793 = vmul.f32 %v1781, 3.8918573e-05
        %v1794 = vadd.f32 %v1793, 0.001143296
        %v1795 = vmul.f32 %v1781, %v1794
        %v1796 = vadd.f32 %v1795, 0.014752088
        %v1797 = vmul.f32 %v1781, %v1796
        %v1798 = vadd.f32 %v1797, 0.112945676
        %v1799 = vmul.f32 %v1781, %v1798
        %v1800 = vadd.f32 %v1799, 0.4994258
        %v1801 = vmul.f32 %v1781, %v1800
        %v1802 = vadd.f32 %v1801, 1.0
        %v1803 = vrcp.pop %v1802
        %v1804 = vmul.f32 %v1802, %v1803
        %v1805 = vsub.f32 1.0, %v1804
        %v1806 = vmul.f32 %v1803, %v1805
        %v1807 = vadd.f32 %v1803, %v1806
        %vm1808 = vweird.f32 %v1802
        %vm1809 = vweird.f32 %v1803
        %vm1810 = vmor %vm1808, %vm1809
        %v1811 = vsel %vm1810, %v1803, %v1807
        %v1812 = vand.u32 2147483647, %v1802
        %vm1813 = vcmp.eq.f32.partialorder %v1812, 8.507059e+37
        %v1814 = vand.u32 %v1802, 2147483648
        %v1815 = vor.u32 1.1754944e-38, %v1814
        %v1816 = vsel %vm1813, %v1815, %v1811
        %v1817 = vmul.f32 %v1792, %v1816
        %v1818 = vmin.f32 %v1817, 1.0
        %v1819 = vmax.f32 %v1818, -1.0
        %v1820 = vadd.f32 %v1699, 1.0
        %v1821 = vadd.f32 %v1739, 1.0
        %v1822 = vadd.f32 %v1779, 1.0
        %v1823 = vadd.f32 %v1819, 1.0
        %v1824 = vmul.f32 %v1652, %v1820
        %v1825 = vmul.f32 %v1653, %v1821
        %v1826 = vmul.f32 %v1654, %v1822
        %v1827 = vmul.f32 %v1655, %v1823
        %v1828 = vpack.c.bf16 %v1826, %v1824
        %v1829 = vpack.c.bf16 %v1827, %v1825
        %v1830 = vld [vmem:[%s11] sm:$0xf]
        %v1831 = vld [vmem:[%s11 + $0x4] sm:$0xf]
        %v1832 = vld [vmem:[%s11 + $0x8] sm:$0xf]
        %v1833 = vld [vmem:[%s11 + $0xc] sm:$0xf]
        %v1834 = vld [vmem:[%s11 + $0x10] sm:$0xf]
        %v1835 = vld [vmem:[%s11 + $0x14] sm:$0xf]
        %v1836 = vld [vmem:[%s11 + $0x18] sm:$0xf]
        %v1837 = vld [vmem:[%s11 + $0x1c] sm:$0xf]
        %v1838 = vld [vmem:[%s11 + $0x20] sm:$0xf]
        %v1839 = vld [vmem:[%s11 + $0x24] sm:$0xf]
        %v1840 = vld [vmem:[%s11 + $0x28] sm:$0xf]
        %v1841 = vld [vmem:[%s11 + $0x2c] sm:$0xf]
        %v1842 = vld [vmem:[%s11 + $0x30] sm:$0xf]
        %v1843 = vld [vmem:[%s11 + $0x34] sm:$0xf]
        %v1844 = vld [vmem:[%s11 + $0x38] sm:$0xf]
        %v1845 = vld [vmem:[%s11 + $0x3c] sm:$0xf]
        %v1846 = vld [vmem:[%s11 + $0x40] sm:$0xf]
        %v1847 = vld [vmem:[%s11 + $0x44] sm:$0xf]
        %v1848 = vld [vmem:[%s11 + $0x48] sm:$0xf]
        %v1849 = vld [vmem:[%s11 + $0x4c] sm:$0xf]
        %v1850 = vld [vmem:[%s11 + $0x50] sm:$0xf]
        %v1851 = vld [vmem:[%s11 + $0x54] sm:$0xf]
        %v1852 = vld [vmem:[%s11 + $0x58] sm:$0xf]
        %v1853 = vld [vmem:[%s11 + $0x5c] sm:$0xf]
        %v1854 = vld [vmem:[%s11 + $0x60] sm:$0xf]
        %v1855 = vld [vmem:[%s11 + $0x64] sm:$0xf]
        %v1856 = vld [vmem:[%s11 + $0x68] sm:$0xf]
        %v1857 = vld [vmem:[%s11 + $0x6c] sm:$0xf]
        %v1858 = vld [vmem:[%s11 + $0x70] sm:$0xf]
        %v1859 = vld [vmem:[%s11 + $0x74] sm:$0xf]
        %v1860 = vld [vmem:[%s11 + $0x78] sm:$0xf]
        %v1861 = vld [vmem:[%s11 + $0x7c] sm:$0xf]
        %v1862 = vld [vmem:[%s12] sm:$0x1]
        %v1864 = vperm.slane %v1862, 0
        %v1898 = vunpack.c.l.b16 %v1830
        %v1899 = vunpack.c.l.b16 %v1831
        %v1900 = vunpack.c.l.b16 %v1832
        %v1901 = vunpack.c.l.b16 %v1833
        %v1902 = vunpack.c.l.b16 %v1834
        %v1903 = vunpack.c.l.b16 %v1835
        %v1904 = vunpack.c.l.b16 %v1836
        %v1905 = vunpack.c.l.b16 %v1837
        %v1906 = vunpack.c.l.b16 %v1838
        %v1907 = vunpack.c.l.b16 %v1839
        %v1908 = vunpack.c.l.b16 %v1840
        %v1909 = vunpack.c.l.b16 %v1841
        %v1910 = vunpack.c.l.b16 %v1842
        %v1911 = vunpack.c.l.b16 %v1843
        %v1912 = vunpack.c.l.b16 %v1844
        %v1913 = vunpack.c.l.b16 %v1845
        %v1914 = vunpack.c.l.b16 %v1846
        %v1915 = vunpack.c.l.b16 %v1847
        %v1916 = vunpack.c.l.b16 %v1848
        %v1917 = vunpack.c.l.b16 %v1849
        %v1918 = vunpack.c.l.b16 %v1850
        %v1919 = vunpack.c.l.b16 %v1851
        %v1920 = vunpack.c.l.b16 %v1852
        %v1921 = vunpack.c.l.b16 %v1853
        %v1922 = vunpack.c.l.b16 %v1854
        %v1923 = vunpack.c.l.b16 %v1855
        %v1924 = vunpack.c.l.b16 %v1856
        %v1925 = vunpack.c.l.b16 %v1857
        %v1926 = vunpack.c.l.b16 %v1858
        %v1927 = vunpack.c.l.b16 %v1859
        %v1928 = vunpack.c.l.b16 %v1860
        %v1929 = vunpack.c.l.b16 %v1861
        %v1930 = vpack.c.b16 %v1899, %v1898
        %v1931 = vpack.c.b16 %v1901, %v1900
        %v1932 = vpack.c.b16 %v1903, %v1902
        %v1933 = vpack.c.b16 %v1905, %v1904
        %v1934 = vpack.c.b16 %v1907, %v1906
        %v1935 = vpack.c.b16 %v1909, %v1908
        %v1936 = vpack.c.b16 %v1911, %v1910
        %v1937 = vpack.c.b16 %v1913, %v1912
        %v1938 = vpack.c.b16 %v1915, %v1914
        %v1939 = vpack.c.b16 %v1917, %v1916
        %v1940 = vpack.c.b16 %v1919, %v1918
        %v1941 = vpack.c.b16 %v1921, %v1920
        %v1942 = vpack.c.b16 %v1923, %v1922
        %v1943 = vpack.c.b16 %v1925, %v1924
        %v1944 = vpack.c.b16 %v1927, %v1926
        %v1945 = vpack.c.b16 %v1929, %v1928
        %1962 = vmatpush.bf16.msra.mxu0 %v1937
        %1963 = vmatpush.bf16.msra.mxu0 %v1936
        %1964 = vmatpush.bf16.msra.mxu0 %v1935
        %1965 = vmatpush.bf16.msra.mxu0 %v1934
        %1966 = vmatpush.bf16.msra.mxu0 %v1933
        %1967 = vmatpush.bf16.msra.mxu0 %v1932
        %1968 = vmatpush.bf16.msra.mxu0 %v1931
        %1969 = vmatpush.bf16.msra.mxu0 %v1930
        %1970 = vmatmul.bf16.gmra.mxu0 %v1828
        %v1971 = vpop.f32.mrf.mxu0
        %v1972 = vadd.f32 %v1864, %v1971
        %v1973 = vpop.f32.mrf.mxu0
        %v1974 = vadd.f32 %v1864, %v1973
        %1975 = vdwg.mxu0
        %1976 = vmatpush.bf16.msra.mxu0 %v1945
        %1977 = vmatpush.bf16.msra.mxu0 %v1944
        %1978 = vmatpush.bf16.msra.mxu0 %v1943
        %1979 = vmatpush.bf16.msra.mxu0 %v1942
        %1980 = vmatpush.bf16.msra.mxu0 %v1941
        %1981 = vmatpush.bf16.msra.mxu0 %v1940
        %1982 = vmatpush.bf16.msra.mxu0 %v1939
        %1983 = vmatpush.bf16.msra.mxu0 %v1938
        %1984 = vmatmul.bf16.gmra.mxu0 %v1829
        %v1985 = vpop.f32.mrf.mxu0
        %v1986 = vadd.f32 %v1972, %v1985
        %v1987 = vpop.f32.mrf.mxu0
        %v1988 = vadd.f32 %v1974, %v1987
        %1989 = vdwg.mxu0
        %v1990 = vadd.f32 %v470, %v1650
        %v1991 = vadd.f32 %v471, %v1651
        %v1992 = vadd.f32 %v1990, %v1986
        %v1993 = vadd.f32 %v1991, %v1988
        %1994 = vst.msk [vmem:[%s463] sm:$0xff] %vm474, %v1992
        %1995 = vst.msk [vmem:[%s463 + $0x8] sm:$0xff] %vm474, %v1993
        %s1996 = sand.u32 %s315, 1
        %s1997 = scalar_lea.sflag [#allocation4], %s1996
        %s1998 = sand.u32 %s315, 1
        %s1999 = smul.addr %s1998, 16
        %s2000 = scalar_lea.vmem [#allocation7], %s1999
        // Predicated region
        $region81: #{tpu_custom_call.1} parent=71 // pred_check
          %p2001 = pneg %p325
        $region82: #{tpu_custom_call.1} parent=71 // pred_check_branch
          %2003 = sbr.rel (%p2001) target = $region84
        $region83: #{tpu_custom_call.1} parent=71 // pred_region
          %2005 = vsyncadd %s1997, 0
          %s2006 = smul.addr %s29, 2
          %s2007 = smul.addr %s2006, 8
          %s2008 = scalar_lea.hbm %s13, %s2007
          %s2009 = sshll.u32 %s2000, 4
          %s2010 = int_to_ptr.vmem [resolvable:$true] %s2009
          %s2011 = sshll.u32 %s2008, 4
          %s2012 = int_to_ptr.hbm [resolvable:$true] %s2011
          %2017 = dma.vmem_to_hbm [thread:$0]  %s2010, 256, %s2012, %s1997, 128, 128, 8
        $region84: #{tpu_custom_call.1} parent=71 // pred_fallthru
          _
      $region72: #{tpu_custom_call.1} parent=5 // pred_fallthru
        _
      %p2018 = scmp.le.s32.totalorder 2, %s24
      // Predicated region
      $region85: #{tpu_custom_call.1} parent=5 // pred_check
        %p2019 = pneg %p2018
      $region86: #{tpu_custom_call.1} parent=5 // pred_check_branch
        %2021 = sbr.rel (%p2019) target = $region88
      $region87: #{tpu_custom_call.1} parent=5 // pred_region
        %s2022 = ssub.s32 %s24, 2
        // Predicated region
        $region89: #{tpu_custom_call.1} parent=87 // pred_check
          %p2023 = pneg %p331
        $region90: #{tpu_custom_call.1} parent=87 // pred_check_branch
          %2025 = sbr.rel (%p2023) target = $region92
        $region91: #{tpu_custom_call.1} parent=87 // pred_region
          %s2026 = sand.u32 %s316, 1
          %s2027 = scalar_lea.sflag [#allocation4], %s2026
          %s2028 = sand.u32 %s316, 1
          %s2029 = smul.addr %s2028, 16
          %s2030 = scalar_lea.vmem [#allocation7], %s2029
          %2032 = dma.done %s2027, 256
        $region92: #{tpu_custom_call.1} parent=87 // pred_fallthru
          _
      $region88: #{tpu_custom_call.1} parent=5 // pred_fallthru
        _
    $region6: #{tpu_custom_call.1} parent=1 // loop_footer
      %s28 = sadd.s32 1, %s24
    $region7: #{tpu_custom_call.1} parent=1 // loop_footer_branch
      %23 = sbr.rel target = $region3
    $region8: #{tpu_custom_call.1} parent=1 // loop_exit
      _
    %2033 = vsyncpa [#allocation3], 1
    %s2034 = scalar_lea.sflag [#allocation3], 1
    %2035 = vsyncpa %s2034, 1
    %2036 = vsyncpa [#allocation6], 1
    %2037 = vsyncpa [#allocation4], 1
    %s2038 = scalar_lea.sflag [#allocation4], 1
    %2039 = vsyncpa %s2038, 1

</llo_original>
